<compile_context>
chip_gen: v6e
topology: v6e:2x2x1
jax: 0.10.0
libtpu: 0.0.40
codegen_flags: <defaults>
</compile_context>

<pallas_src>
import functools

import jax
import jax.numpy as jnp
from jax.experimental import pallas as pl
from jax.experimental.pallas import tpu as pltpu


_SQRT_2_OVER_PI = 0.7978845608028654

_PARAM_ORDER = ("ln1_g", "ln1_b", "wq", "bq", "wk", "bk", "wv", "bv",
                "wproj", "bproj", "ln2_g", "ln2_b", "w1", "b1", "w2", "b2")


def _gelu_tanh(v):
    return 0.5 * v * (1.0 + jnp.tanh(_SQRT_2_OVER_PI * (v + 0.044715 * v * v * v)))


def _layernorm(v, g, b, eps):
    mu = jnp.mean(v, axis=-1, keepdims=True)
    var = jnp.mean(jnp.square(v - mu), axis=-1, keepdims=True)
    return (v - mu) * jax.lax.rsqrt(var + eps) * g + b


# ---------------------------------------------------------------------------
# The fused kernel: 2x (LN -> class-attention -> residual -> LN -> MLP ->
# residual) on the cls token + final LayerNorm of [cls ; x], one batch tile
# per grid step.
# ---------------------------------------------------------------------------
def _selfpatch_head_kernel(x_ref, cls_ref, sel_ref, selt_ref,
                           ln1_g_ref, ln1_b_ref, wq_ref, bq_ref, wk_ref, bk_ref,
                           wv_ref, bv_ref, wproj_ref, bproj_ref,
                           ln2_g_ref, ln2_b_ref, w1_ref, b1_ref, w2_ref, b2_ref,
                           fng_ref, fnb_ref, out_ref,
                           *, num_heads, num_blocks, eps):
    bt, n, c = x_ref.shape
    hd = c // num_heads
    scale = float(hd) ** -0.5
    f32 = jnp.float32

    # x is streamed from HBM exactly once; all statistics / elementwise math f32.
    x3 = x_ref[...].astype(f32)                       # (bt, n, c)
    x2 = x3.reshape(bt * n, c)                        # (bt*n, c)
    cls = jnp.broadcast_to(cls_ref[...].astype(f32), (bt, c))   # (bt, c)

    sel = sel_ref[...]                                # (c, H)  one-hot head selector
    selt = selt_ref[...]                              # (H, c)

    def mm(a, w):
        # bf16 operands on the MXU, f32 accumulation.
        return jnp.dot(a.astype(w.dtype), w, preferred_element_type=f32)

    for blk in range(num_blocks):   # unrolled; both blocks' weights stay VMEM-resident
        g1, be1 = ln1_g_ref[blk], ln1_b_ref[blk]
        # norm1 over the implicit u = [cls ; x]  (no concat materialised)
        x_n = _layernorm(x2, g1, be1, eps)            # (bt*n, c) f32
        cls_n = _layernorm(cls, g1, be1, eps)         # (bt, c)   f32

        # q from the cls row only; k/v on both cls and patch rows.
        q = (mm(cls_n, wq_ref[blk]) + bq_ref[blk]) * scale      # (bt, c)
        k_c = mm(cls_n, wk_ref[blk]) + bk_ref[blk]              # (bt, c)
        v_c = mm(cls_n, wv_ref[blk]) + bv_ref[blk]              # (bt, c)
        k_x = mm(x_n, wk_ref[blk]) + bk_ref[blk]                # (bt*n, c)
        v_x = mm(x_n, wv_ref[blk]) + bv_ref[blk]                # (bt*n, c)

        # per-head logits via the precomputed (c, H) selector: all dots stay 2-D.
        qk_x = (q[:, None, :] * k_x.reshape(bt, n, c)).reshape(bt * n, c)
        logit_x = mm(qk_x, sel).reshape(bt, n, num_heads)       # (bt, n, H) f32
        logit_c = mm(q * k_c, sel)                              # (bt, H)    f32

        # joint softmax over the (n + 1) keys (cls key + patch keys), f32 math.
        m = jnp.maximum(jnp.max(logit_x, axis=1), logit_c)      # (bt, H)
        p_x = jnp.exp(logit_x - m[:, None, :])                  # (bt, n, H)
        p_c = jnp.exp(logit_c - m)                              # (bt, H)
        inv = pl.reciprocal(jnp.sum(p_x, axis=1) + p_c, approx=True)
        p_x = p_x * inv[:, None, :]
        p_c = p_c * inv

        # expand per-head probabilities back to channel layout, reduce over keys.
        p_xc = mm(p_x.reshape(bt * n, num_heads), selt)         # (bt*n, c)
        p_cc = mm(p_c, selt)                                    # (bt, c)
        attn = jnp.sum((p_xc * v_x).reshape(bt, n, c), axis=1) + p_cc * v_c  # (bt, c)

        # output projection + residual (residual base = un-normed cls token)
        cls = cls + mm(attn, wproj_ref[blk]) + bproj_ref[blk]

        # cls-token MLP: norm2 -> fc1 -> GELU -> fc2 -> residual
        h = _layernorm(cls, ln2_g_ref[blk], ln2_b_ref[blk], eps)
        h = _gelu_tanh(mm(h, w1_ref[blk]) + b1_ref[blk])
        cls = cls + mm(h, w2_ref[blk]) + b2_ref[blk]

    # final LayerNorm over the implicit cat([cls, x], dim=1), written in place
    # (the separate final-norm kernel from the previous version is gone).
    fg, fb = fng_ref[...], fnb_ref[...]
    out_cls = _layernorm(cls, fg, fb, eps)                      # (bt, c)
    out_x = _layernorm(x2, fg, fb, eps).reshape(bt, n, c)       # (bt, n, c)
    out_ref[:, pl.ds(0, 1), :] = out_cls.reshape(bt, 1, c).astype(out_ref.dtype)
    out_ref[:, pl.ds(1, n), :] = out_x.astype(out_ref.dtype)


# ---------------------------------------------------------------------------
# One-time parameter packing (transposes / stacking / bf16 cast / selectors).
# ---------------------------------------------------------------------------
def prepare_selfpatch_params(cls_token, blocks, norm_g, norm_b, num_heads,
                             matmul_dtype=jnp.bfloat16):
    C = cls_token.shape[-1]
    assert C % num_heads == 0, "in_dim must be divisible by num_heads"
    hd = C // num_heads

    def stack(key, transpose=False, dtype=jnp.float32, row=False):
        arrs = []
        for p in blocks:
            a = jnp.asarray(p[key])
            if transpose:
                a = a.T
            if row:
                a = a.reshape(1, -1)
            arrs.append(a)
        return jnp.stack(arrs).astype(dtype)

    head_of_c = jnp.arange(C) // hd
    sel = (head_of_c[:, None] == jnp.arange(num_heads)[None, :]).astype(matmul_dtype)

    return dict(
        cls=cls_token.reshape(1, C).astype(jnp.float32),
        sel=sel,                       # (C, H)
        sel_t=sel.T,                   # (H, C)
        ln1_g=stack("ln1_g", row=True), ln1_b=stack("ln1_b", row=True),
        wq=stack("wq", transpose=True, dtype=matmul_dtype), bq=stack("bq", row=True),
        wk=stack("wk", transpose=True, dtype=matmul_dtype), bk=stack("bk", row=True),
        wv=stack("wv", transpose=True, dtype=matmul_dtype), bv=stack("bv", row=True),
        wproj=stack("wproj", transpose=True, dtype=matmul_dtype), bproj=stack("bproj", row=True),
        ln2_g=stack("ln2_g", row=True), ln2_b=stack("ln2_b", row=True),
        w1=stack("w1", transpose=True, dtype=matmul_dtype), b1=stack("b1", row=True),
        w2=stack("w2", transpose=True, dtype=matmul_dtype), b2=stack("b2", row=True),
        norm_g=norm_g.reshape(1, C).astype(jnp.float32),
        norm_b=norm_b.reshape(1, C).astype(jnp.float32),
    )


# ---------------------------------------------------------------------------
# SelfPatchHead forward (loc=False path): one fused pallas_call.
# ---------------------------------------------------------------------------
def selfpatch_head_forward(x, prepared, num_heads, eps=1e-6):
    B, N, C = x.shape
    num_blocks = prepared["wq"].shape[0]
    hidden = prepared["w1"].shape[-1]

    # Batch tile: target M = b_tile*N ~ 256 (fills v6e/v7x 256x256 MXU; 128 is
    # enough on v5e), but keep at least 2 grid steps when B allows it so v7x's
    # two TensorCores both get work, and make b_tile divide B.
    b_tile = max(1, min(B, pl.cdiv(256, max(N, 1))))
    if B >= 2:
        b_tile = max(1, min(b_tile, B // 2))
    while B % b_tile:
        b_tile -= 1
    num_tiles = B // b_tile

    nbytes = lambda a: a.size * a.dtype.itemsize
    weight_keys = ("cls", "sel", "sel_t", "norm_g", "norm_b") + _PARAM_ORDER
    resident_bytes = sum(nbytes(prepared[k]) for k in weight_keys)
    stream_bytes = 2 * (b_tile * N * C + b_tile * (N + 1) * C) * x.dtype.itemsize
    vmem_est = resident_bytes + stream_bytes

    # Only raise the scoped-VMEM limit when the 32 MiB default would not hold the
    # resident weights + double-buffered activation tiles (v7x physical = 64 MiB).
    compiler_kwargs = dict(dimension_semantics=("parallel",))
    if vmem_est > 32 * 2**20:
        compiler_kwargs["vmem_limit_bytes"] = min(int(vmem_est * 2), 100 * 2**20)

    def resident_spec(a):
        return pl.BlockSpec(a.shape, lambda i, nd=a.ndim: (0,) * nd)

    kernel = functools.partial(_selfpatch_head_kernel, num_heads=num_heads,
                               num_blocks=num_blocks, eps=eps)

    flops = num_blocks * B * (
        2 * N * C * C * 2                 # K, V projections over patch rows
        + 2 * C * C * 4                   # q, k, v, proj on the cls row
        + 4 * (N + 1) * C * num_heads     # logit + prob-expansion selector matmuls
        + 2 * C * hidden * 2)             # MLP fc1 + fc2
    transcendentals = num_blocks * B * ((N + 1) * num_heads + hidden)
    bytes_accessed = (x.size * x.dtype.itemsize
                      + B * (N + 1) * C * x.dtype.itemsize
                      + resident_bytes)

    return pl.pallas_call(
        kernel,
        out_shape=jax.ShapeDtypeStruct((B, N + 1, C), x.dtype),
        grid=(num_tiles,),
        in_specs=[
            pl.BlockSpec((b_tile, N, C), lambda i: (i, 0, 0)),   # x  (per-tile)
            resident_spec(prepared["cls"]),
            resident_spec(prepared["sel"]),
            resident_spec(prepared["sel_t"]),
            *[resident_spec(prepared[k]) for k in _PARAM_ORDER],
            resident_spec(prepared["norm_g"]),
            resident_spec(prepared["norm_b"]),
        ],
        out_specs=pl.BlockSpec((b_tile, N + 1, C), lambda i: (i, 0, 0)),
        compiler_params=pltpu.CompilerParams(**compiler_kwargs),
        cost_estimate=pl.CostEstimate(flops=flops,
                                      transcendentals=transcendentals,
                                      bytes_accessed=bytes_accessed),
    )(x, prepared["cls"], prepared["sel"], prepared["sel_t"],
      *[prepared[k] for k in _PARAM_ORDER],
      prepared["norm_g"], prepared["norm_b"])


# ---------------------------------------------------------------------------
# Pure-JAX reference (mirrors the PyTorch module, f32 / HIGHEST, tanh-GELU)
# ---------------------------------------------------------------------------
_HP = jax.lax.Precision.HIGHEST


def _mm_ref(a, b):
    return jnp.matmul(a, b, precision=_HP)


def _ln_ref(v, g, b, eps=1e-6):
    mu = jnp.mean(v, axis=-1, keepdims=True)
    var = jnp.mean(jnp.square(v - mu), axis=-1, keepdims=True)
    return (v - mu) * jax.lax.rsqrt(var + eps) * g + b


def _class_attention_ref(u, p, num_heads):
    B, N, C = u.shape
    hd = C // num_heads
    scale = hd ** -0.5
    q = _mm_ref(u[:, 0:1], p["wq"].T) + p["bq"]
    k = _mm_ref(u, p["wk"].T) + p["bk"]
    v = _mm_ref(u, p["wv"].T) + p["bv"]
    q = q.reshape(B, 1, num_heads, hd).transpose(0, 2, 1, 3) * scale
    k = k.reshape(B, N, num_heads, hd).transpose(0, 2, 1, 3)
    v = v.reshape(B, N, num_heads, hd).transpose(0, 2, 1, 3)
    attn = jax.nn.softmax(_mm_ref(q, jnp.swapaxes(k, -2, -1)), axis=-1)
    out = _mm_ref(attn, v).transpose(0, 2, 1, 3).reshape(B, 1, C)
    return _mm_ref(out, p["wproj"].T) + p["bproj"]


def _block_ref(x, x_cls, p, num_heads, eps=1e-6):
    u = jnp.concatenate([x_cls, x], axis=1)
    u_ = _class_attention_ref(_ln_ref(u, p["ln1_g"], p["ln1_b"], eps), p, num_heads)
    x_cls = x_cls + u_
    h = _ln_ref(x_cls, p["ln2_g"], p["ln2_b"], eps)
    h = _gelu_tanh(_mm_ref(h, p["w1"].T) + p["b1"])
    h = _mm_ref(h, p["w2"].T) + p["b2"]
    return x_cls + h


def selfpatch_head_reference(x, cls_token, blocks, norm_g, norm_b, num_heads):
    B = x.shape[0]
    cls = jnp.broadcast_to(cls_token, (B, 1, x.shape[-1]))
    for p in blocks:
        cls = _block_ref(x, cls, p, num_heads)
    return _ln_ref(jnp.concatenate([cls, x], axis=1), norm_g, norm_b, 1e-6)


# ---------------------------------------------------------------------------
# Deterministic synthetic parameters / demo
# ---------------------------------------------------------------------------
def _make_block_params(key, dim, mlp_ratio=4):
    hidden = int(dim * mlp_ratio)
    ks = jax.random.split(key, 16)

    def w(k, shape, s=0.02):
        return s * jax.random.normal(k, shape, dtype=jnp.float32)

    return dict(
        ln1_g=1.0 + w(ks[0], (dim,), 0.05), ln1_b=w(ks[1], (dim,), 0.05),
        wq=w(ks[2], (dim, dim)), bq=w(ks[3], (dim,), 0.01),
        wk=w(ks[4], (dim, dim)), bk=w(ks[5], (dim,), 0.01),
        wv=w(ks[6], (dim, dim)), bv=w(ks[7], (dim,), 0.01),
        wproj=w(ks[8], (dim, dim)), bproj=w(ks[9], (dim,), 0.01),
        ln2_g=1.0 + w(ks[10], (dim,), 0.05), ln2_b=w(ks[11], (dim,), 0.05),
        w1=w(ks[12], (hidden, dim)), b1=w(ks[13], (hidden,), 0.01),
        w2=w(ks[14], (dim, hidden)), b2=w(ks[15], (dim,), 0.01),
    )


if __name__ == "__main__":
    # Small shapes consistent with the module: batch=2, seq=8 patch tokens,
    # in_dim=32, num_heads=4 (k_num only matters for the loc=True branch).
    B, N, C = 2, 8, 32
    num_heads = 4

    key = jax.random.PRNGKey(0)
    k_x, k_cls, k_b0, k_b1, k_fg, k_fb = jax.random.split(key, 6)

    x = jax.random.normal(k_x, (B, N, C), dtype=jnp.float32)
    cls_token = 0.02 * jax.random.normal(k_cls, (1, 1, C), dtype=jnp.float32)
    blocks = [_make_block_params(k_b0, C), _make_block_params(k_b1, C)]
    norm_g = 1.0 + 0.05 * jax.random.normal(k_fg, (C,), dtype=jnp.float32)
    norm_b = 0.05 * jax.random.normal(k_fb, (C,), dtype=jnp.float32)

    # Weight packing happens once, outside the forward path.
    prepared = prepare_selfpatch_params(cls_token, blocks, norm_g, norm_b, num_heads)

    fwd = jax.jit(functools.partial(selfpatch_head_forward, num_heads=num_heads))
    out = jax.block_until_ready(fwd(x, prepared))

    ref = selfpatch_head_reference(x, cls_token, blocks, norm_g, norm_b, num_heads)
    assert out.shape == (B, N + 1, C)

    # Patch rows only pass through the f32 final LayerNorm -> tight tolerance.
    patch_diff = float(jnp.max(jnp.abs(out[:, 1:] - ref[:, 1:])))
    assert jnp.allclose(out[:, 1:], ref[:, 1:], atol=2e-3, rtol=2e-3), \
        f"patch-row max diff {patch_diff}"

    # The cls row goes through two blocks of bf16 matmuls on a small-magnitude
    # residual stream followed by LayerNorm re-normalisation, which amplifies the
    # absolute bf16 error -> compare with a bf16-appropriate tolerance.
    cls_diff = float(jnp.max(jnp.abs(out[:, 0] - ref[:, 0])))
    assert jnp.allclose(out[:, 0], ref[:, 0], atol=5e-2, rtol=5e-2), \
        f"cls-row max diff {cls_diff}"

    print("KERNEL_OK")
</pallas_src>

<mosaic_0001>
module attributes {stable_mosaic.version = 11 : i64} {
  func.func @_selfpatch_head_kernel(%arg0: i32, %arg1: memref<1x8x32xf32, #tpu.memory_space<vmem>>, %arg2: memref<1x32xf32, #tpu.memory_space<vmem>>, %arg3: memref<32x4xbf16, #tpu.memory_space<vmem>>, %arg4: memref<4x32xbf16, #tpu.memory_space<vmem>>, %arg5: memref<2x1x32xf32, #tpu.memory_space<vmem>>, %arg6: memref<2x1x32xf32, #tpu.memory_space<vmem>>, %arg7: memref<2x32x32xbf16, #tpu.memory_space<vmem>>, %arg8: memref<2x1x32xf32, #tpu.memory_space<vmem>>, %arg9: memref<2x32x32xbf16, #tpu.memory_space<vmem>>, %arg10: memref<2x1x32xf32, #tpu.memory_space<vmem>>, %arg11: memref<2x32x32xbf16, #tpu.memory_space<vmem>>, %arg12: memref<2x1x32xf32, #tpu.memory_space<vmem>>, %arg13: memref<2x32x32xbf16, #tpu.memory_space<vmem>>, %arg14: memref<2x1x32xf32, #tpu.memory_space<vmem>>, %arg15: memref<2x1x32xf32, #tpu.memory_space<vmem>>, %arg16: memref<2x1x32xf32, #tpu.memory_space<vmem>>, %arg17: memref<2x32x128xbf16, #tpu.memory_space<vmem>>, %arg18: memref<2x1x128xf32, #tpu.memory_space<vmem>>, %arg19: memref<2x128x32xbf16, #tpu.memory_space<vmem>>, %arg20: memref<2x1x32xf32, #tpu.memory_space<vmem>>, %arg21: memref<1x32xf32, #tpu.memory_space<vmem>>, %arg22: memref<1x32xf32, #tpu.memory_space<vmem>>, %arg23: memref<1x9x32xf32, #tpu.memory_space<vmem>>) attributes {dimension_semantics = [#tpu.dimension_semantics<parallel>], iteration_bounds = array<i64: 2>, scalar_prefetch = 0 : i64, scratch_operands = 0 : i64, tpu.core_type = #tpu.core_type<tc>, window_params = [{transform_indices = @transform_0, window_bounds = array<i64: 1, 8, 32>}, {pipeline_mode = #tpu.pipeline_mode<synchronous>, transform_indices = @transform_1, window_bounds = array<i64: 1, 32>}, {pipeline_mode = #tpu.pipeline_mode<synchronous>, transform_indices = @transform_2, window_bounds = array<i64: 32, 4>}, {pipeline_mode = #tpu.pipeline_mode<synchronous>, transform_indices = @transform_3, window_bounds = array<i64: 4, 32>}, {pipeline_mode = #tpu.pipeline_mode<synchronous>, transform_indices = @transform_4, window_bounds = array<i64: 2, 1, 32>}, {pipeline_mode = #tpu.pipeline_mode<synchronous>, transform_indices = @transform_5, window_bounds = array<i64: 2, 1, 32>}, {pipeline_mode = #tpu.pipeline_mode<synchronous>, transform_indices = @transform_6, window_bounds = array<i64: 2, 32, 32>}, {pipeline_mode = #tpu.pipeline_mode<synchronous>, transform_indices = @transform_7, window_bounds = array<i64: 2, 1, 32>}, {pipeline_mode = #tpu.pipeline_mode<synchronous>, transform_indices = @transform_8, window_bounds = array<i64: 2, 32, 32>}, {pipeline_mode = #tpu.pipeline_mode<synchronous>, transform_indices = @transform_9, window_bounds = array<i64: 2, 1, 32>}, {pipeline_mode = #tpu.pipeline_mode<synchronous>, transform_indices = @transform_10, window_bounds = array<i64: 2, 32, 32>}, {pipeline_mode = #tpu.pipeline_mode<synchronous>, transform_indices = @transform_11, window_bounds = array<i64: 2, 1, 32>}, {pipeline_mode = #tpu.pipeline_mode<synchronous>, transform_indices = @transform_12, window_bounds = array<i64: 2, 32, 32>}, {pipeline_mode = #tpu.pipeline_mode<synchronous>, transform_indices = @transform_13, window_bounds = array<i64: 2, 1, 32>}, {pipeline_mode = #tpu.pipeline_mode<synchronous>, transform_indices = @transform_14, window_bounds = array<i64: 2, 1, 32>}, {pipeline_mode = #tpu.pipeline_mode<synchronous>, transform_indices = @transform_15, window_bounds = array<i64: 2, 1, 32>}, {pipeline_mode = #tpu.pipeline_mode<synchronous>, transform_indices = @transform_16, window_bounds = array<i64: 2, 32, 128>}, {pipeline_mode = #tpu.pipeline_mode<synchronous>, transform_indices = @transform_17, window_bounds = array<i64: 2, 1, 128>}, {pipeline_mode = #tpu.pipeline_mode<synchronous>, transform_indices = @transform_18, window_bounds = array<i64: 2, 128, 32>}, {pipeline_mode = #tpu.pipeline_mode<synchronous>, transform_indices = @transform_19, window_bounds = array<i64: 2, 1, 32>}, {pipeline_mode = #tpu.pipeline_mode<synchronous>, transform_indices = @transform_20, window_bounds = array<i64: 1, 32>}, {pipeline_mode = #tpu.pipeline_mode<synchronous>, transform_indices = @transform_21, window_bounds = array<i64: 1, 32>}, {transform_indices = @transform_22, window_bounds = array<i64: 1, 9, 32>}]} {
    %c0 = arith.constant 0 : index
    %c0_0 = arith.constant 0 : index
    %c0_1 = arith.constant 0 : index
    %0 = vector.load %arg1[%c0, %c0_0, %c0_1] : memref<1x8x32xf32, #tpu.memory_space<vmem>>, vector<1x8x32xf32>
    %1 = vector.shape_cast %0 : vector<1x8x32xf32> to vector<8x32xf32>
    %c0_2 = arith.constant 0 : index
    %c0_3 = arith.constant 0 : index
    %2 = vector.load %arg2[%c0_2, %c0_3] : memref<1x32xf32, #tpu.memory_space<vmem>>, vector<1x32xf32>
    %c0_4 = arith.constant 0 : index
    %c0_5 = arith.constant 0 : index
    %3 = vector.load %arg3[%c0_4, %c0_5] : memref<32x4xbf16, #tpu.memory_space<vmem>>, vector<32x4xbf16>
    %c0_6 = arith.constant 0 : index
    %c0_7 = arith.constant 0 : index
    %4 = vector.load %arg4[%c0_6, %c0_7] : memref<4x32xbf16, #tpu.memory_space<vmem>>, vector<4x32xbf16>
    %c0_8 = arith.constant 0 : index
    %c0_9 = arith.constant 0 : index
    %c0_10 = arith.constant 0 : index
    %5 = vector.load %arg5[%c0_8, %c0_9, %c0_10] : memref<2x1x32xf32, #tpu.memory_space<vmem>>, vector<1x1x32xf32>
    %6 = vector.shape_cast %5 : vector<1x1x32xf32> to vector<1x32xf32>
    %c0_11 = arith.constant 0 : index
    %c0_12 = arith.constant 0 : index
    %c0_13 = arith.constant 0 : index
    %7 = vector.load %arg6[%c0_11, %c0_12, %c0_13] : memref<2x1x32xf32, #tpu.memory_space<vmem>>, vector<1x1x32xf32>
    %8 = vector.shape_cast %7 : vector<1x1x32xf32> to vector<1x32xf32>
    %cst = arith.constant dense<0.000000e+00> : vector<8xf32>
    %9 = vector.multi_reduction <add>, %1, %cst [1] : vector<8x32xf32> to vector<8xf32>
    %10 = vector.shape_cast %9 : vector<8xf32> to vector<8x1xf32>
    %cst_14 = arith.constant 3.200000e+01 : f32
    %11 = vector.broadcast %cst_14 : f32 to vector<8x1xf32>
    %12 = arith.divf %10, %11 : vector<8x1xf32>
    %13 = vector.broadcast %12 : vector<8x1xf32> to vector<8x32xf32>
    %14 = arith.subf %1, %13 : vector<8x32xf32>
    %15 = arith.mulf %14, %14 : vector<8x32xf32>
    %cst_15 = arith.constant dense<0.000000e+00> : vector<8xf32>
    %16 = vector.multi_reduction <add>, %15, %cst_15 [1] : vector<8x32xf32> to vector<8xf32>
    %17 = vector.shape_cast %16 : vector<8xf32> to vector<8x1xf32>
    %cst_16 = arith.constant 3.200000e+01 : f32
    %18 = vector.broadcast %cst_16 : f32 to vector<8x1xf32>
    %19 = arith.divf %17, %18 : vector<8x1xf32>
    %20 = vector.broadcast %12 : vector<8x1xf32> to vector<8x32xf32>
    %21 = arith.subf %1, %20 : vector<8x32xf32>
    %cst_17 = arith.constant 9.99999997E-7 : f32
    %22 = vector.broadcast %cst_17 : f32 to vector<8x1xf32>
    %23 = arith.addf %19, %22 : vector<8x1xf32>
    %24 = math.rsqrt %23 : vector<8x1xf32>
    %25 = vector.broadcast %24 : vector<8x1xf32> to vector<8x32xf32>
    %26 = arith.mulf %21, %25 : vector<8x32xf32>
    %27 = vector.broadcast %6 : vector<1x32xf32> to vector<8x32xf32>
    %28 = arith.mulf %26, %27 : vector<8x32xf32>
    %29 = vector.broadcast %8 : vector<1x32xf32> to vector<8x32xf32>
    %30 = arith.addf %28, %29 : vector<8x32xf32>
    %cst_18 = arith.constant dense<0.000000e+00> : vector<1xf32>
    %31 = vector.multi_reduction <add>, %2, %cst_18 [1] : vector<1x32xf32> to vector<1xf32>
    %32 = vector.shape_cast %31 : vector<1xf32> to vector<1x1xf32>
    %cst_19 = arith.constant 3.200000e+01 : f32
    %33 = vector.broadcast %cst_19 : f32 to vector<1x1xf32>
    %34 = arith.divf %32, %33 : vector<1x1xf32>
    %35 = vector.broadcast %34 : vector<1x1xf32> to vector<1x32xf32>
    %36 = arith.subf %2, %35 : vector<1x32xf32>
    %37 = arith.mulf %36, %36 : vector<1x32xf32>
    %cst_20 = arith.constant dense<0.000000e+00> : vector<1xf32>
    %38 = vector.multi_reduction <add>, %37, %cst_20 [1] : vector<1x32xf32> to vector<1xf32>
    %39 = vector.shape_cast %38 : vector<1xf32> to vector<1x1xf32>
    %cst_21 = arith.constant 3.200000e+01 : f32
    %40 = vector.broadcast %cst_21 : f32 to vector<1x1xf32>
    %41 = arith.divf %39, %40 : vector<1x1xf32>
    %42 = vector.broadcast %34 : vector<1x1xf32> to vector<1x32xf32>
    %43 = arith.subf %2, %42 : vector<1x32xf32>
    %cst_22 = arith.constant 9.99999997E-7 : f32
    %44 = vector.broadcast %cst_22 : f32 to vector<1x1xf32>
    %45 = arith.addf %41, %44 : vector<1x1xf32>
    %46 = math.rsqrt %45 : vector<1x1xf32>
    %47 = vector.broadcast %46 : vector<1x1xf32> to vector<1x32xf32>
    %48 = arith.mulf %43, %47 : vector<1x32xf32>
    %49 = arith.mulf %48, %6 : vector<1x32xf32>
    %50 = arith.addf %49, %8 : vector<1x32xf32>
    %c0_23 = arith.constant 0 : index
    %c0_24 = arith.constant 0 : index
    %c0_25 = arith.constant 0 : index
    %51 = vector.load %arg7[%c0_23, %c0_24, %c0_25] : memref<2x32x32xbf16, #tpu.memory_space<vmem>>, vector<1x32x32xbf16>
    %52 = vector.shape_cast %51 : vector<1x32x32xbf16> to vector<32x32xbf16>
    %53 = arith.truncf %50 : vector<1x32xf32> to vector<1x32xbf16>
    %cst_26 = arith.constant dense<0.000000e+00> : vector<1x32xf32>
    %54 = tpu.matmul %53, %52, %cst_26 {dimension_numbers = #tpu.dot_dimension_numbers<[1], [0], [0], [1], [0, 0, 1, 1], [], []>} : vector<1x32xbf16>, vector<32x32xbf16>, vector<1x32xf32> -> vector<1x32xf32>
    %c0_27 = arith.constant 0 : index
    %c0_28 = arith.constant 0 : index
    %c0_29 = arith.constant 0 : index
    %55 = vector.load %arg8[%c0_27, %c0_28, %c0_29] : memref<2x1x32xf32, #tpu.memory_space<vmem>>, vector<1x1x32xf32>
    %56 = vector.shape_cast %55 : vector<1x1x32xf32> to vector<1x32xf32>
    %57 = arith.addf %54, %56 : vector<1x32xf32>
    %cst_30 = arith.constant 0.353553385 : f32
    %58 = vector.broadcast %cst_30 : f32 to vector<1x32xf32>
    %59 = arith.mulf %57, %58 : vector<1x32xf32>
    %c0_31 = arith.constant 0 : index
    %c0_32 = arith.constant 0 : index
    %c0_33 = arith.constant 0 : index
    %60 = vector.load %arg9[%c0_31, %c0_32, %c0_33] : memref<2x32x32xbf16, #tpu.memory_space<vmem>>, vector<1x32x32xbf16>
    %61 = vector.shape_cast %60 : vector<1x32x32xbf16> to vector<32x32xbf16>
    %62 = arith.truncf %50 : vector<1x32xf32> to vector<1x32xbf16>
    %cst_34 = arith.constant dense<0.000000e+00> : vector<1x32xf32>
    %63 = tpu.matmul %62, %61, %cst_34 {dimension_numbers = #tpu.dot_dimension_numbers<[1], [0], [0], [1], [0, 0, 1, 1], [], []>} : vector<1x32xbf16>, vector<32x32xbf16>, vector<1x32xf32> -> vector<1x32xf32>
    %c0_35 = arith.constant 0 : index
    %c0_36 = arith.constant 0 : index
    %c0_37 = arith.constant 0 : index
    %64 = vector.load %arg10[%c0_35, %c0_36, %c0_37] : memref<2x1x32xf32, #tpu.memory_space<vmem>>, vector<1x1x32xf32>
    %65 = vector.shape_cast %64 : vector<1x1x32xf32> to vector<1x32xf32>
    %66 = arith.addf %63, %65 : vector<1x32xf32>
    %c0_38 = arith.constant 0 : index
    %c0_39 = arith.constant 0 : index
    %c0_40 = arith.constant 0 : index
    %67 = vector.load %arg11[%c0_38, %c0_39, %c0_40] : memref<2x32x32xbf16, #tpu.memory_space<vmem>>, vector<1x32x32xbf16>
    %68 = vector.shape_cast %67 : vector<1x32x32xbf16> to vector<32x32xbf16>
    %69 = arith.truncf %50 : vector<1x32xf32> to vector<1x32xbf16>
    %cst_41 = arith.constant dense<0.000000e+00> : vector<1x32xf32>
    %70 = tpu.matmul %69, %68, %cst_41 {dimension_numbers = #tpu.dot_dimension_numbers<[1], [0], [0], [1], [0, 0, 1, 1], [], []>} : vector<1x32xbf16>, vector<32x32xbf16>, vector<1x32xf32> -> vector<1x32xf32>
    %c0_42 = arith.constant 0 : index
    %c0_43 = arith.constant 0 : index
    %c0_44 = arith.constant 0 : index
    %71 = vector.load %arg12[%c0_42, %c0_43, %c0_44] : memref<2x1x32xf32, #tpu.memory_space<vmem>>, vector<1x1x32xf32>
    %72 = vector.shape_cast %71 : vector<1x1x32xf32> to vector<1x32xf32>
    %73 = arith.addf %70, %72 : vector<1x32xf32>
    %c0_45 = arith.constant 0 : index
    %c0_46 = arith.constant 0 : index
    %c0_47 = arith.constant 0 : index
    %74 = vector.load %arg9[%c0_45, %c0_46, %c0_47] : memref<2x32x32xbf16, #tpu.memory_space<vmem>>, vector<1x32x32xbf16>
    %75 = vector.shape_cast %74 : vector<1x32x32xbf16> to vector<32x32xbf16>
    %76 = arith.truncf %30 : vector<8x32xf32> to vector<8x32xbf16>
    %cst_48 = arith.constant dense<0.000000e+00> : vector<8x32xf32>
    %77 = tpu.matmul %76, %75, %cst_48 {dimension_numbers = #tpu.dot_dimension_numbers<[1], [0], [0], [1], [0, 0, 1, 1], [], []>} : vector<8x32xbf16>, vector<32x32xbf16>, vector<8x32xf32> -> vector<8x32xf32>
    %c0_49 = arith.constant 0 : index
    %c0_50 = arith.constant 0 : index
    %c0_51 = arith.constant 0 : index
    %78 = vector.load %arg10[%c0_49, %c0_50, %c0_51] : memref<2x1x32xf32, #tpu.memory_space<vmem>>, vector<1x1x32xf32>
    %79 = vector.shape_cast %78 : vector<1x1x32xf32> to vector<1x32xf32>
    %80 = vector.broadcast %79 : vector<1x32xf32> to vector<8x32xf32>
    %81 = arith.addf %77, %80 : vector<8x32xf32>
    %c0_52 = arith.constant 0 : index
    %c0_53 = arith.constant 0 : index
    %c0_54 = arith.constant 0 : index
    %82 = vector.load %arg11[%c0_52, %c0_53, %c0_54] : memref<2x32x32xbf16, #tpu.memory_space<vmem>>, vector<1x32x32xbf16>
    %83 = vector.shape_cast %82 : vector<1x32x32xbf16> to vector<32x32xbf16>
    %84 = arith.truncf %30 : vector<8x32xf32> to vector<8x32xbf16>
    %cst_55 = arith.constant dense<0.000000e+00> : vector<8x32xf32>
    %85 = tpu.matmul %84, %83, %cst_55 {dimension_numbers = #tpu.dot_dimension_numbers<[1], [0], [0], [1], [0, 0, 1, 1], [], []>} : vector<8x32xbf16>, vector<32x32xbf16>, vector<8x32xf32> -> vector<8x32xf32>
    %c0_56 = arith.constant 0 : index
    %c0_57 = arith.constant 0 : index
    %c0_58 = arith.constant 0 : index
    %86 = vector.load %arg12[%c0_56, %c0_57, %c0_58] : memref<2x1x32xf32, #tpu.memory_space<vmem>>, vector<1x1x32xf32>
    %87 = vector.shape_cast %86 : vector<1x1x32xf32> to vector<1x32xf32>
    %88 = vector.broadcast %87 : vector<1x32xf32> to vector<8x32xf32>
    %89 = arith.addf %85, %88 : vector<8x32xf32>
    %90 = vector.shape_cast %59 : vector<1x32xf32> to vector<1x1x32xf32>
    %91 = vector.shape_cast %81 : vector<8x32xf32> to vector<1x8x32xf32>
    %92 = vector.broadcast %90 : vector<1x1x32xf32> to vector<1x8x32xf32>
    %93 = arith.mulf %92, %91 : vector<1x8x32xf32>
    %94 = vector.shape_cast %93 : vector<1x8x32xf32> to vector<8x32xf32>
    %95 = arith.truncf %94 : vector<8x32xf32> to vector<8x32xbf16>
    %cst_59 = arith.constant dense<0.000000e+00> : vector<8x4xf32>
    %96 = tpu.matmul %95, %3, %cst_59 {dimension_numbers = #tpu.dot_dimension_numbers<[1], [0], [0], [1], [0, 0, 1, 1], [], []>} : vector<8x32xbf16>, vector<32x4xbf16>, vector<8x4xf32> -> vector<8x4xf32>
    %97 = vector.shape_cast %96 : vector<8x4xf32> to vector<1x8x4xf32>
    %98 = arith.mulf %59, %66 : vector<1x32xf32>
    %99 = arith.truncf %98 : vector<1x32xf32> to vector<1x32xbf16>
    %cst_60 = arith.constant dense<0.000000e+00> : vector<1x4xf32>
    %100 = tpu.matmul %99, %3, %cst_60 {dimension_numbers = #tpu.dot_dimension_numbers<[1], [0], [0], [1], [0, 0, 1, 1], [], []>} : vector<1x32xbf16>, vector<32x4xbf16>, vector<1x4xf32> -> vector<1x4xf32>
    %cst_61 = arith.constant dense<0xFF800000> : vector<1x4xf32>
    %101 = vector.multi_reduction <maximumf>, %97, %cst_61 [1] : vector<1x8x4xf32> to vector<1x4xf32>
    %102 = arith.maximumf %101, %100 : vector<1x4xf32>
    %103 = vector.shape_cast %102 : vector<1x4xf32> to vector<1x1x4xf32>
    %104 = vector.broadcast %103 : vector<1x1x4xf32> to vector<1x8x4xf32>
    %105 = arith.subf %97, %104 : vector<1x8x4xf32>
    %106 = math.exp %105 : vector<1x8x4xf32>
    %107 = arith.subf %100, %102 : vector<1x4xf32>
    %108 = math.exp %107 : vector<1x4xf32>
    %cst_62 = arith.constant dense<0.000000e+00> : vector<1x4xf32>
    %109 = vector.multi_reduction <add>, %106, %cst_62 [1] : vector<1x8x4xf32> to vector<1x4xf32>
    %110 = arith.addf %109, %108 : vector<1x4xf32>
    %111 = tpu.reciprocal %110 {approx = true} : vector<1x4xf32> -> vector<1x4xf32>
    %112 = vector.shape_cast %111 : vector<1x4xf32> to vector<1x1x4xf32>
    %113 = vector.broadcast %112 : vector<1x1x4xf32> to vector<1x8x4xf32>
    %114 = arith.mulf %106, %113 : vector<1x8x4xf32>
    %115 = arith.mulf %108, %111 : vector<1x4xf32>
    %116 = vector.shape_cast %114 : vector<1x8x4xf32> to vector<8x4xf32>
    %117 = arith.truncf %116 : vector<8x4xf32> to vector<8x4xbf16>
    %cst_63 = arith.constant dense<0.000000e+00> : vector<8x32xf32>
    %118 = tpu.matmul %117, %4, %cst_63 {dimension_numbers = #tpu.dot_dimension_numbers<[1], [0], [0], [1], [0, 0, 1, 1], [], []>} : vector<8x4xbf16>, vector<4x32xbf16>, vector<8x32xf32> -> vector<8x32xf32>
    %119 = arith.truncf %115 : vector<1x4xf32> to vector<1x4xbf16>
    %cst_64 = arith.constant dense<0.000000e+00> : vector<1x32xf32>
    %120 = tpu.matmul %119, %4, %cst_64 {dimension_numbers = #tpu.dot_dimension_numbers<[1], [0], [0], [1], [0, 0, 1, 1], [], []>} : vector<1x4xbf16>, vector<4x32xbf16>, vector<1x32xf32> -> vector<1x32xf32>
    %121 = arith.mulf %118, %89 : vector<8x32xf32>
    %122 = vector.shape_cast %121 : vector<8x32xf32> to vector<1x8x32xf32>
    %cst_65 = arith.constant dense<0.000000e+00> : vector<1x32xf32>
    %123 = vector.multi_reduction <add>, %122, %cst_65 [1] : vector<1x8x32xf32> to vector<1x32xf32>
    %124 = arith.mulf %120, %73 : vector<1x32xf32>
    %125 = arith.addf %123, %124 : vector<1x32xf32>
    %c0_66 = arith.constant 0 : index
    %c0_67 = arith.constant 0 : index
    %c0_68 = arith.constant 0 : index
    %126 = vector.load %arg13[%c0_66, %c0_67, %c0_68] : memref<2x32x32xbf16, #tpu.memory_space<vmem>>, vector<1x32x32xbf16>
    %127 = vector.shape_cast %126 : vector<1x32x32xbf16> to vector<32x32xbf16>
    %128 = arith.truncf %125 : vector<1x32xf32> to vector<1x32xbf16>
    %cst_69 = arith.constant dense<0.000000e+00> : vector<1x32xf32>
    %129 = tpu.matmul %128, %127, %cst_69 {dimension_numbers = #tpu.dot_dimension_numbers<[1], [0], [0], [1], [0, 0, 1, 1], [], []>} : vector<1x32xbf16>, vector<32x32xbf16>, vector<1x32xf32> -> vector<1x32xf32>
    %130 = arith.addf %2, %129 : vector<1x32xf32>
    %c0_70 = arith.constant 0 : index
    %c0_71 = arith.constant 0 : index
    %c0_72 = arith.constant 0 : index
    %131 = vector.load %arg14[%c0_70, %c0_71, %c0_72] : memref<2x1x32xf32, #tpu.memory_space<vmem>>, vector<1x1x32xf32>
    %132 = vector.shape_cast %131 : vector<1x1x32xf32> to vector<1x32xf32>
    %133 = arith.addf %130, %132 : vector<1x32xf32>
    %c0_73 = arith.constant 0 : index
    %c0_74 = arith.constant 0 : index
    %c0_75 = arith.constant 0 : index
    %134 = vector.load %arg15[%c0_73, %c0_74, %c0_75] : memref<2x1x32xf32, #tpu.memory_space<vmem>>, vector<1x1x32xf32>
    %135 = vector.shape_cast %134 : vector<1x1x32xf32> to vector<1x32xf32>
    %c0_76 = arith.constant 0 : index
    %c0_77 = arith.constant 0 : index
    %c0_78 = arith.constant 0 : index
    %136 = vector.load %arg16[%c0_76, %c0_77, %c0_78] : memref<2x1x32xf32, #tpu.memory_space<vmem>>, vector<1x1x32xf32>
    %137 = vector.shape_cast %136 : vector<1x1x32xf32> to vector<1x32xf32>
    %cst_79 = arith.constant dense<0.000000e+00> : vector<1xf32>
    %138 = vector.multi_reduction <add>, %133, %cst_79 [1] : vector<1x32xf32> to vector<1xf32>
    %139 = vector.shape_cast %138 : vector<1xf32> to vector<1x1xf32>
    %cst_80 = arith.constant 3.200000e+01 : f32
    %140 = vector.broadcast %cst_80 : f32 to vector<1x1xf32>
    %141 = arith.divf %139, %140 : vector<1x1xf32>
    %142 = vector.broadcast %141 : vector<1x1xf32> to vector<1x32xf32>
    %143 = arith.subf %133, %142 : vector<1x32xf32>
    %144 = arith.mulf %143, %143 : vector<1x32xf32>
    %cst_81 = arith.constant dense<0.000000e+00> : vector<1xf32>
    %145 = vector.multi_reduction <add>, %144, %cst_81 [1] : vector<1x32xf32> to vector<1xf32>
    %146 = vector.shape_cast %145 : vector<1xf32> to vector<1x1xf32>
    %cst_82 = arith.constant 3.200000e+01 : f32
    %147 = vector.broadcast %cst_82 : f32 to vector<1x1xf32>
    %148 = arith.divf %146, %147 : vector<1x1xf32>
    %149 = vector.broadcast %141 : vector<1x1xf32> to vector<1x32xf32>
    %150 = arith.subf %133, %149 : vector<1x32xf32>
    %cst_83 = arith.constant 9.99999997E-7 : f32
    %151 = vector.broadcast %cst_83 : f32 to vector<1x1xf32>
    %152 = arith.addf %148, %151 : vector<1x1xf32>
    %153 = math.rsqrt %152 : vector<1x1xf32>
    %154 = vector.broadcast %153 : vector<1x1xf32> to vector<1x32xf32>
    %155 = arith.mulf %150, %154 : vector<1x32xf32>
    %156 = arith.mulf %155, %135 : vector<1x32xf32>
    %157 = arith.addf %156, %137 : vector<1x32xf32>
    %c0_84 = arith.constant 0 : index
    %c0_85 = arith.constant 0 : index
    %c0_86 = arith.constant 0 : index
    %158 = vector.load %arg17[%c0_84, %c0_85, %c0_86] : memref<2x32x128xbf16, #tpu.memory_space<vmem>>, vector<1x32x128xbf16>
    %159 = vector.shape_cast %158 : vector<1x32x128xbf16> to vector<32x128xbf16>
    %160 = arith.truncf %157 : vector<1x32xf32> to vector<1x32xbf16>
    %cst_87 = arith.constant dense<0.000000e+00> : vector<1x128xf32>
    %161 = tpu.matmul %160, %159, %cst_87 {dimension_numbers = #tpu.dot_dimension_numbers<[1], [0], [0], [1], [0, 0, 1, 1], [], []>} : vector<1x32xbf16>, vector<32x128xbf16>, vector<1x128xf32> -> vector<1x128xf32>
    %c0_88 = arith.constant 0 : index
    %c0_89 = arith.constant 0 : index
    %c0_90 = arith.constant 0 : index
    %162 = vector.load %arg18[%c0_88, %c0_89, %c0_90] : memref<2x1x128xf32, #tpu.memory_space<vmem>>, vector<1x1x128xf32>
    %163 = vector.shape_cast %162 : vector<1x1x128xf32> to vector<1x128xf32>
    %164 = arith.addf %161, %163 : vector<1x128xf32>
    %cst_91 = arith.constant 5.000000e-01 : f32
    %165 = vector.broadcast %cst_91 : f32 to vector<1x128xf32>
    %166 = arith.mulf %165, %164 : vector<1x128xf32>
    %cst_92 = arith.constant 4.471500e-02 : f32
    %167 = vector.broadcast %cst_92 : f32 to vector<1x128xf32>
    %168 = arith.mulf %167, %164 : vector<1x128xf32>
    %169 = arith.mulf %168, %164 : vector<1x128xf32>
    %170 = arith.mulf %169, %164 : vector<1x128xf32>
    %171 = arith.addf %164, %170 : vector<1x128xf32>
    %cst_93 = arith.constant 0.797884583 : f32
    %172 = vector.broadcast %cst_93 : f32 to vector<1x128xf32>
    %173 = arith.mulf %172, %171 : vector<1x128xf32>
    %174 = math.tanh %173 : vector<1x128xf32>
    %cst_94 = arith.constant 1.000000e+00 : f32
    %175 = vector.broadcast %cst_94 : f32 to vector<1x128xf32>
    %176 = arith.addf %175, %174 : vector<1x128xf32>
    %177 = arith.mulf %166, %176 : vector<1x128xf32>
    %c0_95 = arith.constant 0 : index
    %c0_96 = arith.constant 0 : index
    %c0_97 = arith.constant 0 : index
    %178 = vector.load %arg19[%c0_95, %c0_96, %c0_97] : memref<2x128x32xbf16, #tpu.memory_space<vmem>>, vector<1x128x32xbf16>
    %179 = vector.shape_cast %178 : vector<1x128x32xbf16> to vector<128x32xbf16>
    %180 = arith.truncf %177 : vector<1x128xf32> to vector<1x128xbf16>
    %cst_98 = arith.constant dense<0.000000e+00> : vector<1x32xf32>
    %181 = tpu.matmul %180, %179, %cst_98 {dimension_numbers = #tpu.dot_dimension_numbers<[1], [0], [0], [1], [0, 0, 1, 1], [], []>} : vector<1x128xbf16>, vector<128x32xbf16>, vector<1x32xf32> -> vector<1x32xf32>
    %182 = arith.addf %133, %181 : vector<1x32xf32>
    %c0_99 = arith.constant 0 : index
    %c0_100 = arith.constant 0 : index
    %c0_101 = arith.constant 0 : index
    %183 = vector.load %arg20[%c0_99, %c0_100, %c0_101] : memref<2x1x32xf32, #tpu.memory_space<vmem>>, vector<1x1x32xf32>
    %184 = vector.shape_cast %183 : vector<1x1x32xf32> to vector<1x32xf32>
    %185 = arith.addf %182, %184 : vector<1x32xf32>
    %c1 = arith.constant 1 : index
    %c0_102 = arith.constant 0 : index
    %c0_103 = arith.constant 0 : index
    %186 = vector.load %arg5[%c1, %c0_102, %c0_103] : memref<2x1x32xf32, #tpu.memory_space<vmem>>, vector<1x1x32xf32>
    %187 = vector.shape_cast %186 : vector<1x1x32xf32> to vector<1x32xf32>
    %c1_104 = arith.constant 1 : index
    %c0_105 = arith.constant 0 : index
    %c0_106 = arith.constant 0 : index
    %188 = vector.load %arg6[%c1_104, %c0_105, %c0_106] : memref<2x1x32xf32, #tpu.memory_space<vmem>>, vector<1x1x32xf32>
    %189 = vector.shape_cast %188 : vector<1x1x32xf32> to vector<1x32xf32>
    %cst_107 = arith.constant dense<0.000000e+00> : vector<8xf32>
    %190 = vector.multi_reduction <add>, %1, %cst_107 [1] : vector<8x32xf32> to vector<8xf32>
    %191 = vector.shape_cast %190 : vector<8xf32> to vector<8x1xf32>
    %cst_108 = arith.constant 3.200000e+01 : f32
    %192 = vector.broadcast %cst_108 : f32 to vector<8x1xf32>
    %193 = arith.divf %191, %192 : vector<8x1xf32>
    %194 = vector.broadcast %193 : vector<8x1xf32> to vector<8x32xf32>
    %195 = arith.subf %1, %194 : vector<8x32xf32>
    %196 = arith.mulf %195, %195 : vector<8x32xf32>
    %cst_109 = arith.constant dense<0.000000e+00> : vector<8xf32>
    %197 = vector.multi_reduction <add>, %196, %cst_109 [1] : vector<8x32xf32> to vector<8xf32>
    %198 = vector.shape_cast %197 : vector<8xf32> to vector<8x1xf32>
    %cst_110 = arith.constant 3.200000e+01 : f32
    %199 = vector.broadcast %cst_110 : f32 to vector<8x1xf32>
    %200 = arith.divf %198, %199 : vector<8x1xf32>
    %201 = vector.broadcast %193 : vector<8x1xf32> to vector<8x32xf32>
    %202 = arith.subf %1, %201 : vector<8x32xf32>
    %cst_111 = arith.constant 9.99999997E-7 : f32
    %203 = vector.broadcast %cst_111 : f32 to vector<8x1xf32>
    %204 = arith.addf %200, %203 : vector<8x1xf32>
    %205 = math.rsqrt %204 : vector<8x1xf32>
    %206 = vector.broadcast %205 : vector<8x1xf32> to vector<8x32xf32>
    %207 = arith.mulf %202, %206 : vector<8x32xf32>
    %208 = vector.broadcast %187 : vector<1x32xf32> to vector<8x32xf32>
    %209 = arith.mulf %207, %208 : vector<8x32xf32>
    %210 = vector.broadcast %189 : vector<1x32xf32> to vector<8x32xf32>
    %211 = arith.addf %209, %210 : vector<8x32xf32>
    %cst_112 = arith.constant dense<0.000000e+00> : vector<1xf32>
    %212 = vector.multi_reduction <add>, %185, %cst_112 [1] : vector<1x32xf32> to vector<1xf32>
    %213 = vector.shape_cast %212 : vector<1xf32> to vector<1x1xf32>
    %cst_113 = arith.constant 3.200000e+01 : f32
    %214 = vector.broadcast %cst_113 : f32 to vector<1x1xf32>
    %215 = arith.divf %213, %214 : vector<1x1xf32>
    %216 = vector.broadcast %215 : vector<1x1xf32> to vector<1x32xf32>
    %217 = arith.subf %185, %216 : vector<1x32xf32>
    %218 = arith.mulf %217, %217 : vector<1x32xf32>
    %cst_114 = arith.constant dense<0.000000e+00> : vector<1xf32>
    %219 = vector.multi_reduction <add>, %218, %cst_114 [1] : vector<1x32xf32> to vector<1xf32>
    %220 = vector.shape_cast %219 : vector<1xf32> to vector<1x1xf32>
    %cst_115 = arith.constant 3.200000e+01 : f32
    %221 = vector.broadcast %cst_115 : f32 to vector<1x1xf32>
    %222 = arith.divf %220, %221 : vector<1x1xf32>
    %223 = vector.broadcast %215 : vector<1x1xf32> to vector<1x32xf32>
    %224 = arith.subf %185, %223 : vector<1x32xf32>
    %cst_116 = arith.constant 9.99999997E-7 : f32
    %225 = vector.broadcast %cst_116 : f32 to vector<1x1xf32>
    %226 = arith.addf %222, %225 : vector<1x1xf32>
    %227 = math.rsqrt %226 : vector<1x1xf32>
    %228 = vector.broadcast %227 : vector<1x1xf32> to vector<1x32xf32>
    %229 = arith.mulf %224, %228 : vector<1x32xf32>
    %230 = arith.mulf %229, %187 : vector<1x32xf32>
    %231 = arith.addf %230, %189 : vector<1x32xf32>
    %c1_117 = arith.constant 1 : index
    %c0_118 = arith.constant 0 : index
    %c0_119 = arith.constant 0 : index
    %232 = vector.load %arg7[%c1_117, %c0_118, %c0_119] : memref<2x32x32xbf16, #tpu.memory_space<vmem>>, vector<1x32x32xbf16>
    %233 = vector.shape_cast %232 : vector<1x32x32xbf16> to vector<32x32xbf16>
    %234 = arith.truncf %231 : vector<1x32xf32> to vector<1x32xbf16>
    %cst_120 = arith.constant dense<0.000000e+00> : vector<1x32xf32>
    %235 = tpu.matmul %234, %233, %cst_120 {dimension_numbers = #tpu.dot_dimension_numbers<[1], [0], [0], [1], [0, 0, 1, 1], [], []>} : vector<1x32xbf16>, vector<32x32xbf16>, vector<1x32xf32> -> vector<1x32xf32>
    %c1_121 = arith.constant 1 : index
    %c0_122 = arith.constant 0 : index
    %c0_123 = arith.constant 0 : index
    %236 = vector.load %arg8[%c1_121, %c0_122, %c0_123] : memref<2x1x32xf32, #tpu.memory_space<vmem>>, vector<1x1x32xf32>
    %237 = vector.shape_cast %236 : vector<1x1x32xf32> to vector<1x32xf32>
    %238 = arith.addf %235, %237 : vector<1x32xf32>
    %cst_124 = arith.constant 0.353553385 : f32
    %239 = vector.broadcast %cst_124 : f32 to vector<1x32xf32>
    %240 = arith.mulf %238, %239 : vector<1x32xf32>
    %c1_125 = arith.constant 1 : index
    %c0_126 = arith.constant 0 : index
    %c0_127 = arith.constant 0 : index
    %241 = vector.load %arg9[%c1_125, %c0_126, %c0_127] : memref<2x32x32xbf16, #tpu.memory_space<vmem>>, vector<1x32x32xbf16>
    %242 = vector.shape_cast %241 : vector<1x32x32xbf16> to vector<32x32xbf16>
    %243 = arith.truncf %231 : vector<1x32xf32> to vector<1x32xbf16>
    %cst_128 = arith.constant dense<0.000000e+00> : vector<1x32xf32>
    %244 = tpu.matmul %243, %242, %cst_128 {dimension_numbers = #tpu.dot_dimension_numbers<[1], [0], [0], [1], [0, 0, 1, 1], [], []>} : vector<1x32xbf16>, vector<32x32xbf16>, vector<1x32xf32> -> vector<1x32xf32>
    %c1_129 = arith.constant 1 : index
    %c0_130 = arith.constant 0 : index
    %c0_131 = arith.constant 0 : index
    %245 = vector.load %arg10[%c1_129, %c0_130, %c0_131] : memref<2x1x32xf32, #tpu.memory_space<vmem>>, vector<1x1x32xf32>
    %246 = vector.shape_cast %245 : vector<1x1x32xf32> to vector<1x32xf32>
    %247 = arith.addf %244, %246 : vector<1x32xf32>
    %c1_132 = arith.constant 1 : index
    %c0_133 = arith.constant 0 : index
    %c0_134 = arith.constant 0 : index
    %248 = vector.load %arg11[%c1_132, %c0_133, %c0_134] : memref<2x32x32xbf16, #tpu.memory_space<vmem>>, vector<1x32x32xbf16>
    %249 = vector.shape_cast %248 : vector<1x32x32xbf16> to vector<32x32xbf16>
    %250 = arith.truncf %231 : vector<1x32xf32> to vector<1x32xbf16>
    %cst_135 = arith.constant dense<0.000000e+00> : vector<1x32xf32>
    %251 = tpu.matmul %250, %249, %cst_135 {dimension_numbers = #tpu.dot_dimension_numbers<[1], [0], [0], [1], [0, 0, 1, 1], [], []>} : vector<1x32xbf16>, vector<32x32xbf16>, vector<1x32xf32> -> vector<1x32xf32>
    %c1_136 = arith.constant 1 : index
    %c0_137 = arith.constant 0 : index
    %c0_138 = arith.constant 0 : index
    %252 = vector.load %arg12[%c1_136, %c0_137, %c0_138] : memref<2x1x32xf32, #tpu.memory_space<vmem>>, vector<1x1x32xf32>
    %253 = vector.shape_cast %252 : vector<1x1x32xf32> to vector<1x32xf32>
    %254 = arith.addf %251, %253 : vector<1x32xf32>
    %c1_139 = arith.constant 1 : index
    %c0_140 = arith.constant 0 : index
    %c0_141 = arith.constant 0 : index
    %255 = vector.load %arg9[%c1_139, %c0_140, %c0_141] : memref<2x32x32xbf16, #tpu.memory_space<vmem>>, vector<1x32x32xbf16>
    %256 = vector.shape_cast %255 : vector<1x32x32xbf16> to vector<32x32xbf16>
    %257 = arith.truncf %211 : vector<8x32xf32> to vector<8x32xbf16>
    %cst_142 = arith.constant dense<0.000000e+00> : vector<8x32xf32>
    %258 = tpu.matmul %257, %256, %cst_142 {dimension_numbers = #tpu.dot_dimension_numbers<[1], [0], [0], [1], [0, 0, 1, 1], [], []>} : vector<8x32xbf16>, vector<32x32xbf16>, vector<8x32xf32> -> vector<8x32xf32>
    %c1_143 = arith.constant 1 : index
    %c0_144 = arith.constant 0 : index
    %c0_145 = arith.constant 0 : index
    %259 = vector.load %arg10[%c1_143, %c0_144, %c0_145] : memref<2x1x32xf32, #tpu.memory_space<vmem>>, vector<1x1x32xf32>
    %260 = vector.shape_cast %259 : vector<1x1x32xf32> to vector<1x32xf32>
    %261 = vector.broadcast %260 : vector<1x32xf32> to vector<8x32xf32>
    %262 = arith.addf %258, %261 : vector<8x32xf32>
    %c1_146 = arith.constant 1 : index
    %c0_147 = arith.constant 0 : index
    %c0_148 = arith.constant 0 : index
    %263 = vector.load %arg11[%c1_146, %c0_147, %c0_148] : memref<2x32x32xbf16, #tpu.memory_space<vmem>>, vector<1x32x32xbf16>
    %264 = vector.shape_cast %263 : vector<1x32x32xbf16> to vector<32x32xbf16>
    %265 = arith.truncf %211 : vector<8x32xf32> to vector<8x32xbf16>
    %cst_149 = arith.constant dense<0.000000e+00> : vector<8x32xf32>
    %266 = tpu.matmul %265, %264, %cst_149 {dimension_numbers = #tpu.dot_dimension_numbers<[1], [0], [0], [1], [0, 0, 1, 1], [], []>} : vector<8x32xbf16>, vector<32x32xbf16>, vector<8x32xf32> -> vector<8x32xf32>
    %c1_150 = arith.constant 1 : index
    %c0_151 = arith.constant 0 : index
    %c0_152 = arith.constant 0 : index
    %267 = vector.load %arg12[%c1_150, %c0_151, %c0_152] : memref<2x1x32xf32, #tpu.memory_space<vmem>>, vector<1x1x32xf32>
    %268 = vector.shape_cast %267 : vector<1x1x32xf32> to vector<1x32xf32>
    %269 = vector.broadcast %268 : vector<1x32xf32> to vector<8x32xf32>
    %270 = arith.addf %266, %269 : vector<8x32xf32>
    %271 = vector.shape_cast %240 : vector<1x32xf32> to vector<1x1x32xf32>
    %272 = vector.shape_cast %262 : vector<8x32xf32> to vector<1x8x32xf32>
    %273 = vector.broadcast %271 : vector<1x1x32xf32> to vector<1x8x32xf32>
    %274 = arith.mulf %273, %272 : vector<1x8x32xf32>
    %275 = vector.shape_cast %274 : vector<1x8x32xf32> to vector<8x32xf32>
    %276 = arith.truncf %275 : vector<8x32xf32> to vector<8x32xbf16>
    %cst_153 = arith.constant dense<0.000000e+00> : vector<8x4xf32>
    %277 = tpu.matmul %276, %3, %cst_153 {dimension_numbers = #tpu.dot_dimension_numbers<[1], [0], [0], [1], [0, 0, 1, 1], [], []>} : vector<8x32xbf16>, vector<32x4xbf16>, vector<8x4xf32> -> vector<8x4xf32>
    %278 = vector.shape_cast %277 : vector<8x4xf32> to vector<1x8x4xf32>
    %279 = arith.mulf %240, %247 : vector<1x32xf32>
    %280 = arith.truncf %279 : vector<1x32xf32> to vector<1x32xbf16>
    %cst_154 = arith.constant dense<0.000000e+00> : vector<1x4xf32>
    %281 = tpu.matmul %280, %3, %cst_154 {dimension_numbers = #tpu.dot_dimension_numbers<[1], [0], [0], [1], [0, 0, 1, 1], [], []>} : vector<1x32xbf16>, vector<32x4xbf16>, vector<1x4xf32> -> vector<1x4xf32>
    %cst_155 = arith.constant dense<0xFF800000> : vector<1x4xf32>
    %282 = vector.multi_reduction <maximumf>, %278, %cst_155 [1] : vector<1x8x4xf32> to vector<1x4xf32>
    %283 = arith.maximumf %282, %281 : vector<1x4xf32>
    %284 = vector.shape_cast %283 : vector<1x4xf32> to vector<1x1x4xf32>
    %285 = vector.broadcast %284 : vector<1x1x4xf32> to vector<1x8x4xf32>
    %286 = arith.subf %278, %285 : vector<1x8x4xf32>
    %287 = math.exp %286 : vector<1x8x4xf32>
    %288 = arith.subf %281, %283 : vector<1x4xf32>
    %289 = math.exp %288 : vector<1x4xf32>
    %cst_156 = arith.constant dense<0.000000e+00> : vector<1x4xf32>
    %290 = vector.multi_reduction <add>, %287, %cst_156 [1] : vector<1x8x4xf32> to vector<1x4xf32>
    %291 = arith.addf %290, %289 : vector<1x4xf32>
    %292 = tpu.reciprocal %291 {approx = true} : vector<1x4xf32> -> vector<1x4xf32>
    %293 = vector.shape_cast %292 : vector<1x4xf32> to vector<1x1x4xf32>
    %294 = vector.broadcast %293 : vector<1x1x4xf32> to vector<1x8x4xf32>
    %295 = arith.mulf %287, %294 : vector<1x8x4xf32>
    %296 = arith.mulf %289, %292 : vector<1x4xf32>
    %297 = vector.shape_cast %295 : vector<1x8x4xf32> to vector<8x4xf32>
    %298 = arith.truncf %297 : vector<8x4xf32> to vector<8x4xbf16>
    %cst_157 = arith.constant dense<0.000000e+00> : vector<8x32xf32>
    %299 = tpu.matmul %298, %4, %cst_157 {dimension_numbers = #tpu.dot_dimension_numbers<[1], [0], [0], [1], [0, 0, 1, 1], [], []>} : vector<8x4xbf16>, vector<4x32xbf16>, vector<8x32xf32> -> vector<8x32xf32>
    %300 = arith.truncf %296 : vector<1x4xf32> to vector<1x4xbf16>
    %cst_158 = arith.constant dense<0.000000e+00> : vector<1x32xf32>
    %301 = tpu.matmul %300, %4, %cst_158 {dimension_numbers = #tpu.dot_dimension_numbers<[1], [0], [0], [1], [0, 0, 1, 1], [], []>} : vector<1x4xbf16>, vector<4x32xbf16>, vector<1x32xf32> -> vector<1x32xf32>
    %302 = arith.mulf %299, %270 : vector<8x32xf32>
    %303 = vector.shape_cast %302 : vector<8x32xf32> to vector<1x8x32xf32>
    %cst_159 = arith.constant dense<0.000000e+00> : vector<1x32xf32>
    %304 = vector.multi_reduction <add>, %303, %cst_159 [1] : vector<1x8x32xf32> to vector<1x32xf32>
    %305 = arith.mulf %301, %254 : vector<1x32xf32>
    %306 = arith.addf %304, %305 : vector<1x32xf32>
    %c1_160 = arith.constant 1 : index
    %c0_161 = arith.constant 0 : index
    %c0_162 = arith.constant 0 : index
    %307 = vector.load %arg13[%c1_160, %c0_161, %c0_162] : memref<2x32x32xbf16, #tpu.memory_space<vmem>>, vector<1x32x32xbf16>
    %308 = vector.shape_cast %307 : vector<1x32x32xbf16> to vector<32x32xbf16>
    %309 = arith.truncf %306 : vector<1x32xf32> to vector<1x32xbf16>
    %cst_163 = arith.constant dense<0.000000e+00> : vector<1x32xf32>
    %310 = tpu.matmul %309, %308, %cst_163 {dimension_numbers = #tpu.dot_dimension_numbers<[1], [0], [0], [1], [0, 0, 1, 1], [], []>} : vector<1x32xbf16>, vector<32x32xbf16>, vector<1x32xf32> -> vector<1x32xf32>
    %311 = arith.addf %185, %310 : vector<1x32xf32>
    %c1_164 = arith.constant 1 : index
    %c0_165 = arith.constant 0 : index
    %c0_166 = arith.constant 0 : index
    %312 = vector.load %arg14[%c1_164, %c0_165, %c0_166] : memref<2x1x32xf32, #tpu.memory_space<vmem>>, vector<1x1x32xf32>
    %313 = vector.shape_cast %312 : vector<1x1x32xf32> to vector<1x32xf32>
    %314 = arith.addf %311, %313 : vector<1x32xf32>
    %c1_167 = arith.constant 1 : index
    %c0_168 = arith.constant 0 : index
    %c0_169 = arith.constant 0 : index
    %315 = vector.load %arg15[%c1_167, %c0_168, %c0_169] : memref<2x1x32xf32, #tpu.memory_space<vmem>>, vector<1x1x32xf32>
    %316 = vector.shape_cast %315 : vector<1x1x32xf32> to vector<1x32xf32>
    %c1_170 = arith.constant 1 : index
    %c0_171 = arith.constant 0 : index
    %c0_172 = arith.constant 0 : index
    %317 = vector.load %arg16[%c1_170, %c0_171, %c0_172] : memref<2x1x32xf32, #tpu.memory_space<vmem>>, vector<1x1x32xf32>
    %318 = vector.shape_cast %317 : vector<1x1x32xf32> to vector<1x32xf32>
    %cst_173 = arith.constant dense<0.000000e+00> : vector<1xf32>
    %319 = vector.multi_reduction <add>, %314, %cst_173 [1] : vector<1x32xf32> to vector<1xf32>
    %320 = vector.shape_cast %319 : vector<1xf32> to vector<1x1xf32>
    %cst_174 = arith.constant 3.200000e+01 : f32
    %321 = vector.broadcast %cst_174 : f32 to vector<1x1xf32>
    %322 = arith.divf %320, %321 : vector<1x1xf32>
    %323 = vector.broadcast %322 : vector<1x1xf32> to vector<1x32xf32>
    %324 = arith.subf %314, %323 : vector<1x32xf32>
    %325 = arith.mulf %324, %324 : vector<1x32xf32>
    %cst_175 = arith.constant dense<0.000000e+00> : vector<1xf32>
    %326 = vector.multi_reduction <add>, %325, %cst_175 [1] : vector<1x32xf32> to vector<1xf32>
    %327 = vector.shape_cast %326 : vector<1xf32> to vector<1x1xf32>
    %cst_176 = arith.constant 3.200000e+01 : f32
    %328 = vector.broadcast %cst_176 : f32 to vector<1x1xf32>
    %329 = arith.divf %327, %328 : vector<1x1xf32>
    %330 = vector.broadcast %322 : vector<1x1xf32> to vector<1x32xf32>
    %331 = arith.subf %314, %330 : vector<1x32xf32>
    %cst_177 = arith.constant 9.99999997E-7 : f32
    %332 = vector.broadcast %cst_177 : f32 to vector<1x1xf32>
    %333 = arith.addf %329, %332 : vector<1x1xf32>
    %334 = math.rsqrt %333 : vector<1x1xf32>
    %335 = vector.broadcast %334 : vector<1x1xf32> to vector<1x32xf32>
    %336 = arith.mulf %331, %335 : vector<1x32xf32>
    %337 = arith.mulf %336, %316 : vector<1x32xf32>
    %338 = arith.addf %337, %318 : vector<1x32xf32>
    %c1_178 = arith.constant 1 : index
    %c0_179 = arith.constant 0 : index
    %c0_180 = arith.constant 0 : index
    %339 = vector.load %arg17[%c1_178, %c0_179, %c0_180] : memref<2x32x128xbf16, #tpu.memory_space<vmem>>, vector<1x32x128xbf16>
    %340 = vector.shape_cast %339 : vector<1x32x128xbf16> to vector<32x128xbf16>
    %341 = arith.truncf %338 : vector<1x32xf32> to vector<1x32xbf16>
    %cst_181 = arith.constant dense<0.000000e+00> : vector<1x128xf32>
    %342 = tpu.matmul %341, %340, %cst_181 {dimension_numbers = #tpu.dot_dimension_numbers<[1], [0], [0], [1], [0, 0, 1, 1], [], []>} : vector<1x32xbf16>, vector<32x128xbf16>, vector<1x128xf32> -> vector<1x128xf32>
    %c1_182 = arith.constant 1 : index
    %c0_183 = arith.constant 0 : index
    %c0_184 = arith.constant 0 : index
    %343 = vector.load %arg18[%c1_182, %c0_183, %c0_184] : memref<2x1x128xf32, #tpu.memory_space<vmem>>, vector<1x1x128xf32>
    %344 = vector.shape_cast %343 : vector<1x1x128xf32> to vector<1x128xf32>
    %345 = arith.addf %342, %344 : vector<1x128xf32>
    %cst_185 = arith.constant 5.000000e-01 : f32
    %346 = vector.broadcast %cst_185 : f32 to vector<1x128xf32>
    %347 = arith.mulf %346, %345 : vector<1x128xf32>
    %cst_186 = arith.constant 4.471500e-02 : f32
    %348 = vector.broadcast %cst_186 : f32 to vector<1x128xf32>
    %349 = arith.mulf %348, %345 : vector<1x128xf32>
    %350 = arith.mulf %349, %345 : vector<1x128xf32>
    %351 = arith.mulf %350, %345 : vector<1x128xf32>
    %352 = arith.addf %345, %351 : vector<1x128xf32>
    %cst_187 = arith.constant 0.797884583 : f32
    %353 = vector.broadcast %cst_187 : f32 to vector<1x128xf32>
    %354 = arith.mulf %353, %352 : vector<1x128xf32>
    %355 = math.tanh %354 : vector<1x128xf32>
    %cst_188 = arith.constant 1.000000e+00 : f32
    %356 = vector.broadcast %cst_188 : f32 to vector<1x128xf32>
    %357 = arith.addf %356, %355 : vector<1x128xf32>
    %358 = arith.mulf %347, %357 : vector<1x128xf32>
    %c1_189 = arith.constant 1 : index
    %c0_190 = arith.constant 0 : index
    %c0_191 = arith.constant 0 : index
    %359 = vector.load %arg19[%c1_189, %c0_190, %c0_191] : memref<2x128x32xbf16, #tpu.memory_space<vmem>>, vector<1x128x32xbf16>
    %360 = vector.shape_cast %359 : vector<1x128x32xbf16> to vector<128x32xbf16>
    %361 = arith.truncf %358 : vector<1x128xf32> to vector<1x128xbf16>
    %cst_192 = arith.constant dense<0.000000e+00> : vector<1x32xf32>
    %362 = tpu.matmul %361, %360, %cst_192 {dimension_numbers = #tpu.dot_dimension_numbers<[1], [0], [0], [1], [0, 0, 1, 1], [], []>} : vector<1x128xbf16>, vector<128x32xbf16>, vector<1x32xf32> -> vector<1x32xf32>
    %363 = arith.addf %314, %362 : vector<1x32xf32>
    %c1_193 = arith.constant 1 : index
    %c0_194 = arith.constant 0 : index
    %c0_195 = arith.constant 0 : index
    %364 = vector.load %arg20[%c1_193, %c0_194, %c0_195] : memref<2x1x32xf32, #tpu.memory_space<vmem>>, vector<1x1x32xf32>
    %365 = vector.shape_cast %364 : vector<1x1x32xf32> to vector<1x32xf32>
    %366 = arith.addf %363, %365 : vector<1x32xf32>
    %c0_196 = arith.constant 0 : index
    %c0_197 = arith.constant 0 : index
    %367 = vector.load %arg21[%c0_196, %c0_197] : memref<1x32xf32, #tpu.memory_space<vmem>>, vector<1x32xf32>
    %c0_198 = arith.constant 0 : index
    %c0_199 = arith.constant 0 : index
    %368 = vector.load %arg22[%c0_198, %c0_199] : memref<1x32xf32, #tpu.memory_space<vmem>>, vector<1x32xf32>
    %cst_200 = arith.constant dense<0.000000e+00> : vector<1xf32>
    %369 = vector.multi_reduction <add>, %366, %cst_200 [1] : vector<1x32xf32> to vector<1xf32>
    %370 = vector.shape_cast %369 : vector<1xf32> to vector<1x1xf32>
    %cst_201 = arith.constant 3.200000e+01 : f32
    %371 = vector.broadcast %cst_201 : f32 to vector<1x1xf32>
    %372 = arith.divf %370, %371 : vector<1x1xf32>
    %373 = vector.broadcast %372 : vector<1x1xf32> to vector<1x32xf32>
    %374 = arith.subf %366, %373 : vector<1x32xf32>
    %375 = arith.mulf %374, %374 : vector<1x32xf32>
    %cst_202 = arith.constant dense<0.000000e+00> : vector<1xf32>
    %376 = vector.multi_reduction <add>, %375, %cst_202 [1] : vector<1x32xf32> to vector<1xf32>
    %377 = vector.shape_cast %376 : vector<1xf32> to vector<1x1xf32>
    %cst_203 = arith.constant 3.200000e+01 : f32
    %378 = vector.broadcast %cst_203 : f32 to vector<1x1xf32>
    %379 = arith.divf %377, %378 : vector<1x1xf32>
    %380 = vector.broadcast %372 : vector<1x1xf32> to vector<1x32xf32>
    %381 = arith.subf %366, %380 : vector<1x32xf32>
    %cst_204 = arith.constant 9.99999997E-7 : f32
    %382 = vector.broadcast %cst_204 : f32 to vector<1x1xf32>
    %383 = arith.addf %379, %382 : vector<1x1xf32>
    %384 = math.rsqrt %383 : vector<1x1xf32>
    %385 = vector.broadcast %384 : vector<1x1xf32> to vector<1x32xf32>
    %386 = arith.mulf %381, %385 : vector<1x32xf32>
    %387 = arith.mulf %386, %367 : vector<1x32xf32>
    %388 = arith.addf %387, %368 : vector<1x32xf32>
    %cst_205 = arith.constant dense<0.000000e+00> : vector<8xf32>
    %389 = vector.multi_reduction <add>, %1, %cst_205 [1] : vector<8x32xf32> to vector<8xf32>
    %390 = vector.shape_cast %389 : vector<8xf32> to vector<8x1xf32>
    %cst_206 = arith.constant 3.200000e+01 : f32
    %391 = vector.broadcast %cst_206 : f32 to vector<8x1xf32>
    %392 = arith.divf %390, %391 : vector<8x1xf32>
    %393 = vector.broadcast %392 : vector<8x1xf32> to vector<8x32xf32>
    %394 = arith.subf %1, %393 : vector<8x32xf32>
    %395 = arith.mulf %394, %394 : vector<8x32xf32>
    %cst_207 = arith.constant dense<0.000000e+00> : vector<8xf32>
    %396 = vector.multi_reduction <add>, %395, %cst_207 [1] : vector<8x32xf32> to vector<8xf32>
    %397 = vector.shape_cast %396 : vector<8xf32> to vector<8x1xf32>
    %cst_208 = arith.constant 3.200000e+01 : f32
    %398 = vector.broadcast %cst_208 : f32 to vector<8x1xf32>
    %399 = arith.divf %397, %398 : vector<8x1xf32>
    %400 = vector.broadcast %392 : vector<8x1xf32> to vector<8x32xf32>
    %401 = arith.subf %1, %400 : vector<8x32xf32>
    %cst_209 = arith.constant 9.99999997E-7 : f32
    %402 = vector.broadcast %cst_209 : f32 to vector<8x1xf32>
    %403 = arith.addf %399, %402 : vector<8x1xf32>
    %404 = math.rsqrt %403 : vector<8x1xf32>
    %405 = vector.broadcast %404 : vector<8x1xf32> to vector<8x32xf32>
    %406 = arith.mulf %401, %405 : vector<8x32xf32>
    %407 = vector.broadcast %367 : vector<1x32xf32> to vector<8x32xf32>
    %408 = arith.mulf %406, %407 : vector<8x32xf32>
    %409 = vector.broadcast %368 : vector<1x32xf32> to vector<8x32xf32>
    %410 = arith.addf %408, %409 : vector<8x32xf32>
    %411 = vector.shape_cast %410 : vector<8x32xf32> to vector<1x8x32xf32>
    %412 = vector.shape_cast %388 : vector<1x32xf32> to vector<1x1x32xf32>
    %c0_210 = arith.constant 0 : index
    %c0_211 = arith.constant 0 : index
    %c0_212 = arith.constant 0 : index
    %413 = vector.load %arg23[%c0_210, %c0_211, %c0_212] : memref<1x9x32xf32, #tpu.memory_space<vmem>>, vector<1x1x32xf32>
    tpu.vector_store %arg23[%c0_210, %c0_211, %c0_212], %412 {strides = array<i32>} : memref<1x9x32xf32, #tpu.memory_space<vmem>>, vector<1x1x32xf32>,
    %c0_213 = arith.constant 0 : index
    %c1_214 = arith.constant 1 : index
    %c0_215 = arith.constant 0 : index
    %414 = vector.load %arg23[%c0_213, %c1_214, %c0_215] : memref<1x9x32xf32, #tpu.memory_space<vmem>>, vector<1x8x32xf32>
    tpu.vector_store %arg23[%c0_213, %c1_214, %c0_215], %411 {strides = array<i32>} : memref<1x9x32xf32, #tpu.memory_space<vmem>>, vector<1x8x32xf32>,
    return
  }
  func.func @transform_0(%arg0: i32) -> (i32, i32, i32) {
    %c0_i32 = arith.constant 0 : i32
    %c0_i32_0 = arith.constant 0 : i32
    %c0_i32_1 = arith.constant 0 : i32
    return %arg0, %c0_i32, %c0_i32_0 : i32, i32, i32
  }
  func.func @transform_1(%arg0: i32) -> (i32, i32) {
    %c0_i32 = arith.constant 0 : i32
    %c0_i32_0 = arith.constant 0 : i32
    %c0_i32_1 = arith.constant 0 : i32
    return %c0_i32, %c0_i32_0 : i32, i32
  }
  func.func @transform_2(%arg0: i32) -> (i32, i32) {
    %c0_i32 = arith.constant 0 : i32
    %c0_i32_0 = arith.constant 0 : i32
    %c0_i32_1 = arith.constant 0 : i32
    return %c0_i32, %c0_i32_0 : i32, i32
  }
  func.func @transform_3(%arg0: i32) -> (i32, i32) {
    %c0_i32 = arith.constant 0 : i32
    %c0_i32_0 = arith.constant 0 : i32
    %c0_i32_1 = arith.constant 0 : i32
    return %c0_i32, %c0_i32_0 : i32, i32
  }
  func.func @transform_4(%arg0: i32) -> (i32, i32, i32) {
    %c0_i32 = arith.constant 0 : i32
    %c0_i32_0 = arith.constant 0 : i32
    %c0_i32_1 = arith.constant 0 : i32
    %c0_i32_2 = arith.constant 0 : i32
    return %c0_i32, %c0_i32_0, %c0_i32_1 : i32, i32, i32
  }
  func.func @transform_5(%arg0: i32) -> (i32, i32, i32) {
    %c0_i32 = arith.constant 0 : i32
    %c0_i32_0 = arith.constant 0 : i32
    %c0_i32_1 = arith.constant 0 : i32
    %c0_i32_2 = arith.constant 0 : i32
    return %c0_i32, %c0_i32_0, %c0_i32_1 : i32, i32, i32
  }
  func.func @transform_6(%arg0: i32) -> (i32, i32, i32) {
    %c0_i32 = arith.constant 0 : i32
    %c0_i32_0 = arith.constant 0 : i32
    %c0_i32_1 = arith.constant 0 : i32
    %c0_i32_2 = arith.constant 0 : i32
    return %c0_i32, %c0_i32_0, %c0_i32_1 : i32, i32, i32
  }
  func.func @transform_7(%arg0: i32) -> (i32, i32, i32) {
    %c0_i32 = arith.constant 0 : i32
    %c0_i32_0 = arith.constant 0 : i32
    %c0_i32_1 = arith.constant 0 : i32
    %c0_i32_2 = arith.constant 0 : i32
    return %c0_i32, %c0_i32_0, %c0_i32_1 : i32, i32, i32
  }
  func.func @transform_8(%arg0: i32) -> (i32, i32, i32) {
    %c0_i32 = arith.constant 0 : i32
    %c0_i32_0 = arith.constant 0 : i32
    %c0_i32_1 = arith.constant 0 : i32
    %c0_i32_2 = arith.constant 0 : i32
    return %c0_i32, %c0_i32_0, %c0_i32_1 : i32, i32, i32
  }
  func.func @transform_9(%arg0: i32) -> (i32, i32, i32) {
    %c0_i32 = arith.constant 0 : i32
    %c0_i32_0 = arith.constant 0 : i32
    %c0_i32_1 = arith.constant 0 : i32
    %c0_i32_2 = arith.constant 0 : i32
    return %c0_i32, %c0_i32_0, %c0_i32_1 : i32, i32, i32
  }
  func.func @transform_10(%arg0: i32) -> (i32, i32, i32) {
    %c0_i32 = arith.constant 0 : i32
    %c0_i32_0 = arith.constant 0 : i32
    %c0_i32_1 = arith.constant 0 : i32
    %c0_i32_2 = arith.constant 0 : i32
    return %c0_i32, %c0_i32_0, %c0_i32_1 : i32, i32, i32
  }
  func.func @transform_11(%arg0: i32) -> (i32, i32, i32) {
    %c0_i32 = arith.constant 0 : i32
    %c0_i32_0 = arith.constant 0 : i32
    %c0_i32_1 = arith.constant 0 : i32
    %c0_i32_2 = arith.constant 0 : i32
    return %c0_i32, %c0_i32_0, %c0_i32_1 : i32, i32, i32
  }
  func.func @transform_12(%arg0: i32) -> (i32, i32, i32) {
    %c0_i32 = arith.constant 0 : i32
    %c0_i32_0 = arith.constant 0 : i32
    %c0_i32_1 = arith.constant 0 : i32
    %c0_i32_2 = arith.constant 0 : i32
    return %c0_i32, %c0_i32_0, %c0_i32_1 : i32, i32, i32
  }
  func.func @transform_13(%arg0: i32) -> (i32, i32, i32) {
    %c0_i32 = arith.constant 0 : i32
    %c0_i32_0 = arith.constant 0 : i32
    %c0_i32_1 = arith.constant 0 : i32
    %c0_i32_2 = arith.constant 0 : i32
    return %c0_i32, %c0_i32_0, %c0_i32_1 : i32, i32, i32
  }
  func.func @transform_14(%arg0: i32) -> (i32, i32, i32) {
    %c0_i32 = arith.constant 0 : i32
    %c0_i32_0 = arith.constant 0 : i32
    %c0_i32_1 = arith.constant 0 : i32
    %c0_i32_2 = arith.constant 0 : i32
    return %c0_i32, %c0_i32_0, %c0_i32_1 : i32, i32, i32
  }
  func.func @transform_15(%arg0: i32) -> (i32, i32, i32) {
    %c0_i32 = arith.constant 0 : i32
    %c0_i32_0 = arith.constant 0 : i32
    %c0_i32_1 = arith.constant 0 : i32
    %c0_i32_2 = arith.constant 0 : i32
    return %c0_i32, %c0_i32_0, %c0_i32_1 : i32, i32, i32
  }
  func.func @transform_16(%arg0: i32) -> (i32, i32, i32) {
    %c0_i32 = arith.constant 0 : i32
    %c0_i32_0 = arith.constant 0 : i32
    %c0_i32_1 = arith.constant 0 : i32
    %c0_i32_2 = arith.constant 0 : i32
    return %c0_i32, %c0_i32_0, %c0_i32_1 : i32, i32, i32
  }
  func.func @transform_17(%arg0: i32) -> (i32, i32, i32) {
    %c0_i32 = arith.constant 0 : i32
    %c0_i32_0 = arith.constant 0 : i32
    %c0_i32_1 = arith.constant 0 : i32
    %c0_i32_2 = arith.constant 0 : i32
    return %c0_i32, %c0_i32_0, %c0_i32_1 : i32, i32, i32
  }
  func.func @transform_18(%arg0: i32) -> (i32, i32, i32) {
    %c0_i32 = arith.constant 0 : i32
    %c0_i32_0 = arith.constant 0 : i32
    %c0_i32_1 = arith.constant 0 : i32
    %c0_i32_2 = arith.constant 0 : i32
    return %c0_i32, %c0_i32_0, %c0_i32_1 : i32, i32, i32
  }
  func.func @transform_19(%arg0: i32) -> (i32, i32, i32) {
    %c0_i32 = arith.constant 0 : i32
    %c0_i32_0 = arith.constant 0 : i32
    %c0_i32_1 = arith.constant 0 : i32
    %c0_i32_2 = arith.constant 0 : i32
    return %c0_i32, %c0_i32_0, %c0_i32_1 : i32, i32, i32
  }
  func.func @transform_20(%arg0: i32) -> (i32, i32) {
    %c0_i32 = arith.constant 0 : i32
    %c0_i32_0 = arith.constant 0 : i32
    %c0_i32_1 = arith.constant 0 : i32
    return %c0_i32, %c0_i32_0 : i32, i32
  }
  func.func @transform_21(%arg0: i32) -> (i32, i32) {
    %c0_i32 = arith.constant 0 : i32
    %c0_i32_0 = arith.constant 0 : i32
    %c0_i32_1 = arith.constant 0 : i32
    return %c0_i32, %c0_i32_0 : i32, i32
  }
  func.func @transform_22(%arg0: i32) -> (i32, i32, i32) {
    %c0_i32 = arith.constant 0 : i32
    %c0_i32_0 = arith.constant 0 : i32
    %c0_i32_1 = arith.constant 0 : i32
    return %arg0, %c0_i32, %c0_i32_0 : i32, i32, i32
  }
}

</mosaic_0001>

<llo_original>
// kernel: selfpatch_head_forward.1
$region0: #{selfpatch_head_forward.1}
  #allocation0 [shape = 'u32[]', space=smem, size = 0x4, offset = 0x4, fixed_abs, tag = 'smem constant byte address 0x4 - core index']
  #allocation1 [shape = 'u32[144,128]{1,0:T(1,128)}', space=vmem, size = 0x12000, scoped, tag = 'internal scratch']
  %s0 = inlined_call_operand.vmem [shape: f32[2,8,32], index: 0, kind: input, shape index: {}]
  %s1 = inlined_call_operand.vmem [shape: f32[1,32], index: 1, kind: input, shape index: {}]
  %s2 = inlined_call_operand.vmem [shape: bf16[32,4], index: 2, kind: input, shape index: {}]
  %s3 = inlined_call_operand.hbm [shape: bf16[4,32], index: 3, kind: input, shape index: {}]
  %s4 = inlined_call_operand.hbm [shape: f32[2,1,32], index: 4, kind: input, shape index: {}]
  %s5 = inlined_call_operand.hbm [shape: f32[2,1,32], index: 5, kind: input, shape index: {}]
  %s6 = inlined_call_operand.vmem [shape: bf16[2,32,32], index: 6, kind: input, shape index: {}]
  %s7 = inlined_call_operand.hbm [shape: f32[2,1,32], index: 7, kind: input, shape index: {}]
  %s8 = inlined_call_operand.vmem [shape: bf16[2,32,32], index: 8, kind: input, shape index: {}]
  %s9 = inlined_call_operand.hbm [shape: f32[2,1,32], index: 9, kind: input, shape index: {}]
  %s10 = inlined_call_operand.vmem [shape: bf16[2,32,32], index: 10, kind: input, shape index: {}]
  %s11 = inlined_call_operand.hbm [shape: f32[2,1,32], index: 11, kind: input, shape index: {}]
  %s12 = inlined_call_operand.vmem [shape: bf16[2,32,32], index: 12, kind: input, shape index: {}]
  %s13 = inlined_call_operand.hbm [shape: f32[2,1,32], index: 13, kind: input, shape index: {}]
  %s14 = inlined_call_operand.hbm [shape: f32[2,1,32], index: 14, kind: input, shape index: {}]
  %s15 = inlined_call_operand.hbm [shape: f32[2,1,32], index: 15, kind: input, shape index: {}]
  %s16 = inlined_call_operand.vmem [shape: bf16[2,32,128], index: 16, kind: input, shape index: {}]
  %s17 = inlined_call_operand.hbm [shape: f32[2,1,128], index: 17, kind: input, shape index: {}]
  %s18 = inlined_call_operand.vmem [shape: bf16[2,128,32], index: 18, kind: input, shape index: {}]
  %s19 = inlined_call_operand.hbm [shape: f32[2,1,32], index: 19, kind: input, shape index: {}]
  %s20 = inlined_call_operand.hbm [shape: f32[1,32], index: 20, kind: input, shape index: {}]
  %s21 = inlined_call_operand.hbm [shape: f32[1,32], index: 21, kind: input, shape index: {}]
  %s22 = inlined_call_operand.vmem [shape: f32[2,9,32], index: 22, kind: output, shape index: {}]
  %s23 = sld [smem:[#allocation0]]
  $region173: #{selfpatch_head_forward.1} parent=0
    _
  %s25 = ssub.s32 1, %s23
  %s26 = scalar_select 0, %s25, %s23
  $region1: #{selfpatch_head_forward.1} parent=0
    #allocation2 [shape = 'u8[1024]{0}', space=vmem, size = 0x400, scoped, tag = 'input window, operand 3, single buffered']
    #allocation3 [shape = 's32[2]{0}', space=sflag, size = 0x8, scoped, tag = 'scoped memory for selfpatch_head_forward.1']
    #allocation4 [shape = 'u8[1024]{0}', space=vmem, size = 0x400, scoped, tag = 'input window, operand 4, single buffered']
    #allocation5 [shape = 's32[1]{0}', space=sflag, size = 0x4, scoped, tag = 'scoped memory for selfpatch_head_forward.1']
    #allocation6 [shape = 'u8[1024]{0}', space=vmem, size = 0x400, scoped, tag = 'input window, operand 5, single buffered']
    #allocation7 [shape = 'u8[1024]{0}', space=vmem, size = 0x400, scoped, tag = 'input window, operand 7, single buffered']
    #allocation8 [shape = 's32[1]{0}', space=sflag, size = 0x4, scoped, tag = 'scoped memory for selfpatch_head_forward.1']
    #allocation9 [shape = 'u8[1024]{0}', space=vmem, size = 0x400, scoped, tag = 'input window, operand 9, single buffered']
    #allocation10 [shape = 'u8[1024]{0}', space=vmem, size = 0x400, scoped, tag = 'input window, operand 11, single buffered']
    #allocation11 [shape = 's32[1]{0}', space=sflag, size = 0x4, scoped, tag = 'scoped memory for selfpatch_head_forward.1']
    #allocation12 [shape = 'u8[1024]{0}', space=vmem, size = 0x400, scoped, tag = 'input window, operand 13, single buffered']
    #allocation13 [shape = 'u8[1024]{0}', space=vmem, size = 0x400, scoped, tag = 'input window, operand 14, single buffered']
    #allocation14 [shape = 's32[1]{0}', space=sflag, size = 0x4, scoped, tag = 'scoped memory for selfpatch_head_forward.1']
    #allocation15 [shape = 'u8[1024]{0}', space=vmem, size = 0x400, scoped, tag = 'input window, operand 15, single buffered']
    #allocation16 [shape = 'u8[1024]{0}', space=vmem, size = 0x400, scoped, tag = 'input window, operand 17, single buffered']
    #allocation17 [shape = 's32[1]{0}', space=sflag, size = 0x4, scoped, tag = 'scoped memory for selfpatch_head_forward.1']
    #allocation18 [shape = 'u8[1024]{0}', space=vmem, size = 0x400, scoped, tag = 'input window, operand 19, single buffered']
    #allocation19 [shape = 'u8[512]{0}', space=vmem, size = 0x400, scoped, tag = 'input window, operand 20, single buffered']
    #allocation20 [shape = 's32[1]{0}', space=sflag, size = 0x4, scoped, tag = 'scoped memory for selfpatch_head_forward.1']
    #allocation21 [shape = 'u8[512]{0}', space=vmem, size = 0x400, scoped, tag = 'input window, operand 21, single buffered']
    %27 = vsyncpa [#allocation3], 0
    %28 = vsyncpa [#allocation5], 0
    %29 = vsyncpa [#allocation8], 0
    %30 = vsyncpa [#allocation11], 0
    %31 = vsyncpa [#allocation14], 0
    %32 = vsyncpa [#allocation17], 0
    %33 = vsyncpa [#allocation20], 0
    loop: start=0, step=1, limit=4
    $region2: #{selfpatch_head_forward.1} parent=1 // loop_pre_header
      _
    $region3: #{selfpatch_head_forward.1} parent=1 // loop_header
      %s35 = sphi 0, %s39
      %p36 = scmp.ge.s32.totalorder %s35, 4
      %s45 = sphi 0, %s47
      %s48 = sphi 0, %s45
      %s49 = sphi 0, %s48
      %s65 = sphi 0, %s49
      %s69 = sphi 0, %s69
      %s71 = sphi 0, %s69
      %s72 = sphi 0, %s71
      %s86 = sphi 0, %s72
      %s90 = sphi 0, %s90
      %s92 = sphi 0, %s90
      %s93 = sphi 0, %s92
      %s107 = sphi 0, %s93
      %s111 = sphi 0, %s111
      %s113 = sphi 0, %s111
      %s114 = sphi 0, %s113
      %s128 = sphi 0, %s114
      %s132 = sphi 0, %s132
      %s134 = sphi 0, %s132
      %s135 = sphi 0, %s134
      %s149 = sphi 0, %s135
      %s153 = sphi 0, %s153
      %s155 = sphi 0, %s153
      %s156 = sphi 0, %s155
      %s170 = sphi 0, %s156
      %s174 = sphi 0, %s174
      %s176 = sphi 0, %s174
      %s177 = sphi 0, %s176
      %s191 = sphi 0, %s177
      %s195 = sphi 0, %s195
      %s197 = sphi 0, %s195
      %s198 = sphi 0, %s197
      %s212 = sphi 0, %s198
      %s216 = sphi 0, %s216
      %s218 = sphi 0, %s216
      %s219 = sphi 0, %s218
      %s233 = sphi 0, %s219
      %s237 = sphi 0, %s237
      %s239 = sphi 0, %s237
      %s240 = sphi 0, %s239
      %s254 = sphi 0, %s240
      %s258 = sphi 0, %s258
      %s260 = sphi 0, %s258
      %s261 = sphi 0, %s260
      %s275 = sphi 0, %s261
      %s279 = sphi 0, %s279
      %s281 = sphi 0, %s279
      %s282 = sphi 0, %s281
      %s296 = sphi 0, %s282
      %s300 = sphi 0, %s300
      %s302 = sphi 0, %s300
      %s303 = sphi 0, %s302
      %s317 = sphi 0, %s303
      %s321 = sphi 0, %s321
      %s323 = sphi 0, %s321
      %s324 = sphi 0, %s323
      %s338 = sphi 0, %s324
      %s342 = sphi 0, %s342
      %s344 = sphi 0, %s342
      %s345 = sphi 0, %s344
      %s359 = sphi 0, %s345
      %s363 = sphi 0, %s363
      %s365 = sphi 0, %s363
      %s366 = sphi 0, %s365
      %s380 = sphi 0, %s366
      %s384 = sphi 0, %s384
      %s386 = sphi 0, %s384
      %s387 = sphi 0, %s386
      %s401 = sphi 0, %s387
      %s405 = sphi 0, %s405
      %s407 = sphi 0, %s405
      %s408 = sphi 0, %s407
      %s422 = sphi 0, %s408
      %s426 = sphi 0, %s426
      %s428 = sphi 0, %s426
      %s429 = sphi 0, %s428
      %s443 = sphi 0, %s429
      %s447 = sphi 0, %s447
      %s449 = sphi 0, %s447
      %s450 = sphi 0, %s449
      %s464 = sphi 0, %s450
      %s468 = sphi 0, %s468
      %s470 = sphi 0, %s468
      %s471 = sphi 0, %s470
      %s485 = sphi 0, %s471
      %s489 = sphi 0, %s489
      %s491 = sphi 0, %s489
      %s492 = sphi 0, %s491
      %s506 = sphi 0, %s492
      %s512 = sphi 0, %s514
      %s515 = sphi 0, %s512
      %s516 = sphi 0, %s515
      %s532 = sphi 0, %s516
    $region4: #{selfpatch_head_forward.1} parent=1 // loop_header_branch
      %38 = sbr.rel (%p36) target = $region8
    $region5: #{selfpatch_head_forward.1} parent=1 // loop_body
      %s40 = ssub.s32 %s35, 1
      %s41 = ssub.s32 %s35, 2
      %s42 = sadd.s32 %s35, 1
      %s43 = ssub.s32 %s35, %s42
      %p44 = scmp.eq.s32.totalorder %s43, 0
      %s46 = sadd.s32 %s45, 1
      %s47 = scalar_select %p44, %s45, %s46
      %p50 = pneg %p44
      %p51 = scmp.eq.s32.totalorder %s35, 1
      %p52 = por %p50, %p51
      %p53 = scmp.ne.s32.totalorder %s45, %s48
      %p54 = scmp.eq.s32.totalorder %s35, 0
      %p55 = por %p53, %p54
      %p56 = scmp.ne.s32.totalorder %s45, %s48
      %p57 = scmp.eq.s32.totalorder %s40, 1
      %p58 = por %p56, %p57
      %p59 = scmp.ne.s32.totalorder %s48, %s49
      %p60 = scmp.eq.s32.totalorder %s40, 0
      %p61 = por %p59, %p60
      %p62 = scmp.ne.s32.totalorder %s48, %s49
      %p63 = scmp.eq.s32.totalorder %s41, 1
      %p64 = por %p62, %p63
      %p66 = scmp.ne.s32.totalorder %s49, %s65
      %p67 = scmp.eq.s32.totalorder %s41, 0
      %p68 = por %p66, %p67
      %s70 = sadd.s32 %s69, 1
      %p73 = scmp.eq.s32.totalorder %s35, 1
      %p74 = scmp.ne.s32.totalorder %s69, %s71
      %p75 = scmp.eq.s32.totalorder %s35, 0
      %p76 = por %p74, %p75
      %p77 = scmp.ne.s32.totalorder %s69, %s71
      %p78 = scmp.eq.s32.totalorder %s40, 1
      %p79 = por %p77, %p78
      %p80 = scmp.ne.s32.totalorder %s71, %s72
      %p81 = scmp.eq.s32.totalorder %s40, 0
      %p82 = por %p80, %p81
      %p83 = scmp.ne.s32.totalorder %s71, %s72
      %p84 = scmp.eq.s32.totalorder %s41, 1
      %p85 = por %p83, %p84
      %p87 = scmp.ne.s32.totalorder %s72, %s86
      %p88 = scmp.eq.s32.totalorder %s41, 0
      %p89 = por %p87, %p88
      %s91 = sadd.s32 %s90, 1
      %p94 = scmp.eq.s32.totalorder %s35, 1
      %p95 = scmp.ne.s32.totalorder %s90, %s92
      %p96 = scmp.eq.s32.totalorder %s35, 0
      %p97 = por %p95, %p96
      %p98 = scmp.ne.s32.totalorder %s90, %s92
      %p99 = scmp.eq.s32.totalorder %s40, 1
      %p100 = por %p98, %p99
      %p101 = scmp.ne.s32.totalorder %s92, %s93
      %p102 = scmp.eq.s32.totalorder %s40, 0
      %p103 = por %p101, %p102
      %p104 = scmp.ne.s32.totalorder %s92, %s93
      %p105 = scmp.eq.s32.totalorder %s41, 1
      %p106 = por %p104, %p105
      %p108 = scmp.ne.s32.totalorder %s93, %s107
      %p109 = scmp.eq.s32.totalorder %s41, 0
      %p110 = por %p108, %p109
      %s112 = sadd.s32 %s111, 1
      %p115 = scmp.eq.s32.totalorder %s35, 1
      %p116 = scmp.ne.s32.totalorder %s111, %s113
      %p117 = scmp.eq.s32.totalorder %s35, 0
      %p118 = por %p116, %p117
      %p119 = scmp.ne.s32.totalorder %s111, %s113
      %p120 = scmp.eq.s32.totalorder %s40, 1
      %p121 = por %p119, %p120
      %p122 = scmp.ne.s32.totalorder %s113, %s114
      %p123 = scmp.eq.s32.totalorder %s40, 0
      %p124 = por %p122, %p123
      %p125 = scmp.ne.s32.totalorder %s113, %s114
      %p126 = scmp.eq.s32.totalorder %s41, 1
      %p127 = por %p125, %p126
      %p129 = scmp.ne.s32.totalorder %s114, %s128
      %p130 = scmp.eq.s32.totalorder %s41, 0
      %p131 = por %p129, %p130
      %s133 = sadd.s32 %s132, 1
      %p136 = scmp.eq.s32.totalorder %s35, 1
      %p137 = scmp.ne.s32.totalorder %s132, %s134
      %p138 = scmp.eq.s32.totalorder %s35, 0
      %p139 = por %p137, %p138
      %p140 = scmp.ne.s32.totalorder %s132, %s134
      %p141 = scmp.eq.s32.totalorder %s40, 1
      %p142 = por %p140, %p141
      %p143 = scmp.ne.s32.totalorder %s134, %s135
      %p144 = scmp.eq.s32.totalorder %s40, 0
      %p145 = por %p143, %p144
      %p146 = scmp.ne.s32.totalorder %s134, %s135
      %p147 = scmp.eq.s32.totalorder %s41, 1
      %p148 = por %p146, %p147
      %p150 = scmp.ne.s32.totalorder %s135, %s149
      %p151 = scmp.eq.s32.totalorder %s41, 0
      %p152 = por %p150, %p151
      %s154 = sadd.s32 %s153, 1
      %p157 = scmp.eq.s32.totalorder %s35, 1
      %p158 = scmp.ne.s32.totalorder %s153, %s155
      %p159 = scmp.eq.s32.totalorder %s35, 0
      %p160 = por %p158, %p159
      %p161 = scmp.ne.s32.totalorder %s153, %s155
      %p162 = scmp.eq.s32.totalorder %s40, 1
      %p163 = por %p161, %p162
      %p164 = scmp.ne.s32.totalorder %s155, %s156
      %p165 = scmp.eq.s32.totalorder %s40, 0
      %p166 = por %p164, %p165
      %p167 = scmp.ne.s32.totalorder %s155, %s156
      %p168 = scmp.eq.s32.totalorder %s41, 1
      %p169 = por %p167, %p168
      %p171 = scmp.ne.s32.totalorder %s156, %s170
      %p172 = scmp.eq.s32.totalorder %s41, 0
      %p173 = por %p171, %p172
      %s175 = sadd.s32 %s174, 1
      %p178 = scmp.eq.s32.totalorder %s35, 1
      %p179 = scmp.ne.s32.totalorder %s174, %s176
      %p180 = scmp.eq.s32.totalorder %s35, 0
      %p181 = por %p179, %p180
      %p182 = scmp.ne.s32.totalorder %s174, %s176
      %p183 = scmp.eq.s32.totalorder %s40, 1
      %p184 = por %p182, %p183
      %p185 = scmp.ne.s32.totalorder %s176, %s177
      %p186 = scmp.eq.s32.totalorder %s40, 0
      %p187 = por %p185, %p186
      %p188 = scmp.ne.s32.totalorder %s176, %s177
      %p189 = scmp.eq.s32.totalorder %s41, 1
      %p190 = por %p188, %p189
      %p192 = scmp.ne.s32.totalorder %s177, %s191
      %p193 = scmp.eq.s32.totalorder %s41, 0
      %p194 = por %p192, %p193
      %s196 = sadd.s32 %s195, 1
      %p199 = scmp.eq.s32.totalorder %s35, 1
      %p200 = scmp.ne.s32.totalorder %s195, %s197
      %p201 = scmp.eq.s32.totalorder %s35, 0
      %p202 = por %p200, %p201
      %p203 = scmp.ne.s32.totalorder %s195, %s197
      %p204 = scmp.eq.s32.totalorder %s40, 1
      %p205 = por %p203, %p204
      %p206 = scmp.ne.s32.totalorder %s197, %s198
      %p207 = scmp.eq.s32.totalorder %s40, 0
      %p208 = por %p206, %p207
      %p209 = scmp.ne.s32.totalorder %s197, %s198
      %p210 = scmp.eq.s32.totalorder %s41, 1
      %p211 = por %p209, %p210
      %p213 = scmp.ne.s32.totalorder %s198, %s212
      %p214 = scmp.eq.s32.totalorder %s41, 0
      %p215 = por %p213, %p214
      %s217 = sadd.s32 %s216, 1
      %p220 = scmp.eq.s32.totalorder %s35, 1
      %p221 = scmp.ne.s32.totalorder %s216, %s218
      %p222 = scmp.eq.s32.totalorder %s35, 0
      %p223 = por %p221, %p222
      %p224 = scmp.ne.s32.totalorder %s216, %s218
      %p225 = scmp.eq.s32.totalorder %s40, 1
      %p226 = por %p224, %p225
      %p227 = scmp.ne.s32.totalorder %s218, %s219
      %p228 = scmp.eq.s32.totalorder %s40, 0
      %p229 = por %p227, %p228
      %p230 = scmp.ne.s32.totalorder %s218, %s219
      %p231 = scmp.eq.s32.totalorder %s41, 1
      %p232 = por %p230, %p231
      %p234 = scmp.ne.s32.totalorder %s219, %s233
      %p235 = scmp.eq.s32.totalorder %s41, 0
      %p236 = por %p234, %p235
      %s238 = sadd.s32 %s237, 1
      %p241 = scmp.eq.s32.totalorder %s35, 1
      %p242 = scmp.ne.s32.totalorder %s237, %s239
      %p243 = scmp.eq.s32.totalorder %s35, 0
      %p244 = por %p242, %p243
      %p245 = scmp.ne.s32.totalorder %s237, %s239
      %p246 = scmp.eq.s32.totalorder %s40, 1
      %p247 = por %p245, %p246
      %p248 = scmp.ne.s32.totalorder %s239, %s240
      %p249 = scmp.eq.s32.totalorder %s40, 0
      %p250 = por %p248, %p249
      %p251 = scmp.ne.s32.totalorder %s239, %s240
      %p252 = scmp.eq.s32.totalorder %s41, 1
      %p253 = por %p251, %p252
      %p255 = scmp.ne.s32.totalorder %s240, %s254
      %p256 = scmp.eq.s32.totalorder %s41, 0
      %p257 = por %p255, %p256
      %s259 = sadd.s32 %s258, 1
      %p262 = scmp.eq.s32.totalorder %s35, 1
      %p263 = scmp.ne.s32.totalorder %s258, %s260
      %p264 = scmp.eq.s32.totalorder %s35, 0
      %p265 = por %p263, %p264
      %p266 = scmp.ne.s32.totalorder %s258, %s260
      %p267 = scmp.eq.s32.totalorder %s40, 1
      %p268 = por %p266, %p267
      %p269 = scmp.ne.s32.totalorder %s260, %s261
      %p270 = scmp.eq.s32.totalorder %s40, 0
      %p271 = por %p269, %p270
      %p272 = scmp.ne.s32.totalorder %s260, %s261
      %p273 = scmp.eq.s32.totalorder %s41, 1
      %p274 = por %p272, %p273
      %p276 = scmp.ne.s32.totalorder %s261, %s275
      %p277 = scmp.eq.s32.totalorder %s41, 0
      %p278 = por %p276, %p277
      %s280 = sadd.s32 %s279, 1
      %p283 = scmp.eq.s32.totalorder %s35, 1
      %p284 = scmp.ne.s32.totalorder %s279, %s281
      %p285 = scmp.eq.s32.totalorder %s35, 0
      %p286 = por %p284, %p285
      %p287 = scmp.ne.s32.totalorder %s279, %s281
      %p288 = scmp.eq.s32.totalorder %s40, 1
      %p289 = por %p287, %p288
      %p290 = scmp.ne.s32.totalorder %s281, %s282
      %p291 = scmp.eq.s32.totalorder %s40, 0
      %p292 = por %p290, %p291
      %p293 = scmp.ne.s32.totalorder %s281, %s282
      %p294 = scmp.eq.s32.totalorder %s41, 1
      %p295 = por %p293, %p294
      %p297 = scmp.ne.s32.totalorder %s282, %s296
      %p298 = scmp.eq.s32.totalorder %s41, 0
      %p299 = por %p297, %p298
      %s301 = sadd.s32 %s300, 1
      %p304 = scmp.eq.s32.totalorder %s35, 1
      %p305 = scmp.ne.s32.totalorder %s300, %s302
      %p306 = scmp.eq.s32.totalorder %s35, 0
      %p307 = por %p305, %p306
      %p308 = scmp.ne.s32.totalorder %s300, %s302
      %p309 = scmp.eq.s32.totalorder %s40, 1
      %p310 = por %p308, %p309
      %p311 = scmp.ne.s32.totalorder %s302, %s303
      %p312 = scmp.eq.s32.totalorder %s40, 0
      %p313 = por %p311, %p312
      %p314 = scmp.ne.s32.totalorder %s302, %s303
      %p315 = scmp.eq.s32.totalorder %s41, 1
      %p316 = por %p314, %p315
      %p318 = scmp.ne.s32.totalorder %s303, %s317
      %p319 = scmp.eq.s32.totalorder %s41, 0
      %p320 = por %p318, %p319
      %s322 = sadd.s32 %s321, 1
      %p325 = scmp.eq.s32.totalorder %s35, 1
      %p326 = scmp.ne.s32.totalorder %s321, %s323
      %p327 = scmp.eq.s32.totalorder %s35, 0
      %p328 = por %p326, %p327
      %p329 = scmp.ne.s32.totalorder %s321, %s323
      %p330 = scmp.eq.s32.totalorder %s40, 1
      %p331 = por %p329, %p330
      %p332 = scmp.ne.s32.totalorder %s323, %s324
      %p333 = scmp.eq.s32.totalorder %s40, 0
      %p334 = por %p332, %p333
      %p335 = scmp.ne.s32.totalorder %s323, %s324
      %p336 = scmp.eq.s32.totalorder %s41, 1
      %p337 = por %p335, %p336
      %p339 = scmp.ne.s32.totalorder %s324, %s338
      %p340 = scmp.eq.s32.totalorder %s41, 0
      %p341 = por %p339, %p340
      %s343 = sadd.s32 %s342, 1
      %p346 = scmp.eq.s32.totalorder %s35, 1
      %p347 = scmp.ne.s32.totalorder %s342, %s344
      %p348 = scmp.eq.s32.totalorder %s35, 0
      %p349 = por %p347, %p348
      %p350 = scmp.ne.s32.totalorder %s342, %s344
      %p351 = scmp.eq.s32.totalorder %s40, 1
      %p352 = por %p350, %p351
      %p353 = scmp.ne.s32.totalorder %s344, %s345
      %p354 = scmp.eq.s32.totalorder %s40, 0
      %p355 = por %p353, %p354
      %p356 = scmp.ne.s32.totalorder %s344, %s345
      %p357 = scmp.eq.s32.totalorder %s41, 1
      %p358 = por %p356, %p357
      %p360 = scmp.ne.s32.totalorder %s345, %s359
      %p361 = scmp.eq.s32.totalorder %s41, 0
      %p362 = por %p360, %p361
      %s364 = sadd.s32 %s363, 1
      %p367 = scmp.eq.s32.totalorder %s35, 1
      %p368 = scmp.ne.s32.totalorder %s363, %s365
      %p369 = scmp.eq.s32.totalorder %s35, 0
      %p370 = por %p368, %p369
      %p371 = scmp.ne.s32.totalorder %s363, %s365
      %p372 = scmp.eq.s32.totalorder %s40, 1
      %p373 = por %p371, %p372
      %p374 = scmp.ne.s32.totalorder %s365, %s366
      %p375 = scmp.eq.s32.totalorder %s40, 0
      %p376 = por %p374, %p375
      %p377 = scmp.ne.s32.totalorder %s365, %s366
      %p378 = scmp.eq.s32.totalorder %s41, 1
      %p379 = por %p377, %p378
      %p381 = scmp.ne.s32.totalorder %s366, %s380
      %p382 = scmp.eq.s32.totalorder %s41, 0
      %p383 = por %p381, %p382
      %s385 = sadd.s32 %s384, 1
      %p388 = scmp.eq.s32.totalorder %s35, 1
      %p389 = scmp.ne.s32.totalorder %s384, %s386
      %p390 = scmp.eq.s32.totalorder %s35, 0
      %p391 = por %p389, %p390
      %p392 = scmp.ne.s32.totalorder %s384, %s386
      %p393 = scmp.eq.s32.totalorder %s40, 1
      %p394 = por %p392, %p393
      %p395 = scmp.ne.s32.totalorder %s386, %s387
      %p396 = scmp.eq.s32.totalorder %s40, 0
      %p397 = por %p395, %p396
      %p398 = scmp.ne.s32.totalorder %s386, %s387
      %p399 = scmp.eq.s32.totalorder %s41, 1
      %p400 = por %p398, %p399
      %p402 = scmp.ne.s32.totalorder %s387, %s401
      %p403 = scmp.eq.s32.totalorder %s41, 0
      %p404 = por %p402, %p403
      %s406 = sadd.s32 %s405, 1
      %p409 = scmp.eq.s32.totalorder %s35, 1
      %p410 = scmp.ne.s32.totalorder %s405, %s407
      %p411 = scmp.eq.s32.totalorder %s35, 0
      %p412 = por %p410, %p411
      %p413 = scmp.ne.s32.totalorder %s405, %s407
      %p414 = scmp.eq.s32.totalorder %s40, 1
      %p415 = por %p413, %p414
      %p416 = scmp.ne.s32.totalorder %s407, %s408
      %p417 = scmp.eq.s32.totalorder %s40, 0
      %p418 = por %p416, %p417
      %p419 = scmp.ne.s32.totalorder %s407, %s408
      %p420 = scmp.eq.s32.totalorder %s41, 1
      %p421 = por %p419, %p420
      %p423 = scmp.ne.s32.totalorder %s408, %s422
      %p424 = scmp.eq.s32.totalorder %s41, 0
      %p425 = por %p423, %p424
      %s427 = sadd.s32 %s426, 1
      %p430 = scmp.eq.s32.totalorder %s35, 1
      %p431 = scmp.ne.s32.totalorder %s426, %s428
      %p432 = scmp.eq.s32.totalorder %s35, 0
      %p433 = por %p431, %p432
      %p434 = scmp.ne.s32.totalorder %s426, %s428
      %p435 = scmp.eq.s32.totalorder %s40, 1
      %p436 = por %p434, %p435
      %p437 = scmp.ne.s32.totalorder %s428, %s429
      %p438 = scmp.eq.s32.totalorder %s40, 0
      %p439 = por %p437, %p438
      %p440 = scmp.ne.s32.totalorder %s428, %s429
      %p441 = scmp.eq.s32.totalorder %s41, 1
      %p442 = por %p440, %p441
      %p444 = scmp.ne.s32.totalorder %s429, %s443
      %p445 = scmp.eq.s32.totalorder %s41, 0
      %p446 = por %p444, %p445
      %s448 = sadd.s32 %s447, 1
      %p451 = scmp.eq.s32.totalorder %s35, 1
      %p452 = scmp.ne.s32.totalorder %s447, %s449
      %p453 = scmp.eq.s32.totalorder %s35, 0
      %p454 = por %p452, %p453
      %p455 = scmp.ne.s32.totalorder %s447, %s449
      %p456 = scmp.eq.s32.totalorder %s40, 1
      %p457 = por %p455, %p456
      %p458 = scmp.ne.s32.totalorder %s449, %s450
      %p459 = scmp.eq.s32.totalorder %s40, 0
      %p460 = por %p458, %p459
      %p461 = scmp.ne.s32.totalorder %s449, %s450
      %p462 = scmp.eq.s32.totalorder %s41, 1
      %p463 = por %p461, %p462
      %p465 = scmp.ne.s32.totalorder %s450, %s464
      %p466 = scmp.eq.s32.totalorder %s41, 0
      %p467 = por %p465, %p466
      %s469 = sadd.s32 %s468, 1
      %p472 = scmp.eq.s32.totalorder %s35, 1
      %p473 = scmp.ne.s32.totalorder %s468, %s470
      %p474 = scmp.eq.s32.totalorder %s35, 0
      %p475 = por %p473, %p474
      %p476 = scmp.ne.s32.totalorder %s468, %s470
      %p477 = scmp.eq.s32.totalorder %s40, 1
      %p478 = por %p476, %p477
      %p479 = scmp.ne.s32.totalorder %s470, %s471
      %p480 = scmp.eq.s32.totalorder %s40, 0
      %p481 = por %p479, %p480
      %p482 = scmp.ne.s32.totalorder %s470, %s471
      %p483 = scmp.eq.s32.totalorder %s41, 1
      %p484 = por %p482, %p483
      %p486 = scmp.ne.s32.totalorder %s471, %s485
      %p487 = scmp.eq.s32.totalorder %s41, 0
      %p488 = por %p486, %p487
      %s490 = sadd.s32 %s489, 1
      %p493 = scmp.eq.s32.totalorder %s35, 1
      %p494 = scmp.ne.s32.totalorder %s489, %s491
      %p495 = scmp.eq.s32.totalorder %s35, 0
      %p496 = por %p494, %p495
      %p497 = scmp.ne.s32.totalorder %s489, %s491
      %p498 = scmp.eq.s32.totalorder %s40, 1
      %p499 = por %p497, %p498
      %p500 = scmp.ne.s32.totalorder %s491, %s492
      %p501 = scmp.eq.s32.totalorder %s40, 0
      %p502 = por %p500, %p501
      %p503 = scmp.ne.s32.totalorder %s491, %s492
      %p504 = scmp.eq.s32.totalorder %s41, 1
      %p505 = por %p503, %p504
      %p507 = scmp.ne.s32.totalorder %s492, %s506
      %p508 = scmp.eq.s32.totalorder %s41, 0
      %p509 = por %p507, %p508
      %s510 = ssub.s32 %s35, %s42
      %p511 = scmp.eq.s32.totalorder %s510, 0
      %s513 = sadd.s32 %s512, 1
      %s514 = scalar_select %p511, %s512, %s513
      %p517 = pneg %p511
      %p518 = scmp.eq.s32.totalorder %s35, 1
      %p519 = por %p517, %p518
      %p520 = scmp.ne.s32.totalorder %s512, %s515
      %p521 = scmp.eq.s32.totalorder %s35, 0
      %p522 = por %p520, %p521
      %p523 = scmp.ne.s32.totalorder %s512, %s515
      %p524 = scmp.eq.s32.totalorder %s40, 1
      %p525 = por %p523, %p524
      %p526 = scmp.ne.s32.totalorder %s515, %s516
      %p527 = scmp.eq.s32.totalorder %s40, 0
      %p528 = por %p526, %p527
      %p529 = scmp.ne.s32.totalorder %s515, %s516
      %p530 = scmp.eq.s32.totalorder %s41, 1
      %p531 = por %p529, %p530
      %p533 = scmp.ne.s32.totalorder %s516, %s532
      %p534 = scmp.eq.s32.totalorder %s41, 0
      %p535 = por %p533, %p534
      %p536 = scmp.le.s32.totalorder 1, %s35
      %p537 = scmp.lt.s32.totalorder %s35, 3
      %p538 = pnand %p536, %p537
      %p539 = pneg %p538
      // Predicated region
      $region9: #{selfpatch_head_forward.1} parent=5 // pred_check
        _
      $region10: #{selfpatch_head_forward.1} parent=5 // pred_check_branch
        %541 = sbr.rel (%p538) target = $region12
      $region11: #{selfpatch_head_forward.1} parent=5 // pred_region
        %s542 = ssub.s32 %s35, 1
        // Predicated region
        $region13: #{selfpatch_head_forward.1} parent=11 // pred_check
          %p543 = pneg %p82
        $region14: #{selfpatch_head_forward.1} parent=11 // pred_check_branch
          %545 = sbr.rel (%p543) target = $region16
        $region15: #{selfpatch_head_forward.1} parent=11 // pred_region
          _
        $region16: #{selfpatch_head_forward.1} parent=11 // pred_fallthru
          _
        // Predicated region
        $region17: #{selfpatch_head_forward.1} parent=11 // pred_check
          %p546 = pneg %p103
        $region18: #{selfpatch_head_forward.1} parent=11 // pred_check_branch
          %548 = sbr.rel (%p546) target = $region20
        $region19: #{selfpatch_head_forward.1} parent=11 // pred_region
          _
        $region20: #{selfpatch_head_forward.1} parent=11 // pred_fallthru
          _
        // Predicated region
        $region21: #{selfpatch_head_forward.1} parent=11 // pred_check
          %p549 = pneg %p124
        $region22: #{selfpatch_head_forward.1} parent=11 // pred_check_branch
          %551 = sbr.rel (%p549) target = $region24
        $region23: #{selfpatch_head_forward.1} parent=11 // pred_region
          %s553 = ssub.s32 32, 32
          %554 = vsyncadd [#allocation3], %s553
          %s556 = sshll.u32 [#allocation2], 4
          %s557 = int_to_ptr.vmem [resolvable:$true] %s556
          %559 = dma.hbm_to_vmem [thread:$0]  %s3, 32, %s557, [#allocation3]
        $region24: #{selfpatch_head_forward.1} parent=11 // pred_fallthru
          _
        // Predicated region
        $region25: #{selfpatch_head_forward.1} parent=11 // pred_check
          %p560 = pneg %p145
        $region26: #{selfpatch_head_forward.1} parent=11 // pred_check_branch
          %562 = sbr.rel (%p560) target = $region28
        $region27: #{selfpatch_head_forward.1} parent=11 // pred_region
          %s564 = ssub.s32 32, 32
          %565 = vsyncadd [#allocation5], %s564
          %s566 = sshll.u32 [#allocation4], 4
          %s567 = int_to_ptr.vmem [resolvable:$true] %s566
          %572 = dma.hbm_to_vmem [thread:$0]  %s4, 32, %s567, [#allocation5], 16, 16, 1
        $region28: #{selfpatch_head_forward.1} parent=11 // pred_fallthru
          _
        // Predicated region
        $region29: #{selfpatch_head_forward.1} parent=11 // pred_check
          %p573 = pneg %p166
        $region30: #{selfpatch_head_forward.1} parent=11 // pred_check_branch
          %575 = sbr.rel (%p573) target = $region32
        $region31: #{selfpatch_head_forward.1} parent=11 // pred_region
          %s577 = ssub.s32 32, 32
          %578 = vsyncadd [#allocation5], %s577
          %s579 = sshll.u32 [#allocation6], 4
          %s580 = int_to_ptr.vmem [resolvable:$true] %s579
          %585 = dma.hbm_to_vmem [thread:$0]  %s5, 32, %s580, [#allocation5], 16, 16, 1
        $region32: #{selfpatch_head_forward.1} parent=11 // pred_fallthru
          _
        // Predicated region
        $region33: #{selfpatch_head_forward.1} parent=11 // pred_check
          %p586 = pneg %p187
        $region34: #{selfpatch_head_forward.1} parent=11 // pred_check_branch
          %588 = sbr.rel (%p586) target = $region36
        $region35: #{selfpatch_head_forward.1} parent=11 // pred_region
          _
        $region36: #{selfpatch_head_forward.1} parent=11 // pred_fallthru
          _
        // Predicated region
        $region37: #{selfpatch_head_forward.1} parent=11 // pred_check
          %p589 = pneg %p208
        $region38: #{selfpatch_head_forward.1} parent=11 // pred_check_branch
          %591 = sbr.rel (%p589) target = $region40
        $region39: #{selfpatch_head_forward.1} parent=11 // pred_region
          %s593 = ssub.s32 32, 32
          %594 = vsyncadd [#allocation8], %s593
          %s595 = sshll.u32 [#allocation7], 4
          %s596 = int_to_ptr.vmem [resolvable:$true] %s595
          %601 = dma.hbm_to_vmem [thread:$0]  %s7, 32, %s596, [#allocation8], 16, 16, 1
        $region40: #{selfpatch_head_forward.1} parent=11 // pred_fallthru
          _
        // Predicated region
        $region41: #{selfpatch_head_forward.1} parent=11 // pred_check
          %p602 = pneg %p229
        $region42: #{selfpatch_head_forward.1} parent=11 // pred_check_branch
          %604 = sbr.rel (%p602) target = $region44
        $region43: #{selfpatch_head_forward.1} parent=11 // pred_region
          _
        $region44: #{selfpatch_head_forward.1} parent=11 // pred_fallthru
          _
        // Predicated region
        $region45: #{selfpatch_head_forward.1} parent=11 // pred_check
          %p605 = pneg %p250
        $region46: #{selfpatch_head_forward.1} parent=11 // pred_check_branch
          %607 = sbr.rel (%p605) target = $region48
        $region47: #{selfpatch_head_forward.1} parent=11 // pred_region
          %s609 = ssub.s32 32, 32
          %610 = vsyncadd [#allocation8], %s609
          %s611 = sshll.u32 [#allocation9], 4
          %s612 = int_to_ptr.vmem [resolvable:$true] %s611
          %617 = dma.hbm_to_vmem [thread:$0]  %s9, 32, %s612, [#allocation8], 16, 16, 1
        $region48: #{selfpatch_head_forward.1} parent=11 // pred_fallthru
          _
        // Predicated region
        $region49: #{selfpatch_head_forward.1} parent=11 // pred_check
          %p618 = pneg %p271
        $region50: #{selfpatch_head_forward.1} parent=11 // pred_check_branch
          %620 = sbr.rel (%p618) target = $region52
        $region51: #{selfpatch_head_forward.1} parent=11 // pred_region
          _
        $region52: #{selfpatch_head_forward.1} parent=11 // pred_fallthru
          _
        // Predicated region
        $region53: #{selfpatch_head_forward.1} parent=11 // pred_check
          %p621 = pneg %p292
        $region54: #{selfpatch_head_forward.1} parent=11 // pred_check_branch
          %623 = sbr.rel (%p621) target = $region56
        $region55: #{selfpatch_head_forward.1} parent=11 // pred_region
          %s625 = ssub.s32 32, 32
          %626 = vsyncadd [#allocation11], %s625
          %s627 = sshll.u32 [#allocation10], 4
          %s628 = int_to_ptr.vmem [resolvable:$true] %s627
          %633 = dma.hbm_to_vmem [thread:$0]  %s11, 32, %s628, [#allocation11], 16, 16, 1
        $region56: #{selfpatch_head_forward.1} parent=11 // pred_fallthru
          _
        // Predicated region
        $region57: #{selfpatch_head_forward.1} parent=11 // pred_check
          %p634 = pneg %p313
        $region58: #{selfpatch_head_forward.1} parent=11 // pred_check_branch
          %636 = sbr.rel (%p634) target = $region60
        $region59: #{selfpatch_head_forward.1} parent=11 // pred_region
          _
        $region60: #{selfpatch_head_forward.1} parent=11 // pred_fallthru
          _
        // Predicated region
        $region61: #{selfpatch_head_forward.1} parent=11 // pred_check
          %p637 = pneg %p334
        $region62: #{selfpatch_head_forward.1} parent=11 // pred_check_branch
          %639 = sbr.rel (%p637) target = $region64
        $region63: #{selfpatch_head_forward.1} parent=11 // pred_region
          %s641 = ssub.s32 32, 32
          %642 = vsyncadd [#allocation11], %s641
          %s643 = sshll.u32 [#allocation12], 4
          %s644 = int_to_ptr.vmem [resolvable:$true] %s643
          %649 = dma.hbm_to_vmem [thread:$0]  %s13, 32, %s644, [#allocation11], 16, 16, 1
        $region64: #{selfpatch_head_forward.1} parent=11 // pred_fallthru
          _
        // Predicated region
        $region65: #{selfpatch_head_forward.1} parent=11 // pred_check
          %p650 = pneg %p355
        $region66: #{selfpatch_head_forward.1} parent=11 // pred_check_branch
          %652 = sbr.rel (%p650) target = $region68
        $region67: #{selfpatch_head_forward.1} parent=11 // pred_region
          %s654 = ssub.s32 32, 32
          %655 = vsyncadd [#allocation14], %s654
          %s656 = sshll.u32 [#allocation13], 4
          %s657 = int_to_ptr.vmem [resolvable:$true] %s656
          %662 = dma.hbm_to_vmem [thread:$0]  %s14, 32, %s657, [#allocation14], 16, 16, 1
        $region68: #{selfpatch_head_forward.1} parent=11 // pred_fallthru
          _
        // Predicated region
        $region69: #{selfpatch_head_forward.1} parent=11 // pred_check
          %p663 = pneg %p376
        $region70: #{selfpatch_head_forward.1} parent=11 // pred_check_branch
          %665 = sbr.rel (%p663) target = $region72
        $region71: #{selfpatch_head_forward.1} parent=11 // pred_region
          %s667 = ssub.s32 32, 32
          %668 = vsyncadd [#allocation14], %s667
          %s669 = sshll.u32 [#allocation15], 4
          %s670 = int_to_ptr.vmem [resolvable:$true] %s669
          %675 = dma.hbm_to_vmem [thread:$0]  %s15, 32, %s670, [#allocation14], 16, 16, 1
        $region72: #{selfpatch_head_forward.1} parent=11 // pred_fallthru
          _
        // Predicated region
        $region73: #{selfpatch_head_forward.1} parent=11 // pred_check
          %p676 = pneg %p397
        $region74: #{selfpatch_head_forward.1} parent=11 // pred_check_branch
          %678 = sbr.rel (%p676) target = $region76
        $region75: #{selfpatch_head_forward.1} parent=11 // pred_region
          _
        $region76: #{selfpatch_head_forward.1} parent=11 // pred_fallthru
          _
        // Predicated region
        $region77: #{selfpatch_head_forward.1} parent=11 // pred_check
          %p679 = pneg %p418
        $region78: #{selfpatch_head_forward.1} parent=11 // pred_check_branch
          %681 = sbr.rel (%p679) target = $region80
        $region79: #{selfpatch_head_forward.1} parent=11 // pred_region
          %s683 = ssub.s32 32, 32
          %684 = vsyncadd [#allocation17], %s683
          %s685 = sshll.u32 [#allocation16], 4
          %s686 = int_to_ptr.vmem [resolvable:$true] %s685
          %691 = dma.hbm_to_vmem [thread:$0]  %s17, 32, %s686, [#allocation17], 16, 16, 1
        $region80: #{selfpatch_head_forward.1} parent=11 // pred_fallthru
          _
        // Predicated region
        $region81: #{selfpatch_head_forward.1} parent=11 // pred_check
          %p692 = pneg %p439
        $region82: #{selfpatch_head_forward.1} parent=11 // pred_check_branch
          %694 = sbr.rel (%p692) target = $region84
        $region83: #{selfpatch_head_forward.1} parent=11 // pred_region
          _
        $region84: #{selfpatch_head_forward.1} parent=11 // pred_fallthru
          _
        // Predicated region
        $region85: #{selfpatch_head_forward.1} parent=11 // pred_check
          %p695 = pneg %p460
        $region86: #{selfpatch_head_forward.1} parent=11 // pred_check_branch
          %697 = sbr.rel (%p695) target = $region88
        $region87: #{selfpatch_head_forward.1} parent=11 // pred_region
          %s699 = ssub.s32 32, 32
          %700 = vsyncadd [#allocation17], %s699
          %s701 = sshll.u32 [#allocation18], 4
          %s702 = int_to_ptr.vmem [resolvable:$true] %s701
          %707 = dma.hbm_to_vmem [thread:$0]  %s19, 32, %s702, [#allocation17], 16, 16, 1
        $region88: #{selfpatch_head_forward.1} parent=11 // pred_fallthru
          _
        // Predicated region
        $region89: #{selfpatch_head_forward.1} parent=11 // pred_check
          %p708 = pneg %p481
        $region90: #{selfpatch_head_forward.1} parent=11 // pred_check_branch
          %710 = sbr.rel (%p708) target = $region92
        $region91: #{selfpatch_head_forward.1} parent=11 // pred_region
          %s712 = ssub.s32 16, 16
          %713 = vsyncadd [#allocation20], %s712
          %s715 = sshll.u32 [#allocation19], 4
          %s716 = int_to_ptr.vmem [resolvable:$true] %s715
          %718 = dma.hbm_to_vmem [thread:$0]  %s20, 16, %s716, [#allocation20]
        $region92: #{selfpatch_head_forward.1} parent=11 // pred_fallthru
          _
        // Predicated region
        $region93: #{selfpatch_head_forward.1} parent=11 // pred_check
          %p719 = pneg %p502
        $region94: #{selfpatch_head_forward.1} parent=11 // pred_check_branch
          %721 = sbr.rel (%p719) target = $region96
        $region95: #{selfpatch_head_forward.1} parent=11 // pred_region
          %s723 = ssub.s32 16, 16
          %724 = vsyncadd [#allocation20], %s723
          %s726 = sshll.u32 [#allocation21], 4
          %s727 = int_to_ptr.vmem [resolvable:$true] %s726
          %729 = dma.hbm_to_vmem [thread:$0]  %s21, 16, %s727, [#allocation20]
        $region96: #{selfpatch_head_forward.1} parent=11 // pred_fallthru
          _
      $region12: #{selfpatch_head_forward.1} parent=5 // pred_fallthru
        _
      %p730 = scmp.lt.s32.totalorder %s35, 2
      // Predicated region
      $region97: #{selfpatch_head_forward.1} parent=5 // pred_check
        %p731 = pneg %p730
      $region98: #{selfpatch_head_forward.1} parent=5 // pred_check_branch
        %733 = sbr.rel (%p731) target = $region100
      $region99: #{selfpatch_head_forward.1} parent=5 // pred_region
        // Predicated region
        $region101: #{selfpatch_head_forward.1} parent=99 // pred_check
          %p734 = pneg %p55
        $region102: #{selfpatch_head_forward.1} parent=99 // pred_check_branch
          %736 = sbr.rel (%p734) target = $region104
        $region103: #{selfpatch_head_forward.1} parent=99 // pred_region
          %p737 = scmp.lt.s32.totalorder %s35, 1
          %s738 = scalar_select %p737, %s35, 1
          %s739 = smul.addr %s738, 8
          %s740 = scalar_lea.vmem %s0, %s739
        $region104: #{selfpatch_head_forward.1} parent=99 // pred_fallthru
          _
      $region100: #{selfpatch_head_forward.1} parent=5 // pred_fallthru
        _
      %p741 = scmp.le.s32.totalorder 1, %s35
      %p742 = scmp.lt.s32.totalorder %s35, 3
      %p743 = pnand %p741, %p742
      %p744 = pneg %p743
      // Predicated region
      $region105: #{selfpatch_head_forward.1} parent=5 // pred_check
        _
      $region106: #{selfpatch_head_forward.1} parent=5 // pred_check_branch
        %746 = sbr.rel (%p743) target = $region108
      $region107: #{selfpatch_head_forward.1} parent=5 // pred_region
        %s747 = ssub.s32 %s35, 1
        // Predicated region
        $region109: #{selfpatch_head_forward.1} parent=107 // pred_check
          %p748 = pneg %p124
        $region110: #{selfpatch_head_forward.1} parent=107 // pred_check_branch
          %750 = sbr.rel (%p748) target = $region112
        $region111: #{selfpatch_head_forward.1} parent=107 // pred_region
          %751 = dma.done [#allocation3], 32
        $region112: #{selfpatch_head_forward.1} parent=107 // pred_fallthru
          _
        // Predicated region
        $region113: #{selfpatch_head_forward.1} parent=107 // pred_check
          %p752 = pneg %p145
        $region114: #{selfpatch_head_forward.1} parent=107 // pred_check_branch
          %754 = sbr.rel (%p752) target = $region116
        $region115: #{selfpatch_head_forward.1} parent=107 // pred_region
          %755 = dma.done [#allocation5], 32
        $region116: #{selfpatch_head_forward.1} parent=107 // pred_fallthru
          _
        // Predicated region
        $region117: #{selfpatch_head_forward.1} parent=107 // pred_check
          %p756 = pneg %p166
        $region118: #{selfpatch_head_forward.1} parent=107 // pred_check_branch
          %758 = sbr.rel (%p756) target = $region120
        $region119: #{selfpatch_head_forward.1} parent=107 // pred_region
          %759 = dma.done [#allocation5], 32
        $region120: #{selfpatch_head_forward.1} parent=107 // pred_fallthru
          _
        // Predicated region
        $region121: #{selfpatch_head_forward.1} parent=107 // pred_check
          %p760 = pneg %p208
        $region122: #{selfpatch_head_forward.1} parent=107 // pred_check_branch
          %762 = sbr.rel (%p760) target = $region124
        $region123: #{selfpatch_head_forward.1} parent=107 // pred_region
          %763 = dma.done [#allocation8], 32
        $region124: #{selfpatch_head_forward.1} parent=107 // pred_fallthru
          _
        // Predicated region
        $region125: #{selfpatch_head_forward.1} parent=107 // pred_check
          %p764 = pneg %p250
        $region126: #{selfpatch_head_forward.1} parent=107 // pred_check_branch
          %766 = sbr.rel (%p764) target = $region128
        $region127: #{selfpatch_head_forward.1} parent=107 // pred_region
          %767 = dma.done [#allocation8], 32
        $region128: #{selfpatch_head_forward.1} parent=107 // pred_fallthru
          _
        // Predicated region
        $region129: #{selfpatch_head_forward.1} parent=107 // pred_check
          %p768 = pneg %p292
        $region130: #{selfpatch_head_forward.1} parent=107 // pred_check_branch
          %770 = sbr.rel (%p768) target = $region132
        $region131: #{selfpatch_head_forward.1} parent=107 // pred_region
          %771 = dma.done [#allocation11], 32
        $region132: #{selfpatch_head_forward.1} parent=107 // pred_fallthru
          _
        // Predicated region
        $region133: #{selfpatch_head_forward.1} parent=107 // pred_check
          %p772 = pneg %p334
        $region134: #{selfpatch_head_forward.1} parent=107 // pred_check_branch
          %774 = sbr.rel (%p772) target = $region136
        $region135: #{selfpatch_head_forward.1} parent=107 // pred_region
          %775 = dma.done [#allocation11], 32
        $region136: #{selfpatch_head_forward.1} parent=107 // pred_fallthru
          _
        // Predicated region
        $region137: #{selfpatch_head_forward.1} parent=107 // pred_check
          %p776 = pneg %p355
        $region138: #{selfpatch_head_forward.1} parent=107 // pred_check_branch
          %778 = sbr.rel (%p776) target = $region140
        $region139: #{selfpatch_head_forward.1} parent=107 // pred_region
          %779 = dma.done [#allocation14], 32
        $region140: #{selfpatch_head_forward.1} parent=107 // pred_fallthru
          _
        // Predicated region
        $region141: #{selfpatch_head_forward.1} parent=107 // pred_check
          %p780 = pneg %p376
        $region142: #{selfpatch_head_forward.1} parent=107 // pred_check_branch
          %782 = sbr.rel (%p780) target = $region144
        $region143: #{selfpatch_head_forward.1} parent=107 // pred_region
          %783 = dma.done [#allocation14], 32
        $region144: #{selfpatch_head_forward.1} parent=107 // pred_fallthru
          _
        // Predicated region
        $region145: #{selfpatch_head_forward.1} parent=107 // pred_check
          %p784 = pneg %p418
        $region146: #{selfpatch_head_forward.1} parent=107 // pred_check_branch
          %786 = sbr.rel (%p784) target = $region148
        $region147: #{selfpatch_head_forward.1} parent=107 // pred_region
          %787 = dma.done [#allocation17], 32
        $region148: #{selfpatch_head_forward.1} parent=107 // pred_fallthru
          _
        // Predicated region
        $region149: #{selfpatch_head_forward.1} parent=107 // pred_check
          %p788 = pneg %p460
        $region150: #{selfpatch_head_forward.1} parent=107 // pred_check_branch
          %790 = sbr.rel (%p788) target = $region152
        $region151: #{selfpatch_head_forward.1} parent=107 // pred_region
          %791 = dma.done [#allocation17], 32
        $region152: #{selfpatch_head_forward.1} parent=107 // pred_fallthru
          _
        // Predicated region
        $region153: #{selfpatch_head_forward.1} parent=107 // pred_check
          %p792 = pneg %p481
        $region154: #{selfpatch_head_forward.1} parent=107 // pred_check_branch
          %794 = sbr.rel (%p792) target = $region156
        $region155: #{selfpatch_head_forward.1} parent=107 // pred_region
          %795 = dma.done [#allocation20], 16
        $region156: #{selfpatch_head_forward.1} parent=107 // pred_fallthru
          _
        // Predicated region
        $region157: #{selfpatch_head_forward.1} parent=107 // pred_check
          %p796 = pneg %p502
        $region158: #{selfpatch_head_forward.1} parent=107 // pred_check_branch
          %798 = sbr.rel (%p796) target = $region160
        $region159: #{selfpatch_head_forward.1} parent=107 // pred_region
          %799 = dma.done [#allocation20], 16
        $region160: #{selfpatch_head_forward.1} parent=107 // pred_fallthru
          _
        %p800 = scmp.lt.s32.totalorder %s40, 1
        %s801 = scalar_select %p800, %s40, 1
        %s802 = smul.addr %s801, 8
        %s803 = scalar_lea.vmem %s0, %s802
        %p804 = pneg %p61
        %p805 = pneg %p58
        %p806 = pneg %p82
        %p807 = pneg %p79
        %p808 = pneg %p103
        %p809 = pneg %p100
        %p810 = pneg %p124
        %p811 = pneg %p121
        %p812 = pneg %p145
        %p813 = pneg %p142
        %p814 = pneg %p166
        %p815 = pneg %p163
        %p816 = pneg %p187
        %p817 = pneg %p184
        %p818 = pneg %p208
        %p819 = pneg %p205
        %p820 = pneg %p229
        %p821 = pneg %p226
        %p822 = pneg %p250
        %p823 = pneg %p247
        %p824 = pneg %p271
        %p825 = pneg %p268
        %p826 = pneg %p292
        %p827 = pneg %p289
        %p828 = pneg %p313
        %p829 = pneg %p310
        %p830 = pneg %p334
        %p831 = pneg %p331
        %p832 = pneg %p355
        %p833 = pneg %p352
        %p834 = pneg %p376
        %p835 = pneg %p373
        %p836 = pneg %p397
        %p837 = pneg %p394
        %p838 = pneg %p418
        %p839 = pneg %p415
        %p840 = pneg %p439
        %p841 = pneg %p436
        %p842 = pneg %p460
        %p843 = pneg %p457
        %p844 = pneg %p481
        %p845 = pneg %p478
        %p846 = pneg %p502
        %p847 = pneg %p499
        %p848 = pneg %p528
        %p849 = pneg %p525
        %p850 = scmp.lt.s32.totalorder %s40, 1
        %s851 = scalar_select %p850, %s40, 1
        %s852 = smul.addr %s851, 2
        %s853 = smul.addr %s852, 8
        %s854 = scalar_lea.vmem %s22, %s853
        %p855 = scmp.lt.s32.totalorder %s40, 1
        %s856 = scalar_select %p855, %s40, 1
        %s857 = smul.addr %s856, 8
        %s858 = scalar_lea.vmem %s0, %s857
        %p859 = scmp.lt.s32.totalorder %s40, 1
        %s860 = scalar_select %p859, %s40, 1
        %s861 = smul.addr %s860, 2
        %s862 = smul.addr %s861, 8
        %s863 = scalar_lea.vmem %s22, %s862
        %v865 = vld [vmem:[%s858] sm:$0xff]
        %v866 = vld [vmem:[%s1] sm:$0x1]
        %v867 = vld [vmem:[%s2] sm:$0xf]
        %v868 = vld [vmem:[%s2 + $0x4] sm:$0xf]
        %v869 = vld [vmem:[%s2 + $0x8] sm:$0xf]
        %v870 = vld [vmem:[%s2 + $0xc] sm:$0xf]
        %v871 = vld [vmem:[#allocation2] sm:$0x3]
        %v872 = vld [vmem:[#allocation4] sm:$0x1]
        %v873 = vld [vmem:[#allocation6] sm:$0x1]
        %vm874 = vcmask 261120
        %v875 = vsel %vm874, %v865, 0.0
        %876 = vadd.xlane.f32.xlu0 %v875
        %v877 = vpop.xlane.xlu0 %876
        %v878 = vrcp.pop 32.0
        %v879 = vmul.f32 %v877, %v878
        %v880 = vsub.f32 %v865, %v879
        %v881 = vmul.f32 %v880, %v880
        %v882 = vsel %vm874, %v881, 0.0
        %883 = vadd.xlane.f32.xlu0 %v882
        %v884 = vpop.xlane.xlu0 %883
        %v885 = vmul.f32 %v884, %v878
        %v886 = vadd.f32 %v885, 1e-06
        %v887 = vrsqrt.pop %v886
        %v888 = vmul.f32 %v880, %v887
        %v890 = vlaneseq
        %v891 = vshrl.u32 %v890, 7
        %v892 = vsub.s32 0, %v891
        %v893 = vrot.slane %v872, %v892
        %v895 = vmul.f32 %v888, %v893
        %v897 = vlaneseq
        %v898 = vshrl.u32 %v897, 7
        %v899 = vsub.s32 0, %v898
        %v900 = vrot.slane %v873, %v899
        %v902 = vadd.f32 %v895, %v900
        %vm903 = vcmask 253952
        %v904 = vsel %vm903, %v866, 0.0
        %905 = vadd.xlane.f32.xlu0 %v904
        %v906 = vpop.xlane.xlu0 %905
        %v907 = vmul.f32 %v906, %v878
        %v908 = vsub.f32 %v866, %v907
        %v909 = vmul.f32 %v908, %v908
        %v910 = vsel %vm903, %v909, 0.0
        %911 = vadd.xlane.f32.xlu0 %v910
        %v912 = vpop.xlane.xlu0 %911
        %v913 = vmul.f32 %v912, %v878
        %v914 = vadd.f32 %v913, 1e-06
        %v915 = vrsqrt.pop %v914
        %v916 = vmul.f32 %v908, %v915
        %v917 = vmul.f32 %v916, %v872
        %v918 = vadd.f32 %v917, %v873
        %v919 = vld [vmem:[%s6] sm:$0xf]
        %v920 = vld [vmem:[%s6 + $0x4] sm:$0xf]
        %v921 = vld [vmem:[%s6 + $0x8] sm:$0xf]
        %v922 = vld [vmem:[%s6 + $0xc] sm:$0xf]
        %v923 = vpack.c.bf16 %v918, %v918
        %v924 = vld [vmem:[#allocation7] sm:$0x1]
        %v929 = vunpack.c.l.b16 %v919
        %v930 = vunpack.c.l.b16 %v920
        %v931 = vunpack.c.l.b16 %v921
        %v932 = vunpack.c.l.b16 %v922
        %v933 = vpack.c.b16 %v930, %v929
        %v934 = vpack.c.b16 %v932, %v931
        %v938 = vsel %vm874, %v923, 0
        %940 = vmatprep.subr.bf16.mxu0 0
        %941 = vmatpush1.bf16.msra.mxu0 0
        %942 = vmatprep.subr.bf16.mxu0 0
        %943 = vmatpush1.bf16.msra.mxu0 0
        %944 = vmatprep.subr.bf16.mxu0 0
        %945 = vmatpush1.bf16.msra.mxu0 0
        %946 = vmatprep.subr.bf16.mxu0 0
        %947 = vmatpush1.bf16.msra.mxu0 0
        %948 = vmatprep.subr.bf16.mxu0 0
        %949 = vmatpush1.bf16.msra.mxu0 0
        %950 = vmatprep.subr.bf16.mxu0 0
        %951 = vmatpush1.bf16.msra.mxu0 0
        %952 = vmatprep.subr.bf16.mxu0 0
        %953 = vmatpush1.bf16.msra.mxu0 %v934
        %954 = vmatprep.subr.bf16.mxu0 0
        %955 = vmatpush1.bf16.msra.mxu0 %v933
        %956 = vmatprep.subr.bf16.mxu0 0
        %957 = vmatpush2.bf16.msra.mxu0 0
        %958 = vmatprep.subr.bf16.mxu0 0
        %959 = vmatpush2.bf16.msra.mxu0 0
        %960 = vmatprep.subr.bf16.mxu0 0
        %961 = vmatpush2.bf16.msra.mxu0 0
        %962 = vmatprep.subr.bf16.mxu0 0
        %963 = vmatpush2.bf16.msra.mxu0 0
        %964 = vmatprep.subr.bf16.mxu0 0
        %965 = vmatpush2.bf16.msra.mxu0 0
        %966 = vmatprep.subr.bf16.mxu0 0
        %967 = vmatpush2.bf16.msra.mxu0 0
        %968 = vmatprep.subr.bf16.mxu0 0
        %969 = vmatpush2.bf16.msra.mxu0 0
        %970 = vmatprep.subr.bf16.mxu0 0
        %971 = vmatpush2.bf16.msra.mxu0 0
        %972 = vmatprep.mubr.bf16.mxu0 0
        %973 = vmatmul.mubr.bf16.gmra.mxu0 %v938
        %v974 = vpop.f32.mrf.mxu0
        %v975 = vadd.f32 %v924, %v974
        %v976 = vpop.f32.mrf.mxu0
        %v977 = vpop.f32.mrf.mxu0
        %v978 = vpop.f32.mrf.mxu0
        %979 = vdwg.mxu0
        %v980 = vmul.f32 %v975, 0.35355338
        %v981 = vld [vmem:[%s8] sm:$0xf]
        %v982 = vld [vmem:[%s8 + $0x4] sm:$0xf]
        %v983 = vld [vmem:[%s8 + $0x8] sm:$0xf]
        %v984 = vld [vmem:[%s8 + $0xc] sm:$0xf]
        %v985 = vld [vmem:[#allocation9] sm:$0x1]
        %v990 = vunpack.c.l.b16 %v981
        %v991 = vunpack.c.l.b16 %v982
        %v992 = vunpack.c.l.b16 %v983
        %v993 = vunpack.c.l.b16 %v984
        %v994 = vpack.c.b16 %v991, %v990
        %v995 = vpack.c.b16 %v993, %v992
        %998 = vmatprep.subr.bf16.mxu0 0
        %999 = vmatpush1.bf16.msra.mxu0 0
        %1000 = vmatprep.subr.bf16.mxu0 0
        %1001 = vmatpush1.bf16.msra.mxu0 0
        %1002 = vmatprep.subr.bf16.mxu0 0
        %1003 = vmatpush1.bf16.msra.mxu0 0
        %1004 = vmatprep.subr.bf16.mxu0 0
        %1005 = vmatpush1.bf16.msra.mxu0 0
        %1006 = vmatprep.subr.bf16.mxu0 0
        %1007 = vmatpush1.bf16.msra.mxu0 0
        %1008 = vmatprep.subr.bf16.mxu0 0
        %1009 = vmatpush1.bf16.msra.mxu0 0
        %1010 = vmatprep.subr.bf16.mxu0 0
        %1011 = vmatpush1.bf16.msra.mxu0 %v995
        %1012 = vmatprep.subr.bf16.mxu0 0
        %1013 = vmatpush1.bf16.msra.mxu0 %v994
        %1014 = vmatprep.subr.bf16.mxu0 0
        %1015 = vmatpush2.bf16.msra.mxu0 0
        %1016 = vmatprep.subr.bf16.mxu0 0
        %1017 = vmatpush2.bf16.msra.mxu0 0
        %1018 = vmatprep.subr.bf16.mxu0 0
        %1019 = vmatpush2.bf16.msra.mxu0 0
        %1020 = vmatprep.subr.bf16.mxu0 0
        %1021 = vmatpush2.bf16.msra.mxu0 0
        %1022 = vmatprep.subr.bf16.mxu0 0
        %1023 = vmatpush2.bf16.msra.mxu0 0
        %1024 = vmatprep.subr.bf16.mxu0 0
        %1025 = vmatpush2.bf16.msra.mxu0 0
        %1026 = vmatprep.subr.bf16.mxu0 0
        %1027 = vmatpush2.bf16.msra.mxu0 0
        %1028 = vmatprep.subr.bf16.mxu0 0
        %1029 = vmatpush2.bf16.msra.mxu0 0
        %1030 = vmatprep.mubr.bf16.mxu0 0
        %1031 = vmatmul.mubr.bf16.gmra.mxu0 %v938
        %v1032 = vpop.f32.mrf.mxu0
        %v1033 = vadd.f32 %v985, %v1032
        %v1034 = vpop.f32.mrf.mxu0
        %v1035 = vpop.f32.mrf.mxu0
        %v1036 = vpop.f32.mrf.mxu0
        %1037 = vdwg.mxu0
        %v1038 = vld [vmem:[%s10] sm:$0xf]
        %v1039 = vld [vmem:[%s10 + $0x4] sm:$0xf]
        %v1040 = vld [vmem:[%s10 + $0x8] sm:$0xf]
        %v1041 = vld [vmem:[%s10 + $0xc] sm:$0xf]
        %v1042 = vld [vmem:[#allocation10] sm:$0x1]
        %v1047 = vunpack.c.l.b16 %v1038
        %v1048 = vunpack.c.l.b16 %v1039
        %v1049 = vunpack.c.l.b16 %v1040
        %v1050 = vunpack.c.l.b16 %v1041
        %v1051 = vpack.c.b16 %v1048, %v1047
        %v1052 = vpack.c.b16 %v1050, %v1049
        %1055 = vmatprep.subr.bf16.mxu0 0
        %1056 = vmatpush1.bf16.msra.mxu0 0
        %1057 = vmatprep.subr.bf16.mxu0 0
        %1058 = vmatpush1.bf16.msra.mxu0 0
        %1059 = vmatprep.subr.bf16.mxu0 0
        %1060 = vmatpush1.bf16.msra.mxu0 0
        %1061 = vmatprep.subr.bf16.mxu0 0
        %1062 = vmatpush1.bf16.msra.mxu0 0
        %1063 = vmatprep.subr.bf16.mxu0 0
        %1064 = vmatpush1.bf16.msra.mxu0 0
        %1065 = vmatprep.subr.bf16.mxu0 0
        %1066 = vmatpush1.bf16.msra.mxu0 0
        %1067 = vmatprep.subr.bf16.mxu0 0
        %1068 = vmatpush1.bf16.msra.mxu0 %v1052
        %1069 = vmatprep.subr.bf16.mxu0 0
        %1070 = vmatpush1.bf16.msra.mxu0 %v1051
        %1071 = vmatprep.subr.bf16.mxu0 0
        %1072 = vmatpush2.bf16.msra.mxu0 0
        %1073 = vmatprep.subr.bf16.mxu0 0
        %1074 = vmatpush2.bf16.msra.mxu0 0
        %1075 = vmatprep.subr.bf16.mxu0 0
        %1076 = vmatpush2.bf16.msra.mxu0 0
        %1077 = vmatprep.subr.bf16.mxu0 0
        %1078 = vmatpush2.bf16.msra.mxu0 0
        %1079 = vmatprep.subr.bf16.mxu0 0
        %1080 = vmatpush2.bf16.msra.mxu0 0
        %1081 = vmatprep.subr.bf16.mxu0 0
        %1082 = vmatpush2.bf16.msra.mxu0 0
        %1083 = vmatprep.subr.bf16.mxu0 0
        %1084 = vmatpush2.bf16.msra.mxu0 0
        %1085 = vmatprep.subr.bf16.mxu0 0
        %1086 = vmatpush2.bf16.msra.mxu0 0
        %1087 = vmatprep.mubr.bf16.mxu0 0
        %1088 = vmatmul.mubr.bf16.gmra.mxu0 %v938
        %v1089 = vpop.f32.mrf.mxu0
        %v1090 = vadd.f32 %v1042, %v1089
        %v1091 = vpop.f32.mrf.mxu0
        %v1092 = vpop.f32.mrf.mxu0
        %v1093 = vpop.f32.mrf.mxu0
        %1094 = vdwg.mxu0
        %v1095 = vpack.c.bf16 %v902, %v902
        %v1097 = vlaneseq
        %v1098 = vshrl.u32 %v1097, 7
        %v1099 = vsub.s32 0, %v1098
        %v1100 = vrot.slane %v985, %v1099
        %v1103 = vsel %vm874, %v1095, 0
        %1105 = vmatprep.subr.bf16.mxu0 0
        %1106 = vmatpush1.bf16.msra.mxu0 0
        %1107 = vmatprep.subr.bf16.mxu0 0
        %1108 = vmatpush1.bf16.msra.mxu0 0
        %1109 = vmatprep.subr.bf16.mxu0 0
        %1110 = vmatpush1.bf16.msra.mxu0 0
        %1111 = vmatprep.subr.bf16.mxu0 0
        %1112 = vmatpush1.bf16.msra.mxu0 0
        %1113 = vmatprep.subr.bf16.mxu0 0
        %1114 = vmatpush1.bf16.msra.mxu0 0
        %1115 = vmatprep.subr.bf16.mxu0 0
        %1116 = vmatpush1.bf16.msra.mxu0 0
        %1117 = vmatprep.subr.bf16.mxu0 0
        %1118 = vmatpush1.bf16.msra.mxu0 %v995
        %1119 = vmatprep.subr.bf16.mxu0 0
        %1120 = vmatpush1.bf16.msra.mxu0 %v994
        %1121 = vmatprep.subr.bf16.mxu0 0
        %1122 = vmatpush2.bf16.msra.mxu0 0
        %1123 = vmatprep.subr.bf16.mxu0 0
        %1124 = vmatpush2.bf16.msra.mxu0 0
        %1125 = vmatprep.subr.bf16.mxu0 0
        %1126 = vmatpush2.bf16.msra.mxu0 0
        %1127 = vmatprep.subr.bf16.mxu0 0
        %1128 = vmatpush2.bf16.msra.mxu0 0
        %1129 = vmatprep.subr.bf16.mxu0 0
        %1130 = vmatpush2.bf16.msra.mxu0 0
        %1131 = vmatprep.subr.bf16.mxu0 0
        %1132 = vmatpush2.bf16.msra.mxu0 0
        %1133 = vmatprep.subr.bf16.mxu0 0
        %1134 = vmatpush2.bf16.msra.mxu0 0
        %1135 = vmatprep.subr.bf16.mxu0 0
        %1136 = vmatpush2.bf16.msra.mxu0 0
        %1137 = vmatprep.mubr.bf16.mxu0 0
        %1138 = vmatmul.mubr.bf16.gmra.mxu0 %v1103
        %v1139 = vpop.f32.mrf.mxu0
        %v1140 = vadd.f32 %v1100, %v1139
        %v1141 = vpop.f32.mrf.mxu0
        %v1142 = vpop.f32.mrf.mxu0
        %v1143 = vpop.f32.mrf.mxu0
        %1144 = vdwg.mxu0
        %v1146 = vlaneseq
        %v1147 = vshrl.u32 %v1146, 7
        %v1148 = vsub.s32 0, %v1147
        %v1149 = vrot.slane %v1042, %v1148
        %1151 = vmatprep.subr.bf16.mxu0 0
        %1152 = vmatpush1.bf16.msra.mxu0 0
        %1153 = vmatprep.subr.bf16.mxu0 0
        %1154 = vmatpush1.bf16.msra.mxu0 0
        %1155 = vmatprep.subr.bf16.mxu0 0
        %1156 = vmatpush1.bf16.msra.mxu0 0
        %1157 = vmatprep.subr.bf16.mxu0 0
        %1158 = vmatpush1.bf16.msra.mxu0 0
        %1159 = vmatprep.subr.bf16.mxu0 0
        %1160 = vmatpush1.bf16.msra.mxu0 0
        %1161 = vmatprep.subr.bf16.mxu0 0
        %1162 = vmatpush1.bf16.msra.mxu0 0
        %1163 = vmatprep.subr.bf16.mxu0 0
        %1164 = vmatpush1.bf16.msra.mxu0 %v1052
        %1165 = vmatprep.subr.bf16.mxu0 0
        %1166 = vmatpush1.bf16.msra.mxu0 %v1051
        %1167 = vmatprep.subr.bf16.mxu0 0
        %1168 = vmatpush2.bf16.msra.mxu0 0
        %1169 = vmatprep.subr.bf16.mxu0 0
        %1170 = vmatpush2.bf16.msra.mxu0 0
        %1171 = vmatprep.subr.bf16.mxu0 0
        %1172 = vmatpush2.bf16.msra.mxu0 0
        %1173 = vmatprep.subr.bf16.mxu0 0
        %1174 = vmatpush2.bf16.msra.mxu0 0
        %1175 = vmatprep.subr.bf16.mxu0 0
        %1176 = vmatpush2.bf16.msra.mxu0 0
        %1177 = vmatprep.subr.bf16.mxu0 0
        %1178 = vmatpush2.bf16.msra.mxu0 0
        %1179 = vmatprep.subr.bf16.mxu0 0
        %1180 = vmatpush2.bf16.msra.mxu0 0
        %1181 = vmatprep.subr.bf16.mxu0 0
        %1182 = vmatpush2.bf16.msra.mxu0 0
        %1183 = vmatprep.mubr.bf16.mxu0 0
        %1184 = vmatmul.mubr.bf16.gmra.mxu0 %v1103
        %v1185 = vpop.f32.mrf.mxu0
        %v1186 = vadd.f32 %v1149, %v1185
        %v1187 = vpop.f32.mrf.mxu0
        %v1188 = vpop.f32.mrf.mxu0
        %v1189 = vpop.f32.mrf.mxu0
        %1190 = vdwg.mxu0
        %v1191 = vlaneseq
        %v1192 = vshrl.u32 %v1191, 7
        %v1193 = vsub.s32 0, %v1192
        %v1194 = vrot.slane %v980, %v1193
        %v1195 = vmul.f32 %v1194, %v1140
        %v1196 = vpack.c.bf16 %v1195, %v1195
        %v1201 = vunpack.c.l.b16 %v867
        %v1202 = vunpack.c.l.b16 %v868
        %v1203 = vunpack.c.l.b16 %v869
        %v1204 = vunpack.c.l.b16 %v870
        %v1205 = vpack.c.b16 %v1202, %v1201
        %v1206 = vpack.c.b16 %v1204, %v1203
        %v1210 = vsel %vm874, %v1196, 0
        %1212 = vmatprep.subr.bf16.mxu0 0
        %1213 = vmatpush1.bf16.msra.mxu0 0
        %1214 = vmatprep.subr.bf16.mxu0 0
        %1215 = vmatpush1.bf16.msra.mxu0 0
        %1216 = vmatprep.subr.bf16.mxu0 0
        %1217 = vmatpush1.bf16.msra.mxu0 0
        %1218 = vmatprep.subr.bf16.mxu0 0
        %1219 = vmatpush1.bf16.msra.mxu0 0
        %1220 = vmatprep.subr.bf16.mxu0 0
        %1221 = vmatpush1.bf16.msra.mxu0 0
        %1222 = vmatprep.subr.bf16.mxu0 0
        %1223 = vmatpush1.bf16.msra.mxu0 0
        %1224 = vmatprep.subr.bf16.mxu0 0
        %1225 = vmatpush1.bf16.msra.mxu0 %v1206
        %1226 = vmatprep.subr.bf16.mxu0 0
        %1227 = vmatpush1.bf16.msra.mxu0 %v1205
        %1228 = vmatprep.subr.bf16.mxu0 0
        %1229 = vmatpush2.bf16.msra.mxu0 0
        %1230 = vmatprep.subr.bf16.mxu0 0
        %1231 = vmatpush2.bf16.msra.mxu0 0
        %1232 = vmatprep.subr.bf16.mxu0 0
        %1233 = vmatpush2.bf16.msra.mxu0 0
        %1234 = vmatprep.subr.bf16.mxu0 0
        %1235 = vmatpush2.bf16.msra.mxu0 0
        %1236 = vmatprep.subr.bf16.mxu0 0
        %1237 = vmatpush2.bf16.msra.mxu0 0
        %1238 = vmatprep.subr.bf16.mxu0 0
        %1239 = vmatpush2.bf16.msra.mxu0 0
        %1240 = vmatprep.subr.bf16.mxu0 0
        %1241 = vmatpush2.bf16.msra.mxu0 0
        %1242 = vmatprep.subr.bf16.mxu0 0
        %1243 = vmatpush2.bf16.msra.mxu0 0
        %1244 = vmatprep.mubr.bf16.mxu0 0
        %1245 = vmatmul.mubr.bf16.gmra.mxu0 %v1210
        %v1246 = vpop.f32.mrf.mxu0
        %v1247 = vadd.f32 0.0, %v1246
        %v1248 = vpop.f32.mrf.mxu0
        %v1249 = vpop.f32.mrf.mxu0
        %v1250 = vpop.f32.mrf.mxu0
        %1251 = vdwg.mxu0
        %v1252 = vmul.f32 %v980, %v1033
        %v1253 = vpack.c.bf16 %v1252, %v1252
        %v1255 = vsel %vm874, %v1253, 0
        %1257 = vmatprep.subr.bf16.mxu0 0
        %1258 = vmatpush1.bf16.msra.mxu0 0
        %1259 = vmatprep.subr.bf16.mxu0 0
        %1260 = vmatpush1.bf16.msra.mxu0 0
        %1261 = vmatprep.subr.bf16.mxu0 0
        %1262 = vmatpush1.bf16.msra.mxu0 0
        %1263 = vmatprep.subr.bf16.mxu0 0
        %1264 = vmatpush1.bf16.msra.mxu0 0
        %1265 = vmatprep.subr.bf16.mxu0 0
        %1266 = vmatpush1.bf16.msra.mxu0 0
        %1267 = vmatprep.subr.bf16.mxu0 0
        %1268 = vmatpush1.bf16.msra.mxu0 0
        %1269 = vmatprep.subr.bf16.mxu0 0
        %1270 = vmatpush1.bf16.msra.mxu0 %v1206
        %1271 = vmatprep.subr.bf16.mxu0 0
        %1272 = vmatpush1.bf16.msra.mxu0 %v1205
        %1273 = vmatprep.subr.bf16.mxu0 0
        %1274 = vmatpush2.bf16.msra.mxu0 0
        %1275 = vmatprep.subr.bf16.mxu0 0
        %1276 = vmatpush2.bf16.msra.mxu0 0
        %1277 = vmatprep.subr.bf16.mxu0 0
        %1278 = vmatpush2.bf16.msra.mxu0 0
        %1279 = vmatprep.subr.bf16.mxu0 0
        %1280 = vmatpush2.bf16.msra.mxu0 0
        %1281 = vmatprep.subr.bf16.mxu0 0
        %1282 = vmatpush2.bf16.msra.mxu0 0
        %1283 = vmatprep.subr.bf16.mxu0 0
        %1284 = vmatpush2.bf16.msra.mxu0 0
        %1285 = vmatprep.subr.bf16.mxu0 0
        %1286 = vmatpush2.bf16.msra.mxu0 0
        %1287 = vmatprep.subr.bf16.mxu0 0
        %1288 = vmatpush2.bf16.msra.mxu0 0
        %1289 = vmatprep.mubr.bf16.mxu0 0
        %1290 = vmatmul.mubr.bf16.gmra.mxu0 %v1255
        %v1291 = vpop.f32.mrf.mxu0
        %v1292 = vadd.f32 0.0, %v1291
        %v1293 = vpop.f32.mrf.mxu0
        %v1294 = vpop.f32.mrf.mxu0
        %v1295 = vpop.f32.mrf.mxu0
        %1296 = vdwg.mxu0
        %vm1297 = vcmask 31744
        %v1298 = vsel %vm1297, %v1247, -inf
        %v1299 = vrot.slane %v1298, 4
        %v1300 = vmax.f32 %v1298, %v1299
        %v1301 = vrot.slane %v1300, 2
        %v1302 = vmax.f32 %v1300, %v1301
        %v1303 = vrot.slane %v1302, 1
        %v1304 = vmax.f32 %v1302, %v1303
        %v1305 = vmax.f32 %v1304, %v1292
        %v1306 = vlaneseq
        %v1307 = vshrl.u32 %v1306, 7
        %v1308 = vsub.s32 0, %v1307
        %v1309 = vrot.slane %v1305, %v1308
        %v1310 = vsub.f32 %v1247, %v1309
        %v1311 = vmul.f32 %v1310, 1.442695
        %v1312 = vpow.pop %v1311
        %v1313 = vsub.f32 %v1292, %v1305
        %v1314 = vmul.f32 %v1313, 1.442695
        %v1315 = vpow.pop %v1314
        %v1316 = vsel %vm1297, %v1312, 0.0
        %v1317 = vrot.slane %v1316, 4
        %v1318 = vadd.f32 %v1316, %v1317
        %v1319 = vrot.slane %v1318, 2
        %v1320 = vadd.f32 %v1318, %v1319
        %v1321 = vrot.slane %v1320, 1
        %v1322 = vadd.f32 %v1320, %v1321
        %v1323 = vadd.f32 %v1322, %v1315
        %v1324 = vrcp.pop %v1323
        %v1325 = vlaneseq
        %v1326 = vshrl.u32 %v1325, 7
        %v1327 = vsub.s32 0, %v1326
        %v1328 = vrot.slane %v1324, %v1327
        %v1329 = vmul.f32 %v1312, %v1328
        %v1330 = vmul.f32 %v1315, %v1324
        %v1331 = vpack.c.bf16 %v1329, %v1329
        %v1333 = vsel %vm1297, %v1331, 0
        %vm1335 = vcmask 1041408
        %v1337 = vsel %vm1335, %v871, 0
        %1339 = vmatprep.subr.bf16.mxu0 0
        %1340 = vmatpush1.bf16.msra.mxu0 0
        %1341 = vmatprep.subr.bf16.mxu0 0
        %1342 = vmatpush1.bf16.msra.mxu0 0
        %1343 = vmatprep.subr.bf16.mxu0 0
        %1344 = vmatpush1.bf16.msra.mxu0 0
        %1345 = vmatprep.subr.bf16.mxu0 0
        %1346 = vmatpush1.bf16.msra.mxu0 0
        %1347 = vmatprep.subr.bf16.mxu0 0
        %1348 = vmatpush1.bf16.msra.mxu0 0
        %1349 = vmatprep.subr.bf16.mxu0 0
        %1350 = vmatpush1.bf16.msra.mxu0 0
        %1351 = vmatprep.subr.bf16.mxu0 0
        %1352 = vmatpush1.bf16.msra.mxu0 0
        %1353 = vmatprep.subr.bf16.mxu0 0
        %1354 = vmatpush1.bf16.msra.mxu0 %v1337
        %1355 = vmatprep.subr.bf16.mxu0 0
        %1356 = vmatpush2.bf16.msra.mxu0 0
        %1357 = vmatprep.subr.bf16.mxu0 0
        %1358 = vmatpush2.bf16.msra.mxu0 0
        %1359 = vmatprep.subr.bf16.mxu0 0
        %1360 = vmatpush2.bf16.msra.mxu0 0
        %1361 = vmatprep.subr.bf16.mxu0 0
        %1362 = vmatpush2.bf16.msra.mxu0 0
        %1363 = vmatprep.subr.bf16.mxu0 0
        %1364 = vmatpush2.bf16.msra.mxu0 0
        %1365 = vmatprep.subr.bf16.mxu0 0
        %1366 = vmatpush2.bf16.msra.mxu0 0
        %1367 = vmatprep.subr.bf16.mxu0 0
        %1368 = vmatpush2.bf16.msra.mxu0 0
        %1369 = vmatprep.subr.bf16.mxu0 0
        %1370 = vmatpush2.bf16.msra.mxu0 0
        %1371 = vmatprep.mubr.bf16.mxu0 0
        %1372 = vmatmul.mubr.bf16.gmra.mxu0 %v1333
        %v1373 = vpop.f32.mrf.mxu0
        %v1374 = vadd.f32 0.0, %v1373
        %v1375 = vpop.f32.mrf.mxu0
        %v1376 = vpop.f32.mrf.mxu0
        %v1377 = vpop.f32.mrf.mxu0
        %1378 = vdwg.mxu0
        %v1379 = vpack.c.bf16 %v1330, %v1330
        %v1381 = vsel %vm1297, %v1379, 0
        %1383 = vmatprep.subr.bf16.mxu0 0
        %1384 = vmatpush1.bf16.msra.mxu0 0
        %1385 = vmatprep.subr.bf16.mxu0 0
        %1386 = vmatpush1.bf16.msra.mxu0 0
        %1387 = vmatprep.subr.bf16.mxu0 0
        %1388 = vmatpush1.bf16.msra.mxu0 0
        %1389 = vmatprep.subr.bf16.mxu0 0
        %1390 = vmatpush1.bf16.msra.mxu0 0
        %1391 = vmatprep.subr.bf16.mxu0 0
        %1392 = vmatpush1.bf16.msra.mxu0 0
        %1393 = vmatprep.subr.bf16.mxu0 0
        %1394 = vmatpush1.bf16.msra.mxu0 0
        %1395 = vmatprep.subr.bf16.mxu0 0
        %1396 = vmatpush1.bf16.msra.mxu0 0
        %1397 = vmatprep.subr.bf16.mxu0 0
        %1398 = vmatpush1.bf16.msra.mxu0 %v1337
        %1399 = vmatprep.subr.bf16.mxu0 0
        %1400 = vmatpush2.bf16.msra.mxu0 0
        %1401 = vmatprep.subr.bf16.mxu0 0
        %1402 = vmatpush2.bf16.msra.mxu0 0
        %1403 = vmatprep.subr.bf16.mxu0 0
        %1404 = vmatpush2.bf16.msra.mxu0 0
        %1405 = vmatprep.subr.bf16.mxu0 0
        %1406 = vmatpush2.bf16.msra.mxu0 0
        %1407 = vmatprep.subr.bf16.mxu0 0
        %1408 = vmatpush2.bf16.msra.mxu0 0
        %1409 = vmatprep.subr.bf16.mxu0 0
        %1410 = vmatpush2.bf16.msra.mxu0 0
        %1411 = vmatprep.subr.bf16.mxu0 0
        %1412 = vmatpush2.bf16.msra.mxu0 0
        %1413 = vmatprep.subr.bf16.mxu0 0
        %1414 = vmatpush2.bf16.msra.mxu0 0
        %1415 = vmatprep.mubr.bf16.mxu0 0
        %1416 = vmatmul.mubr.bf16.gmra.mxu0 %v1381
        %v1417 = vpop.f32.mrf.mxu0
        %v1418 = vadd.f32 0.0, %v1417
        %v1419 = vpop.f32.mrf.mxu0
        %v1420 = vpop.f32.mrf.mxu0
        %v1421 = vpop.f32.mrf.mxu0
        %1422 = vdwg.mxu0
        %v1423 = vmul.f32 %v1374, %v1186
        %v1424 = vsel %vm874, %v1423, 0.0
        %v1425 = vrot.slane %v1424, 4
        %v1426 = vadd.f32 %v1424, %v1425
        %v1427 = vrot.slane %v1426, 2
        %v1428 = vadd.f32 %v1426, %v1427
        %v1429 = vrot.slane %v1428, 1
        %v1430 = vadd.f32 %v1428, %v1429
        %v1431 = vmul.f32 %v1418, %v1090
        %v1432 = vadd.f32 %v1430, %v1431
        %v1433 = vld [vmem:[%s12] sm:$0xf]
        %v1434 = vld [vmem:[%s12 + $0x4] sm:$0xf]
        %v1435 = vld [vmem:[%s12 + $0x8] sm:$0xf]
        %v1436 = vld [vmem:[%s12 + $0xc] sm:$0xf]
        %v1437 = vpack.c.bf16 %v1432, %v1432
        %v1442 = vunpack.c.l.b16 %v1433
        %v1443 = vunpack.c.l.b16 %v1434
        %v1444 = vunpack.c.l.b16 %v1435
        %v1445 = vunpack.c.l.b16 %v1436
        %v1446 = vpack.c.b16 %v1443, %v1442
        %v1447 = vpack.c.b16 %v1445, %v1444
        %v1451 = vsel %vm874, %v1437, 0
        %1453 = vmatprep.subr.bf16.mxu0 0
        %1454 = vmatpush1.bf16.msra.mxu0 0
        %1455 = vmatprep.subr.bf16.mxu0 0
        %1456 = vmatpush1.bf16.msra.mxu0 0
        %1457 = vmatprep.subr.bf16.mxu0 0
        %1458 = vmatpush1.bf16.msra.mxu0 0
        %1459 = vmatprep.subr.bf16.mxu0 0
        %1460 = vmatpush1.bf16.msra.mxu0 0
        %1461 = vmatprep.subr.bf16.mxu0 0
        %1462 = vmatpush1.bf16.msra.mxu0 0
        %1463 = vmatprep.subr.bf16.mxu0 0
        %1464 = vmatpush1.bf16.msra.mxu0 0
        %1465 = vmatprep.subr.bf16.mxu0 0
        %1466 = vmatpush1.bf16.msra.mxu0 %v1447
        %1467 = vmatprep.subr.bf16.mxu0 0
        %1468 = vmatpush1.bf16.msra.mxu0 %v1446
        %1469 = vmatprep.subr.bf16.mxu0 0
        %1470 = vmatpush2.bf16.msra.mxu0 0
        %1471 = vmatprep.subr.bf16.mxu0 0
        %1472 = vmatpush2.bf16.msra.mxu0 0
        %1473 = vmatprep.subr.bf16.mxu0 0
        %1474 = vmatpush2.bf16.msra.mxu0 0
        %1475 = vmatprep.subr.bf16.mxu0 0
        %1476 = vmatpush2.bf16.msra.mxu0 0
        %1477 = vmatprep.subr.bf16.mxu0 0
        %1478 = vmatpush2.bf16.msra.mxu0 0
        %1479 = vmatprep.subr.bf16.mxu0 0
        %1480 = vmatpush2.bf16.msra.mxu0 0
        %1481 = vmatprep.subr.bf16.mxu0 0
        %1482 = vmatpush2.bf16.msra.mxu0 0
        %1483 = vmatprep.subr.bf16.mxu0 0
        %1484 = vmatpush2.bf16.msra.mxu0 0
        %1485 = vmatprep.mubr.bf16.mxu0 0
        %1486 = vmatmul.mubr.bf16.gmra.mxu0 %v1451
        %v1487 = vpop.f32.mrf.mxu0
        %v1488 = vadd.f32 0.0, %v1487
        %v1489 = vpop.f32.mrf.mxu0
        %v1490 = vpop.f32.mrf.mxu0
        %v1491 = vpop.f32.mrf.mxu0
        %1492 = vdwg.mxu0
        %v1493 = vadd.f32 %v866, %v1488
        %v1494 = vld [vmem:[#allocation12] sm:$0x1]
        %v1495 = vadd.f32 %v1493, %v1494
        %v1496 = vld [vmem:[#allocation13] sm:$0x1]
        %v1497 = vld [vmem:[#allocation15] sm:$0x1]
        %v1498 = vsel %vm903, %v1495, 0.0
        %1499 = vadd.xlane.f32.xlu0 %v1498
        %v1500 = vpop.xlane.xlu0 %1499
        %v1501 = vmul.f32 %v1500, %v878
        %v1502 = vsub.f32 %v1495, %v1501
        %v1503 = vmul.f32 %v1502, %v1502
        %v1504 = vsel %vm903, %v1503, 0.0
        %1505 = vadd.xlane.f32.xlu0 %v1504
        %v1506 = vpop.xlane.xlu0 %1505
        %v1507 = vmul.f32 %v1506, %v878
        %v1508 = vadd.f32 %v1507, 1e-06
        %v1509 = vrsqrt.pop %v1508
        %v1510 = vmul.f32 %v1502, %v1509
        %v1511 = vmul.f32 %v1510, %v1496
        %v1512 = vadd.f32 %v1511, %v1497
        %v1513 = vld [vmem:[%s16] sm:$0xf]
        %v1514 = vld [vmem:[%s16 + $0x4] sm:$0xf]
        %v1515 = vld [vmem:[%s16 + $0x8] sm:$0xf]
        %v1516 = vld [vmem:[%s16 + $0xc] sm:$0xf]
        %v1517 = vpack.c.bf16 %v1512, %v1512
        %v1518 = vld [vmem:[#allocation16] sm:$0x1]
        %v1523 = vunpack.c.l.b16 %v1513
        %v1524 = vunpack.c.l.b16 %v1514
        %v1525 = vunpack.c.l.b16 %v1515
        %v1526 = vunpack.c.l.b16 %v1516
        %v1527 = vpack.c.b16 %v1524, %v1523
        %v1528 = vpack.c.b16 %v1526, %v1525
        %v1532 = vsel %vm874, %v1517, 0
        %1534 = vmatprep.subr.bf16.mxu0 0
        %1535 = vmatpush1.bf16.msra.mxu0 0
        %1536 = vmatprep.subr.bf16.mxu0 0
        %1537 = vmatpush1.bf16.msra.mxu0 0
        %1538 = vmatprep.subr.bf16.mxu0 0
        %1539 = vmatpush1.bf16.msra.mxu0 0
        %1540 = vmatprep.subr.bf16.mxu0 0
        %1541 = vmatpush1.bf16.msra.mxu0 0
        %1542 = vmatprep.subr.bf16.mxu0 0
        %1543 = vmatpush1.bf16.msra.mxu0 0
        %1544 = vmatprep.subr.bf16.mxu0 0
        %1545 = vmatpush1.bf16.msra.mxu0 0
        %1546 = vmatprep.subr.bf16.mxu0 0
        %1547 = vmatpush1.bf16.msra.mxu0 %v1528
        %1548 = vmatprep.subr.bf16.mxu0 0
        %1549 = vmatpush1.bf16.msra.mxu0 %v1527
        %1550 = vmatprep.subr.bf16.mxu0 0
        %1551 = vmatpush2.bf16.msra.mxu0 0
        %1552 = vmatprep.subr.bf16.mxu0 0
        %1553 = vmatpush2.bf16.msra.mxu0 0
        %1554 = vmatprep.subr.bf16.mxu0 0
        %1555 = vmatpush2.bf16.msra.mxu0 0
        %1556 = vmatprep.subr.bf16.mxu0 0
        %1557 = vmatpush2.bf16.msra.mxu0 0
        %1558 = vmatprep.subr.bf16.mxu0 0
        %1559 = vmatpush2.bf16.msra.mxu0 0
        %1560 = vmatprep.subr.bf16.mxu0 0
        %1561 = vmatpush2.bf16.msra.mxu0 0
        %1562 = vmatprep.subr.bf16.mxu0 0
        %1563 = vmatpush2.bf16.msra.mxu0 0
        %1564 = vmatprep.subr.bf16.mxu0 0
        %1565 = vmatpush2.bf16.msra.mxu0 0
        %1566 = vmatprep.mubr.bf16.mxu0 0
        %1567 = vmatmul.mubr.bf16.gmra.mxu0 %v1532
        %v1568 = vpop.f32.mrf.mxu0
        %v1569 = vadd.f32 %v1518, %v1568
        %v1570 = vpop.f32.mrf.mxu0
        %v1571 = vpop.f32.mrf.mxu0
        %v1572 = vpop.f32.mrf.mxu0
        %1573 = vdwg.mxu0
        %v1574 = vmul.f32 %v1569, 0.5
        %v1575 = vmul.f32 %v1569, 0.044715
        %v1576 = vmul.f32 %v1575, %v1569
        %v1577 = vmul.f32 %v1576, %v1569
        %v1578 = vadd.f32 %v1569, %v1577
        %v1579 = vmul.f32 %v1578, 0.7978846
        %v1580 = vtanh.pop %v1579
        %v1581 = vadd.f32 %v1580, 1.0
        %v1582 = vmul.f32 %v1574, %v1581
        %v1583 = vld [vmem:[%s18] sm:$0xf]
        %v1584 = vld [vmem:[%s18 + $0x4] sm:$0xf]
        %v1585 = vld [vmem:[%s18 + $0x8] sm:$0xf]
        %v1586 = vld [vmem:[%s18 + $0xc] sm:$0xf]
        %v1587 = vld [vmem:[%s18 + $0x10] sm:$0xf]
        %v1588 = vld [vmem:[%s18 + $0x14] sm:$0xf]
        %v1589 = vld [vmem:[%s18 + $0x18] sm:$0xf]
        %v1590 = vld [vmem:[%s18 + $0x1c] sm:$0xf]
        %v1591 = vld [vmem:[%s18 + $0x20] sm:$0xf]
        %v1592 = vld [vmem:[%s18 + $0x24] sm:$0xf]
        %v1593 = vld [vmem:[%s18 + $0x28] sm:$0xf]
        %v1594 = vld [vmem:[%s18 + $0x2c] sm:$0xf]
        %v1595 = vld [vmem:[%s18 + $0x30] sm:$0xf]
        %v1596 = vld [vmem:[%s18 + $0x34] sm:$0xf]
        %v1597 = vld [vmem:[%s18 + $0x38] sm:$0xf]
        %v1598 = vld [vmem:[%s18 + $0x3c] sm:$0xf]
        %v1599 = vpack.c.bf16 %v1582, %v1582
        %v1616 = vunpack.c.l.b16 %v1583
        %v1617 = vunpack.c.l.b16 %v1584
        %v1618 = vunpack.c.l.b16 %v1585
        %v1619 = vunpack.c.l.b16 %v1586
        %v1620 = vunpack.c.l.b16 %v1587
        %v1621 = vunpack.c.l.b16 %v1588
        %v1622 = vunpack.c.l.b16 %v1589
        %v1623 = vunpack.c.l.b16 %v1590
        %v1624 = vunpack.c.l.b16 %v1591
        %v1625 = vunpack.c.l.b16 %v1592
        %v1626 = vunpack.c.l.b16 %v1593
        %v1627 = vunpack.c.l.b16 %v1594
        %v1628 = vunpack.c.l.b16 %v1595
        %v1629 = vunpack.c.l.b16 %v1596
        %v1630 = vunpack.c.l.b16 %v1597
        %v1631 = vunpack.c.l.b16 %v1598
        %v1632 = vpack.c.b16 %v1617, %v1616
        %v1633 = vpack.c.b16 %v1619, %v1618
        %v1634 = vpack.c.b16 %v1621, %v1620
        %v1635 = vpack.c.b16 %v1623, %v1622
        %v1636 = vpack.c.b16 %v1625, %v1624
        %v1637 = vpack.c.b16 %v1627, %v1626
        %v1638 = vpack.c.b16 %v1629, %v1628
        %v1639 = vpack.c.b16 %v1631, %v1630
        %1648 = vmatprep.subr.bf16.mxu0 0
        %1649 = vmatpush1.bf16.msra.mxu0 %v1639
        %1650 = vmatprep.subr.bf16.mxu0 0
        %1651 = vmatpush1.bf16.msra.mxu0 %v1638
        %1652 = vmatprep.subr.bf16.mxu0 0
        %1653 = vmatpush1.bf16.msra.mxu0 %v1637
        %1654 = vmatprep.subr.bf16.mxu0 0
        %1655 = vmatpush1.bf16.msra.mxu0 %v1636
        %1656 = vmatprep.subr.bf16.mxu0 0
        %1657 = vmatpush1.bf16.msra.mxu0 %v1635
        %1658 = vmatprep.subr.bf16.mxu0 0
        %1659 = vmatpush1.bf16.msra.mxu0 %v1634
        %1660 = vmatprep.subr.bf16.mxu0 0
        %1661 = vmatpush1.bf16.msra.mxu0 %v1633
        %1662 = vmatprep.subr.bf16.mxu0 0
        %1663 = vmatpush1.bf16.msra.mxu0 %v1632
        %1664 = vmatprep.subr.bf16.mxu0 0
        %1665 = vmatpush2.bf16.msra.mxu0 0
        %1666 = vmatprep.subr.bf16.mxu0 0
        %1667 = vmatpush2.bf16.msra.mxu0 0
        %1668 = vmatprep.subr.bf16.mxu0 0
        %1669 = vmatpush2.bf16.msra.mxu0 0
        %1670 = vmatprep.subr.bf16.mxu0 0
        %1671 = vmatpush2.bf16.msra.mxu0 0
        %1672 = vmatprep.subr.bf16.mxu0 0
        %1673 = vmatpush2.bf16.msra.mxu0 0
        %1674 = vmatprep.subr.bf16.mxu0 0
        %1675 = vmatpush2.bf16.msra.mxu0 0
        %1676 = vmatprep.subr.bf16.mxu0 0
        %1677 = vmatpush2.bf16.msra.mxu0 0
        %1678 = vmatprep.subr.bf16.mxu0 0
        %1679 = vmatpush2.bf16.msra.mxu0 0
        %1680 = vmatprep.mubr.bf16.mxu0 0
        %1681 = vmatmul.mubr.bf16.gmra.mxu0 %v1599
        %v1682 = vpop.f32.mrf.mxu0
        %v1683 = vadd.f32 0.0, %v1682
        %v1684 = vpop.f32.mrf.mxu0
        %v1685 = vpop.f32.mrf.mxu0
        %v1686 = vpop.f32.mrf.mxu0
        %1687 = vdwg.mxu0
        %v1688 = vadd.f32 %v1495, %v1683
        %v1689 = vld [vmem:[#allocation18] sm:$0x1]
        %v1690 = vadd.f32 %v1688, %v1689
        %s1691 = scalar_lea.vmem [#allocation4], 1
        %v1692 = vld [vmem:[%s1691] sm:$0x1]
        %s1693 = scalar_lea.vmem [#allocation6], 1
        %v1694 = vld [vmem:[%s1693] sm:$0x1]
        %v1696 = vlaneseq
        %v1697 = vshrl.u32 %v1696, 7
        %v1698 = vsub.s32 0, %v1697
        %v1699 = vrot.slane %v1692, %v1698
        %v1701 = vmul.f32 %v888, %v1699
        %v1703 = vlaneseq
        %v1704 = vshrl.u32 %v1703, 7
        %v1705 = vsub.s32 0, %v1704
        %v1706 = vrot.slane %v1694, %v1705
        %v1708 = vadd.f32 %v1701, %v1706
        %v1709 = vsel %vm903, %v1690, 0.0
        %1710 = vadd.xlane.f32.xlu0 %v1709
        %v1711 = vpop.xlane.xlu0 %1710
        %v1712 = vmul.f32 %v1711, %v878
        %v1713 = vsub.f32 %v1690, %v1712
        %v1714 = vmul.f32 %v1713, %v1713
        %v1715 = vsel %vm903, %v1714, 0.0
        %1716 = vadd.xlane.f32.xlu0 %v1715
        %v1717 = vpop.xlane.xlu0 %1716
        %v1718 = vmul.f32 %v1717, %v878
        %v1719 = vadd.f32 %v1718, 1e-06
        %v1720 = vrsqrt.pop %v1719
        %v1721 = vmul.f32 %v1713, %v1720
        %v1722 = vmul.f32 %v1721, %v1692
        %v1723 = vadd.f32 %v1722, %v1694
        %s1724 = scalar_lea.vmem %s6, 16
        %v1725 = vld [vmem:[%s1724] sm:$0xf]
        %v1726 = vld [vmem:[%s1724 + $0x4] sm:$0xf]
        %v1727 = vld [vmem:[%s1724 + $0x8] sm:$0xf]
        %v1728 = vld [vmem:[%s1724 + $0xc] sm:$0xf]
        %v1729 = vpack.c.bf16 %v1723, %v1723
        %s1730 = scalar_lea.vmem [#allocation7], 1
        %v1731 = vld [vmem:[%s1730] sm:$0x1]
        %v1736 = vunpack.c.l.b16 %v1725
        %v1737 = vunpack.c.l.b16 %v1726
        %v1738 = vunpack.c.l.b16 %v1727
        %v1739 = vunpack.c.l.b16 %v1728
        %v1740 = vpack.c.b16 %v1737, %v1736
        %v1741 = vpack.c.b16 %v1739, %v1738
        %v1745 = vsel %vm874, %v1729, 0
        %1747 = vmatprep.subr.bf16.mxu0 0
        %1748 = vmatpush1.bf16.msra.mxu0 0
        %1749 = vmatprep.subr.bf16.mxu0 0
        %1750 = vmatpush1.bf16.msra.mxu0 0
        %1751 = vmatprep.subr.bf16.mxu0 0
        %1752 = vmatpush1.bf16.msra.mxu0 0
        %1753 = vmatprep.subr.bf16.mxu0 0
        %1754 = vmatpush1.bf16.msra.mxu0 0
        %1755 = vmatprep.subr.bf16.mxu0 0
        %1756 = vmatpush1.bf16.msra.mxu0 0
        %1757 = vmatprep.subr.bf16.mxu0 0
        %1758 = vmatpush1.bf16.msra.mxu0 0
        %1759 = vmatprep.subr.bf16.mxu0 0
        %1760 = vmatpush1.bf16.msra.mxu0 %v1741
        %1761 = vmatprep.subr.bf16.mxu0 0
        %1762 = vmatpush1.bf16.msra.mxu0 %v1740
        %1763 = vmatprep.subr.bf16.mxu0 0
        %1764 = vmatpush2.bf16.msra.mxu0 0
        %1765 = vmatprep.subr.bf16.mxu0 0
        %1766 = vmatpush2.bf16.msra.mxu0 0
        %1767 = vmatprep.subr.bf16.mxu0 0
        %1768 = vmatpush2.bf16.msra.mxu0 0
        %1769 = vmatprep.subr.bf16.mxu0 0
        %1770 = vmatpush2.bf16.msra.mxu0 0
        %1771 = vmatprep.subr.bf16.mxu0 0
        %1772 = vmatpush2.bf16.msra.mxu0 0
        %1773 = vmatprep.subr.bf16.mxu0 0
        %1774 = vmatpush2.bf16.msra.mxu0 0
        %1775 = vmatprep.subr.bf16.mxu0 0
        %1776 = vmatpush2.bf16.msra.mxu0 0
        %1777 = vmatprep.subr.bf16.mxu0 0
        %1778 = vmatpush2.bf16.msra.mxu0 0
        %1779 = vmatprep.mubr.bf16.mxu0 0
        %1780 = vmatmul.mubr.bf16.gmra.mxu0 %v1745
        %v1781 = vpop.f32.mrf.mxu0
        %v1782 = vadd.f32 %v1731, %v1781
        %v1783 = vpop.f32.mrf.mxu0
        %v1784 = vpop.f32.mrf.mxu0
        %v1785 = vpop.f32.mrf.mxu0
        %1786 = vdwg.mxu0
        %v1787 = vmul.f32 %v1782, 0.35355338
        %s1788 = scalar_lea.vmem %s8, 16
        %v1789 = vld [vmem:[%s1788] sm:$0xf]
        %v1790 = vld [vmem:[%s1788 + $0x4] sm:$0xf]
        %v1791 = vld [vmem:[%s1788 + $0x8] sm:$0xf]
        %v1792 = vld [vmem:[%s1788 + $0xc] sm:$0xf]
        %s1793 = scalar_lea.vmem [#allocation9], 1
        %v1794 = vld [vmem:[%s1793] sm:$0x1]
        %v1799 = vunpack.c.l.b16 %v1789
        %v1800 = vunpack.c.l.b16 %v1790
        %v1801 = vunpack.c.l.b16 %v1791
        %v1802 = vunpack.c.l.b16 %v1792
        %v1803 = vpack.c.b16 %v1800, %v1799
        %v1804 = vpack.c.b16 %v1802, %v1801
        %1807 = vmatprep.subr.bf16.mxu0 0
        %1808 = vmatpush1.bf16.msra.mxu0 0
        %1809 = vmatprep.subr.bf16.mxu0 0
        %1810 = vmatpush1.bf16.msra.mxu0 0
        %1811 = vmatprep.subr.bf16.mxu0 0
        %1812 = vmatpush1.bf16.msra.mxu0 0
        %1813 = vmatprep.subr.bf16.mxu0 0
        %1814 = vmatpush1.bf16.msra.mxu0 0
        %1815 = vmatprep.subr.bf16.mxu0 0
        %1816 = vmatpush1.bf16.msra.mxu0 0
        %1817 = vmatprep.subr.bf16.mxu0 0
        %1818 = vmatpush1.bf16.msra.mxu0 0
        %1819 = vmatprep.subr.bf16.mxu0 0
        %1820 = vmatpush1.bf16.msra.mxu0 %v1804
        %1821 = vmatprep.subr.bf16.mxu0 0
        %1822 = vmatpush1.bf16.msra.mxu0 %v1803
        %1823 = vmatprep.subr.bf16.mxu0 0
        %1824 = vmatpush2.bf16.msra.mxu0 0
        %1825 = vmatprep.subr.bf16.mxu0 0
        %1826 = vmatpush2.bf16.msra.mxu0 0
        %1827 = vmatprep.subr.bf16.mxu0 0
        %1828 = vmatpush2.bf16.msra.mxu0 0
        %1829 = vmatprep.subr.bf16.mxu0 0
        %1830 = vmatpush2.bf16.msra.mxu0 0
        %1831 = vmatprep.subr.bf16.mxu0 0
        %1832 = vmatpush2.bf16.msra.mxu0 0
        %1833 = vmatprep.subr.bf16.mxu0 0
        %1834 = vmatpush2.bf16.msra.mxu0 0
        %1835 = vmatprep.subr.bf16.mxu0 0
        %1836 = vmatpush2.bf16.msra.mxu0 0
        %1837 = vmatprep.subr.bf16.mxu0 0
        %1838 = vmatpush2.bf16.msra.mxu0 0
        %1839 = vmatprep.mubr.bf16.mxu0 0
        %1840 = vmatmul.mubr.bf16.gmra.mxu0 %v1745
        %v1841 = vpop.f32.mrf.mxu0
        %v1842 = vadd.f32 %v1794, %v1841
        %v1843 = vpop.f32.mrf.mxu0
        %v1844 = vpop.f32.mrf.mxu0
        %v1845 = vpop.f32.mrf.mxu0
        %1846 = vdwg.mxu0
        %s1847 = scalar_lea.vmem %s10, 16
        %v1848 = vld [vmem:[%s1847] sm:$0xf]
        %v1849 = vld [vmem:[%s1847 + $0x4] sm:$0xf]
        %v1850 = vld [vmem:[%s1847 + $0x8] sm:$0xf]
        %v1851 = vld [vmem:[%s1847 + $0xc] sm:$0xf]
        %s1852 = scalar_lea.vmem [#allocation10], 1
        %v1853 = vld [vmem:[%s1852] sm:$0x1]
        %v1858 = vunpack.c.l.b16 %v1848
        %v1859 = vunpack.c.l.b16 %v1849
        %v1860 = vunpack.c.l.b16 %v1850
        %v1861 = vunpack.c.l.b16 %v1851
        %v1862 = vpack.c.b16 %v1859, %v1858
        %v1863 = vpack.c.b16 %v1861, %v1860
        %1866 = vmatprep.subr.bf16.mxu0 0
        %1867 = vmatpush1.bf16.msra.mxu0 0
        %1868 = vmatprep.subr.bf16.mxu0 0
        %1869 = vmatpush1.bf16.msra.mxu0 0
        %1870 = vmatprep.subr.bf16.mxu0 0
        %1871 = vmatpush1.bf16.msra.mxu0 0
        %1872 = vmatprep.subr.bf16.mxu0 0
        %1873 = vmatpush1.bf16.msra.mxu0 0
        %1874 = vmatprep.subr.bf16.mxu0 0
        %1875 = vmatpush1.bf16.msra.mxu0 0
        %1876 = vmatprep.subr.bf16.mxu0 0
        %1877 = vmatpush1.bf16.msra.mxu0 0
        %1878 = vmatprep.subr.bf16.mxu0 0
        %1879 = vmatpush1.bf16.msra.mxu0 %v1863
        %1880 = vmatprep.subr.bf16.mxu0 0
        %1881 = vmatpush1.bf16.msra.mxu0 %v1862
        %1882 = vmatprep.subr.bf16.mxu0 0
        %1883 = vmatpush2.bf16.msra.mxu0 0
        %1884 = vmatprep.subr.bf16.mxu0 0
        %1885 = vmatpush2.bf16.msra.mxu0 0
        %1886 = vmatprep.subr.bf16.mxu0 0
        %1887 = vmatpush2.bf16.msra.mxu0 0
        %1888 = vmatprep.subr.bf16.mxu0 0
        %1889 = vmatpush2.bf16.msra.mxu0 0
        %1890 = vmatprep.subr.bf16.mxu0 0
        %1891 = vmatpush2.bf16.msra.mxu0 0
        %1892 = vmatprep.subr.bf16.mxu0 0
        %1893 = vmatpush2.bf16.msra.mxu0 0
        %1894 = vmatprep.subr.bf16.mxu0 0
        %1895 = vmatpush2.bf16.msra.mxu0 0
        %1896 = vmatprep.subr.bf16.mxu0 0
        %1897 = vmatpush2.bf16.msra.mxu0 0
        %1898 = vmatprep.mubr.bf16.mxu0 0
        %1899 = vmatmul.mubr.bf16.gmra.mxu0 %v1745
        %v1900 = vpop.f32.mrf.mxu0
        %v1901 = vadd.f32 %v1853, %v1900
        %v1902 = vpop.f32.mrf.mxu0
        %v1903 = vpop.f32.mrf.mxu0
        %v1904 = vpop.f32.mrf.mxu0
        %1905 = vdwg.mxu0
        %v1906 = vpack.c.bf16 %v1708, %v1708
        %v1908 = vlaneseq
        %v1909 = vshrl.u32 %v1908, 7
        %v1910 = vsub.s32 0, %v1909
        %v1911 = vrot.slane %v1794, %v1910
        %v1914 = vsel %vm874, %v1906, 0
        %1916 = vmatprep.subr.bf16.mxu0 0
        %1917 = vmatpush1.bf16.msra.mxu0 0
        %1918 = vmatprep.subr.bf16.mxu0 0
        %1919 = vmatpush1.bf16.msra.mxu0 0
        %1920 = vmatprep.subr.bf16.mxu0 0
        %1921 = vmatpush1.bf16.msra.mxu0 0
        %1922 = vmatprep.subr.bf16.mxu0 0
        %1923 = vmatpush1.bf16.msra.mxu0 0
        %1924 = vmatprep.subr.bf16.mxu0 0
        %1925 = vmatpush1.bf16.msra.mxu0 0
        %1926 = vmatprep.subr.bf16.mxu0 0
        %1927 = vmatpush1.bf16.msra.mxu0 0
        %1928 = vmatprep.subr.bf16.mxu0 0
        %1929 = vmatpush1.bf16.msra.mxu0 %v1804
        %1930 = vmatprep.subr.bf16.mxu0 0
        %1931 = vmatpush1.bf16.msra.mxu0 %v1803
        %1932 = vmatprep.subr.bf16.mxu0 0
        %1933 = vmatpush2.bf16.msra.mxu0 0
        %1934 = vmatprep.subr.bf16.mxu0 0
        %1935 = vmatpush2.bf16.msra.mxu0 0
        %1936 = vmatprep.subr.bf16.mxu0 0
        %1937 = vmatpush2.bf16.msra.mxu0 0
        %1938 = vmatprep.subr.bf16.mxu0 0
        %1939 = vmatpush2.bf16.msra.mxu0 0
        %1940 = vmatprep.subr.bf16.mxu0 0
        %1941 = vmatpush2.bf16.msra.mxu0 0
        %1942 = vmatprep.subr.bf16.mxu0 0
        %1943 = vmatpush2.bf16.msra.mxu0 0
        %1944 = vmatprep.subr.bf16.mxu0 0
        %1945 = vmatpush2.bf16.msra.mxu0 0
        %1946 = vmatprep.subr.bf16.mxu0 0
        %1947 = vmatpush2.bf16.msra.mxu0 0
        %1948 = vmatprep.mubr.bf16.mxu0 0
        %1949 = vmatmul.mubr.bf16.gmra.mxu0 %v1914
        %v1950 = vpop.f32.mrf.mxu0
        %v1951 = vadd.f32 %v1911, %v1950
        %v1952 = vpop.f32.mrf.mxu0
        %v1953 = vpop.f32.mrf.mxu0
        %v1954 = vpop.f32.mrf.mxu0
        %1955 = vdwg.mxu0
        %v1957 = vlaneseq
        %v1958 = vshrl.u32 %v1957, 7
        %v1959 = vsub.s32 0, %v1958
        %v1960 = vrot.slane %v1853, %v1959
        %1962 = vmatprep.subr.bf16.mxu0 0
        %1963 = vmatpush1.bf16.msra.mxu0 0
        %1964 = vmatprep.subr.bf16.mxu0 0
        %1965 = vmatpush1.bf16.msra.mxu0 0
        %1966 = vmatprep.subr.bf16.mxu0 0
        %1967 = vmatpush1.bf16.msra.mxu0 0
        %1968 = vmatprep.subr.bf16.mxu0 0
        %1969 = vmatpush1.bf16.msra.mxu0 0
        %1970 = vmatprep.subr.bf16.mxu0 0
        %1971 = vmatpush1.bf16.msra.mxu0 0
        %1972 = vmatprep.subr.bf16.mxu0 0
        %1973 = vmatpush1.bf16.msra.mxu0 0
        %1974 = vmatprep.subr.bf16.mxu0 0
        %1975 = vmatpush1.bf16.msra.mxu0 %v1863
        %1976 = vmatprep.subr.bf16.mxu0 0
        %1977 = vmatpush1.bf16.msra.mxu0 %v1862
        %1978 = vmatprep.subr.bf16.mxu0 0
        %1979 = vmatpush2.bf16.msra.mxu0 0
        %1980 = vmatprep.subr.bf16.mxu0 0
        %1981 = vmatpush2.bf16.msra.mxu0 0
        %1982 = vmatprep.subr.bf16.mxu0 0
        %1983 = vmatpush2.bf16.msra.mxu0 0
        %1984 = vmatprep.subr.bf16.mxu0 0
        %1985 = vmatpush2.bf16.msra.mxu0 0
        %1986 = vmatprep.subr.bf16.mxu0 0
        %1987 = vmatpush2.bf16.msra.mxu0 0
        %1988 = vmatprep.subr.bf16.mxu0 0
        %1989 = vmatpush2.bf16.msra.mxu0 0
        %1990 = vmatprep.subr.bf16.mxu0 0
        %1991 = vmatpush2.bf16.msra.mxu0 0
        %1992 = vmatprep.subr.bf16.mxu0 0
        %1993 = vmatpush2.bf16.msra.mxu0 0
        %1994 = vmatprep.mubr.bf16.mxu0 0
        %1995 = vmatmul.mubr.bf16.gmra.mxu0 %v1914
        %v1996 = vpop.f32.mrf.mxu0
        %v1997 = vadd.f32 %v1960, %v1996
        %v1998 = vpop.f32.mrf.mxu0
        %v1999 = vpop.f32.mrf.mxu0
        %v2000 = vpop.f32.mrf.mxu0
        %2001 = vdwg.mxu0
        %v2002 = vlaneseq
        %v2003 = vshrl.u32 %v2002, 7
        %v2004 = vsub.s32 0, %v2003
        %v2005 = vrot.slane %v1787, %v2004
        %v2006 = vmul.f32 %v2005, %v1951
        %v2007 = vpack.c.bf16 %v2006, %v2006
        %v2009 = vsel %vm874, %v2007, 0
        %2011 = vmatprep.subr.bf16.mxu0 0
        %2012 = vmatpush1.bf16.msra.mxu0 0
        %2013 = vmatprep.subr.bf16.mxu0 0
        %2014 = vmatpush1.bf16.msra.mxu0 0
        %2015 = vmatprep.subr.bf16.mxu0 0
        %2016 = vmatpush1.bf16.msra.mxu0 0
        %2017 = vmatprep.subr.bf16.mxu0 0
        %2018 = vmatpush1.bf16.msra.mxu0 0
        %2019 = vmatprep.subr.bf16.mxu0 0
        %2020 = vmatpush1.bf16.msra.mxu0 0
        %2021 = vmatprep.subr.bf16.mxu0 0
        %2022 = vmatpush1.bf16.msra.mxu0 0
        %2023 = vmatprep.subr.bf16.mxu0 0
        %2024 = vmatpush1.bf16.msra.mxu0 %v1206
        %2025 = vmatprep.subr.bf16.mxu0 0
        %2026 = vmatpush1.bf16.msra.mxu0 %v1205
        %2027 = vmatprep.subr.bf16.mxu0 0
        %2028 = vmatpush2.bf16.msra.mxu0 0
        %2029 = vmatprep.subr.bf16.mxu0 0
        %2030 = vmatpush2.bf16.msra.mxu0 0
        %2031 = vmatprep.subr.bf16.mxu0 0
        %2032 = vmatpush2.bf16.msra.mxu0 0
        %2033 = vmatprep.subr.bf16.mxu0 0
        %2034 = vmatpush2.bf16.msra.mxu0 0
        %2035 = vmatprep.subr.bf16.mxu0 0
        %2036 = vmatpush2.bf16.msra.mxu0 0
        %2037 = vmatprep.subr.bf16.mxu0 0
        %2038 = vmatpush2.bf16.msra.mxu0 0
        %2039 = vmatprep.subr.bf16.mxu0 0
        %2040 = vmatpush2.bf16.msra.mxu0 0
        %2041 = vmatprep.subr.bf16.mxu0 0
        %2042 = vmatpush2.bf16.msra.mxu0 0
        %2043 = vmatprep.mubr.bf16.mxu0 0
        %2044 = vmatmul.mubr.bf16.gmra.mxu0 %v2009
        %v2045 = vpop.f32.mrf.mxu0
        %v2046 = vadd.f32 0.0, %v2045
        %v2047 = vpop.f32.mrf.mxu0
        %v2048 = vpop.f32.mrf.mxu0
        %v2049 = vpop.f32.mrf.mxu0
        %2050 = vdwg.mxu0
        %v2051 = vmul.f32 %v1787, %v1842
        %v2052 = vpack.c.bf16 %v2051, %v2051
        %v2054 = vsel %vm874, %v2052, 0
        %2056 = vmatprep.subr.bf16.mxu0 0
        %2057 = vmatpush1.bf16.msra.mxu0 0
        %2058 = vmatprep.subr.bf16.mxu0 0
        %2059 = vmatpush1.bf16.msra.mxu0 0
        %2060 = vmatprep.subr.bf16.mxu0 0
        %2061 = vmatpush1.bf16.msra.mxu0 0
        %2062 = vmatprep.subr.bf16.mxu0 0
        %2063 = vmatpush1.bf16.msra.mxu0 0
        %2064 = vmatprep.subr.bf16.mxu0 0
        %2065 = vmatpush1.bf16.msra.mxu0 0
        %2066 = vmatprep.subr.bf16.mxu0 0
        %2067 = vmatpush1.bf16.msra.mxu0 0
        %2068 = vmatprep.subr.bf16.mxu0 0
        %2069 = vmatpush1.bf16.msra.mxu0 %v1206
        %2070 = vmatprep.subr.bf16.mxu0 0
        %2071 = vmatpush1.bf16.msra.mxu0 %v1205
        %2072 = vmatprep.subr.bf16.mxu0 0
        %2073 = vmatpush2.bf16.msra.mxu0 0
        %2074 = vmatprep.subr.bf16.mxu0 0
        %2075 = vmatpush2.bf16.msra.mxu0 0
        %2076 = vmatprep.subr.bf16.mxu0 0
        %2077 = vmatpush2.bf16.msra.mxu0 0
        %2078 = vmatprep.subr.bf16.mxu0 0
        %2079 = vmatpush2.bf16.msra.mxu0 0
        %2080 = vmatprep.subr.bf16.mxu0 0
        %2081 = vmatpush2.bf16.msra.mxu0 0
        %2082 = vmatprep.subr.bf16.mxu0 0
        %2083 = vmatpush2.bf16.msra.mxu0 0
        %2084 = vmatprep.subr.bf16.mxu0 0
        %2085 = vmatpush2.bf16.msra.mxu0 0
        %2086 = vmatprep.subr.bf16.mxu0 0
        %2087 = vmatpush2.bf16.msra.mxu0 0
        %2088 = vmatprep.mubr.bf16.mxu0 0
        %2089 = vmatmul.mubr.bf16.gmra.mxu0 %v2054
        %v2090 = vpop.f32.mrf.mxu0
        %v2091 = vadd.f32 0.0, %v2090
        %v2092 = vpop.f32.mrf.mxu0
        %v2093 = vpop.f32.mrf.mxu0
        %v2094 = vpop.f32.mrf.mxu0
        %2095 = vdwg.mxu0
        %v2096 = vsel %vm1297, %v2046, -inf
        %v2097 = vrot.slane %v2096, 4
        %v2098 = vmax.f32 %v2096, %v2097
        %v2099 = vrot.slane %v2098, 2
        %v2100 = vmax.f32 %v2098, %v2099
        %v2101 = vrot.slane %v2100, 1
        %v2102 = vmax.f32 %v2100, %v2101
        %v2103 = vmax.f32 %v2102, %v2091
        %v2104 = vlaneseq
        %v2105 = vshrl.u32 %v2104, 7
        %v2106 = vsub.s32 0, %v2105
        %v2107 = vrot.slane %v2103, %v2106
        %v2108 = vsub.f32 %v2046, %v2107
        %v2109 = vmul.f32 %v2108, 1.442695
        %v2110 = vpow.pop %v2109
        %v2111 = vsub.f32 %v2091, %v2103
        %v2112 = vmul.f32 %v2111, 1.442695
        %v2113 = vpow.pop %v2112
        %v2114 = vsel %vm1297, %v2110, 0.0
        %v2115 = vrot.slane %v2114, 4
        %v2116 = vadd.f32 %v2114, %v2115
        %v2117 = vrot.slane %v2116, 2
        %v2118 = vadd.f32 %v2116, %v2117
        %v2119 = vrot.slane %v2118, 1
        %v2120 = vadd.f32 %v2118, %v2119
        %v2121 = vadd.f32 %v2120, %v2113
        %v2122 = vrcp.pop %v2121
        %v2123 = vlaneseq
        %v2124 = vshrl.u32 %v2123, 7
        %v2125 = vsub.s32 0, %v2124
        %v2126 = vrot.slane %v2122, %v2125
        %v2127 = vmul.f32 %v2110, %v2126
        %v2128 = vmul.f32 %v2113, %v2122
        %v2129 = vpack.c.bf16 %v2127, %v2127
        %v2131 = vsel %vm1297, %v2129, 0
        %2133 = vmatprep.subr.bf16.mxu0 0
        %2134 = vmatpush1.bf16.msra.mxu0 0
        %2135 = vmatprep.subr.bf16.mxu0 0
        %2136 = vmatpush1.bf16.msra.mxu0 0
        %2137 = vmatprep.subr.bf16.mxu0 0
        %2138 = vmatpush1.bf16.msra.mxu0 0
        %2139 = vmatprep.subr.bf16.mxu0 0
        %2140 = vmatpush1.bf16.msra.mxu0 0
        %2141 = vmatprep.subr.bf16.mxu0 0
        %2142 = vmatpush1.bf16.msra.mxu0 0
        %2143 = vmatprep.subr.bf16.mxu0 0
        %2144 = vmatpush1.bf16.msra.mxu0 0
        %2145 = vmatprep.subr.bf16.mxu0 0
        %2146 = vmatpush1.bf16.msra.mxu0 0
        %2147 = vmatprep.subr.bf16.mxu0 0
        %2148 = vmatpush1.bf16.msra.mxu0 %v1337
        %2149 = vmatprep.subr.bf16.mxu0 0
        %2150 = vmatpush2.bf16.msra.mxu0 0
        %2151 = vmatprep.subr.bf16.mxu0 0
        %2152 = vmatpush2.bf16.msra.mxu0 0
        %2153 = vmatprep.subr.bf16.mxu0 0
        %2154 = vmatpush2.bf16.msra.mxu0 0
        %2155 = vmatprep.subr.bf16.mxu0 0
        %2156 = vmatpush2.bf16.msra.mxu0 0
        %2157 = vmatprep.subr.bf16.mxu0 0
        %2158 = vmatpush2.bf16.msra.mxu0 0
        %2159 = vmatprep.subr.bf16.mxu0 0
        %2160 = vmatpush2.bf16.msra.mxu0 0
        %2161 = vmatprep.subr.bf16.mxu0 0
        %2162 = vmatpush2.bf16.msra.mxu0 0
        %2163 = vmatprep.subr.bf16.mxu0 0
        %2164 = vmatpush2.bf16.msra.mxu0 0
        %2165 = vmatprep.mubr.bf16.mxu0 0
        %2166 = vmatmul.mubr.bf16.gmra.mxu0 %v2131
        %v2167 = vpop.f32.mrf.mxu0
        %v2168 = vadd.f32 0.0, %v2167
        %v2169 = vpop.f32.mrf.mxu0
        %v2170 = vpop.f32.mrf.mxu0
        %v2171 = vpop.f32.mrf.mxu0
        %2172 = vdwg.mxu0
        %v2173 = vpack.c.bf16 %v2128, %v2128
        %v2175 = vsel %vm1297, %v2173, 0
        %2177 = vmatprep.subr.bf16.mxu0 0
        %2178 = vmatpush1.bf16.msra.mxu0 0
        %2179 = vmatprep.subr.bf16.mxu0 0
        %2180 = vmatpush1.bf16.msra.mxu0 0
        %2181 = vmatprep.subr.bf16.mxu0 0
        %2182 = vmatpush1.bf16.msra.mxu0 0
        %2183 = vmatprep.subr.bf16.mxu0 0
        %2184 = vmatpush1.bf16.msra.mxu0 0
        %2185 = vmatprep.subr.bf16.mxu0 0
        %2186 = vmatpush1.bf16.msra.mxu0 0
        %2187 = vmatprep.subr.bf16.mxu0 0
        %2188 = vmatpush1.bf16.msra.mxu0 0
        %2189 = vmatprep.subr.bf16.mxu0 0
        %2190 = vmatpush1.bf16.msra.mxu0 0
        %2191 = vmatprep.subr.bf16.mxu0 0
        %2192 = vmatpush1.bf16.msra.mxu0 %v1337
        %2193 = vmatprep.subr.bf16.mxu0 0
        %2194 = vmatpush2.bf16.msra.mxu0 0
        %2195 = vmatprep.subr.bf16.mxu0 0
        %2196 = vmatpush2.bf16.msra.mxu0 0
        %2197 = vmatprep.subr.bf16.mxu0 0
        %2198 = vmatpush2.bf16.msra.mxu0 0
        %2199 = vmatprep.subr.bf16.mxu0 0
        %2200 = vmatpush2.bf16.msra.mxu0 0
        %2201 = vmatprep.subr.bf16.mxu0 0
        %2202 = vmatpush2.bf16.msra.mxu0 0
        %2203 = vmatprep.subr.bf16.mxu0 0
        %2204 = vmatpush2.bf16.msra.mxu0 0
        %2205 = vmatprep.subr.bf16.mxu0 0
        %2206 = vmatpush2.bf16.msra.mxu0 0
        %2207 = vmatprep.subr.bf16.mxu0 0
        %2208 = vmatpush2.bf16.msra.mxu0 0
        %2209 = vmatprep.mubr.bf16.mxu0 0
        %2210 = vmatmul.mubr.bf16.gmra.mxu0 %v2175
        %v2211 = vpop.f32.mrf.mxu0
        %v2212 = vadd.f32 0.0, %v2211
        %v2213 = vpop.f32.mrf.mxu0
        %v2214 = vpop.f32.mrf.mxu0
        %v2215 = vpop.f32.mrf.mxu0
        %2216 = vdwg.mxu0
        %v2217 = vmul.f32 %v2168, %v1997
        %v2218 = vsel %vm874, %v2217, 0.0
        %v2219 = vrot.slane %v2218, 4
        %v2220 = vadd.f32 %v2218, %v2219
        %v2221 = vrot.slane %v2220, 2
        %v2222 = vadd.f32 %v2220, %v2221
        %v2223 = vrot.slane %v2222, 1
        %v2224 = vadd.f32 %v2222, %v2223
        %v2225 = vmul.f32 %v2212, %v1901
        %v2226 = vadd.f32 %v2224, %v2225
        %s2227 = scalar_lea.vmem %s12, 16
        %v2228 = vld [vmem:[%s2227] sm:$0xf]
        %v2229 = vld [vmem:[%s2227 + $0x4] sm:$0xf]
        %v2230 = vld [vmem:[%s2227 + $0x8] sm:$0xf]
        %v2231 = vld [vmem:[%s2227 + $0xc] sm:$0xf]
        %v2232 = vpack.c.bf16 %v2226, %v2226
        %v2237 = vunpack.c.l.b16 %v2228
        %v2238 = vunpack.c.l.b16 %v2229
        %v2239 = vunpack.c.l.b16 %v2230
        %v2240 = vunpack.c.l.b16 %v2231
        %v2241 = vpack.c.b16 %v2238, %v2237
        %v2242 = vpack.c.b16 %v2240, %v2239
        %v2246 = vsel %vm874, %v2232, 0
        %2248 = vmatprep.subr.bf16.mxu0 0
        %2249 = vmatpush1.bf16.msra.mxu0 0
        %2250 = vmatprep.subr.bf16.mxu0 0
        %2251 = vmatpush1.bf16.msra.mxu0 0
        %2252 = vmatprep.subr.bf16.mxu0 0
        %2253 = vmatpush1.bf16.msra.mxu0 0
        %2254 = vmatprep.subr.bf16.mxu0 0
        %2255 = vmatpush1.bf16.msra.mxu0 0
        %2256 = vmatprep.subr.bf16.mxu0 0
        %2257 = vmatpush1.bf16.msra.mxu0 0
        %2258 = vmatprep.subr.bf16.mxu0 0
        %2259 = vmatpush1.bf16.msra.mxu0 0
        %2260 = vmatprep.subr.bf16.mxu0 0
        %2261 = vmatpush1.bf16.msra.mxu0 %v2242
        %2262 = vmatprep.subr.bf16.mxu0 0
        %2263 = vmatpush1.bf16.msra.mxu0 %v2241
        %2264 = vmatprep.subr.bf16.mxu0 0
        %2265 = vmatpush2.bf16.msra.mxu0 0
        %2266 = vmatprep.subr.bf16.mxu0 0
        %2267 = vmatpush2.bf16.msra.mxu0 0
        %2268 = vmatprep.subr.bf16.mxu0 0
        %2269 = vmatpush2.bf16.msra.mxu0 0
        %2270 = vmatprep.subr.bf16.mxu0 0
        %2271 = vmatpush2.bf16.msra.mxu0 0
        %2272 = vmatprep.subr.bf16.mxu0 0
        %2273 = vmatpush2.bf16.msra.mxu0 0
        %2274 = vmatprep.subr.bf16.mxu0 0
        %2275 = vmatpush2.bf16.msra.mxu0 0
        %2276 = vmatprep.subr.bf16.mxu0 0
        %2277 = vmatpush2.bf16.msra.mxu0 0
        %2278 = vmatprep.subr.bf16.mxu0 0
        %2279 = vmatpush2.bf16.msra.mxu0 0
        %2280 = vmatprep.mubr.bf16.mxu0 0
        %2281 = vmatmul.mubr.bf16.gmra.mxu0 %v2246
        %v2282 = vpop.f32.mrf.mxu0
        %v2283 = vadd.f32 0.0, %v2282
        %v2284 = vpop.f32.mrf.mxu0
        %v2285 = vpop.f32.mrf.mxu0
        %v2286 = vpop.f32.mrf.mxu0
        %2287 = vdwg.mxu0
        %v2288 = vadd.f32 %v1690, %v2283
        %s2289 = scalar_lea.vmem [#allocation12], 1
        %v2290 = vld [vmem:[%s2289] sm:$0x1]
        %v2291 = vadd.f32 %v2288, %v2290
        %s2292 = scalar_lea.vmem [#allocation13], 1
        %v2293 = vld [vmem:[%s2292] sm:$0x1]
        %s2294 = scalar_lea.vmem [#allocation15], 1
        %v2295 = vld [vmem:[%s2294] sm:$0x1]
        %v2296 = vsel %vm903, %v2291, 0.0
        %2297 = vadd.xlane.f32.xlu0 %v2296
        %v2298 = vpop.xlane.xlu0 %2297
        %v2299 = vmul.f32 %v2298, %v878
        %v2300 = vsub.f32 %v2291, %v2299
        %v2301 = vmul.f32 %v2300, %v2300
        %v2302 = vsel %vm903, %v2301, 0.0
        %2303 = vadd.xlane.f32.xlu0 %v2302
        %v2304 = vpop.xlane.xlu0 %2303
        %v2305 = vmul.f32 %v2304, %v878
        %v2306 = vadd.f32 %v2305, 1e-06
        %v2307 = vrsqrt.pop %v2306
        %v2308 = vmul.f32 %v2300, %v2307
        %v2309 = vmul.f32 %v2308, %v2293
        %v2310 = vadd.f32 %v2309, %v2295
        %s2311 = scalar_lea.vmem %s16, 16
        %v2312 = vld [vmem:[%s2311] sm:$0xf]
        %v2313 = vld [vmem:[%s2311 + $0x4] sm:$0xf]
        %v2314 = vld [vmem:[%s2311 + $0x8] sm:$0xf]
        %v2315 = vld [vmem:[%s2311 + $0xc] sm:$0xf]
        %v2316 = vpack.c.bf16 %v2310, %v2310
        %s2317 = scalar_lea.vmem [#allocation16], 1
        %v2318 = vld [vmem:[%s2317] sm:$0x1]
        %v2323 = vunpack.c.l.b16 %v2312
        %v2324 = vunpack.c.l.b16 %v2313
        %v2325 = vunpack.c.l.b16 %v2314
        %v2326 = vunpack.c.l.b16 %v2315
        %v2327 = vpack.c.b16 %v2324, %v2323
        %v2328 = vpack.c.b16 %v2326, %v2325
        %v2332 = vsel %vm874, %v2316, 0
        %2334 = vmatprep.subr.bf16.mxu0 0
        %2335 = vmatpush1.bf16.msra.mxu0 0
        %2336 = vmatprep.subr.bf16.mxu0 0
        %2337 = vmatpush1.bf16.msra.mxu0 0
        %2338 = vmatprep.subr.bf16.mxu0 0
        %2339 = vmatpush1.bf16.msra.mxu0 0
        %2340 = vmatprep.subr.bf16.mxu0 0
        %2341 = vmatpush1.bf16.msra.mxu0 0
        %2342 = vmatprep.subr.bf16.mxu0 0
        %2343 = vmatpush1.bf16.msra.mxu0 0
        %2344 = vmatprep.subr.bf16.mxu0 0
        %2345 = vmatpush1.bf16.msra.mxu0 0
        %2346 = vmatprep.subr.bf16.mxu0 0
        %2347 = vmatpush1.bf16.msra.mxu0 %v2328
        %2348 = vmatprep.subr.bf16.mxu0 0
        %2349 = vmatpush1.bf16.msra.mxu0 %v2327
        %2350 = vmatprep.subr.bf16.mxu0 0
        %2351 = vmatpush2.bf16.msra.mxu0 0
        %2352 = vmatprep.subr.bf16.mxu0 0
        %2353 = vmatpush2.bf16.msra.mxu0 0
        %2354 = vmatprep.subr.bf16.mxu0 0
        %2355 = vmatpush2.bf16.msra.mxu0 0
        %2356 = vmatprep.subr.bf16.mxu0 0
        %2357 = vmatpush2.bf16.msra.mxu0 0
        %2358 = vmatprep.subr.bf16.mxu0 0
        %2359 = vmatpush2.bf16.msra.mxu0 0
        %2360 = vmatprep.subr.bf16.mxu0 0
        %2361 = vmatpush2.bf16.msra.mxu0 0
        %2362 = vmatprep.subr.bf16.mxu0 0
        %2363 = vmatpush2.bf16.msra.mxu0 0
        %2364 = vmatprep.subr.bf16.mxu0 0
        %2365 = vmatpush2.bf16.msra.mxu0 0
        %2366 = vmatprep.mubr.bf16.mxu0 0
        %2367 = vmatmul.mubr.bf16.gmra.mxu0 %v2332
        %v2368 = vpop.f32.mrf.mxu0
        %v2369 = vadd.f32 %v2318, %v2368
        %v2370 = vpop.f32.mrf.mxu0
        %v2371 = vpop.f32.mrf.mxu0
        %v2372 = vpop.f32.mrf.mxu0
        %2373 = vdwg.mxu0
        %v2374 = vmul.f32 %v2369, 0.5
        %v2375 = vmul.f32 %v2369, 0.044715
        %v2376 = vmul.f32 %v2375, %v2369
        %v2377 = vmul.f32 %v2376, %v2369
        %v2378 = vadd.f32 %v2369, %v2377
        %v2379 = vmul.f32 %v2378, 0.7978846
        %v2380 = vtanh.pop %v2379
        %v2381 = vadd.f32 %v2380, 1.0
        %v2382 = vmul.f32 %v2374, %v2381
        %s2383 = scalar_lea.vmem %s18, 64
        %v2384 = vld [vmem:[%s2383] sm:$0xf]
        %v2385 = vld [vmem:[%s2383 + $0x4] sm:$0xf]
        %v2386 = vld [vmem:[%s2383 + $0x8] sm:$0xf]
        %v2387 = vld [vmem:[%s2383 + $0xc] sm:$0xf]
        %v2388 = vld [vmem:[%s2383 + $0x10] sm:$0xf]
        %v2389 = vld [vmem:[%s2383 + $0x14] sm:$0xf]
        %v2390 = vld [vmem:[%s2383 + $0x18] sm:$0xf]
        %v2391 = vld [vmem:[%s2383 + $0x1c] sm:$0xf]
        %v2392 = vld [vmem:[%s2383 + $0x20] sm:$0xf]
        %v2393 = vld [vmem:[%s2383 + $0x24] sm:$0xf]
        %v2394 = vld [vmem:[%s2383 + $0x28] sm:$0xf]
        %v2395 = vld [vmem:[%s2383 + $0x2c] sm:$0xf]
        %v2396 = vld [vmem:[%s2383 + $0x30] sm:$0xf]
        %v2397 = vld [vmem:[%s2383 + $0x34] sm:$0xf]
        %v2398 = vld [vmem:[%s2383 + $0x38] sm:$0xf]
        %v2399 = vld [vmem:[%s2383 + $0x3c] sm:$0xf]
        %v2400 = vpack.c.bf16 %v2382, %v2382
        %v2417 = vunpack.c.l.b16 %v2384
        %v2418 = vunpack.c.l.b16 %v2385
        %v2419 = vunpack.c.l.b16 %v2386
        %v2420 = vunpack.c.l.b16 %v2387
        %v2421 = vunpack.c.l.b16 %v2388
        %v2422 = vunpack.c.l.b16 %v2389
        %v2423 = vunpack.c.l.b16 %v2390
        %v2424 = vunpack.c.l.b16 %v2391
        %v2425 = vunpack.c.l.b16 %v2392
        %v2426 = vunpack.c.l.b16 %v2393
        %v2427 = vunpack.c.l.b16 %v2394
        %v2428 = vunpack.c.l.b16 %v2395
        %v2429 = vunpack.c.l.b16 %v2396
        %v2430 = vunpack.c.l.b16 %v2397
        %v2431 = vunpack.c.l.b16 %v2398
        %v2432 = vunpack.c.l.b16 %v2399
        %v2433 = vpack.c.b16 %v2418, %v2417
        %v2434 = vpack.c.b16 %v2420, %v2419
        %v2435 = vpack.c.b16 %v2422, %v2421
        %v2436 = vpack.c.b16 %v2424, %v2423
        %v2437 = vpack.c.b16 %v2426, %v2425
        %v2438 = vpack.c.b16 %v2428, %v2427
        %v2439 = vpack.c.b16 %v2430, %v2429
        %v2440 = vpack.c.b16 %v2432, %v2431
        %2449 = vmatprep.subr.bf16.mxu0 0
        %2450 = vmatpush1.bf16.msra.mxu0 %v2440
        %2451 = vmatprep.subr.bf16.mxu0 0
        %2452 = vmatpush1.bf16.msra.mxu0 %v2439
        %2453 = vmatprep.subr.bf16.mxu0 0
        %2454 = vmatpush1.bf16.msra.mxu0 %v2438
        %2455 = vmatprep.subr.bf16.mxu0 0
        %2456 = vmatpush1.bf16.msra.mxu0 %v2437
        %2457 = vmatprep.subr.bf16.mxu0 0
        %2458 = vmatpush1.bf16.msra.mxu0 %v2436
        %2459 = vmatprep.subr.bf16.mxu0 0
        %2460 = vmatpush1.bf16.msra.mxu0 %v2435
        %2461 = vmatprep.subr.bf16.mxu0 0
        %2462 = vmatpush1.bf16.msra.mxu0 %v2434
        %2463 = vmatprep.subr.bf16.mxu0 0
        %2464 = vmatpush1.bf16.msra.mxu0 %v2433
        %2465 = vmatprep.subr.bf16.mxu0 0
        %2466 = vmatpush2.bf16.msra.mxu0 0
        %2467 = vmatprep.subr.bf16.mxu0 0
        %2468 = vmatpush2.bf16.msra.mxu0 0
        %2469 = vmatprep.subr.bf16.mxu0 0
        %2470 = vmatpush2.bf16.msra.mxu0 0
        %2471 = vmatprep.subr.bf16.mxu0 0
        %2472 = vmatpush2.bf16.msra.mxu0 0
        %2473 = vmatprep.subr.bf16.mxu0 0
        %2474 = vmatpush2.bf16.msra.mxu0 0
        %2475 = vmatprep.subr.bf16.mxu0 0
        %2476 = vmatpush2.bf16.msra.mxu0 0
        %2477 = vmatprep.subr.bf16.mxu0 0
        %2478 = vmatpush2.bf16.msra.mxu0 0
        %2479 = vmatprep.subr.bf16.mxu0 0
        %2480 = vmatpush2.bf16.msra.mxu0 0
        %2481 = vmatprep.mubr.bf16.mxu0 0
        %2482 = vmatmul.mubr.bf16.gmra.mxu0 %v2400
        %v2483 = vpop.f32.mrf.mxu0
        %v2484 = vadd.f32 0.0, %v2483
        %v2485 = vpop.f32.mrf.mxu0
        %v2486 = vpop.f32.mrf.mxu0
        %v2487 = vpop.f32.mrf.mxu0
        %2488 = vdwg.mxu0
        %v2489 = vadd.f32 %v2291, %v2484
        %s2490 = scalar_lea.vmem [#allocation18], 1
        %v2491 = vld [vmem:[%s2490] sm:$0x1]
        %v2492 = vadd.f32 %v2489, %v2491
        %v2493 = vld [vmem:[#allocation19] sm:$0x1]
        %v2494 = vld [vmem:[#allocation21] sm:$0x1]
        %v2495 = vsel %vm903, %v2492, 0.0
        %2496 = vadd.xlane.f32.xlu0 %v2495
        %v2497 = vpop.xlane.xlu0 %2496
        %v2498 = vmul.f32 %v2497, %v878
        %v2499 = vsub.f32 %v2492, %v2498
        %v2500 = vmul.f32 %v2499, %v2499
        %v2501 = vsel %vm903, %v2500, 0.0
        %2502 = vadd.xlane.f32.xlu0 %v2501
        %v2503 = vpop.xlane.xlu0 %2502
        %v2504 = vmul.f32 %v2503, %v878
        %v2505 = vadd.f32 %v2504, 1e-06
        %v2506 = vrsqrt.pop %v2505
        %v2507 = vmul.f32 %v2499, %v2506
        %v2508 = vmul.f32 %v2507, %v2493
        %v2509 = vadd.f32 %v2508, %v2494
        %v2511 = vlaneseq
        %v2512 = vshrl.u32 %v2511, 7
        %v2513 = vsub.s32 0, %v2512
        %v2514 = vrot.slane %v2493, %v2513
        %v2516 = vmul.f32 %v888, %v2514
        %v2518 = vlaneseq
        %v2519 = vshrl.u32 %v2518, 7
        %v2520 = vsub.s32 0, %v2519
        %v2521 = vrot.slane %v2494, %v2520
        %v2523 = vadd.f32 %v2516, %v2521
        %2524 = vst.msk [vmem:[%s863] sm:$0x1] %vm903, %v2509
        %2525 = vst.msk [vmem:[%s863 + $0x1] sm:$0xff] %vm874, %v2523
        %p2526 = scmp.lt.s32.totalorder %s40, 1
        %s2527 = scalar_select %p2526, %s40, 1
        %s2528 = smul.addr %s2527, 2
        %s2529 = smul.addr %s2528, 8
        %s2530 = scalar_lea.vmem %s22, %s2529
        // Predicated region
        $region161: #{selfpatch_head_forward.1} parent=107 // pred_check
          %p2531 = pneg %p525
        $region162: #{selfpatch_head_forward.1} parent=107 // pred_check_branch
          %2533 = sbr.rel (%p2531) target = $region164
        $region163: #{selfpatch_head_forward.1} parent=107 // pred_region
          _
        $region164: #{selfpatch_head_forward.1} parent=107 // pred_fallthru
          _
      $region108: #{selfpatch_head_forward.1} parent=5 // pred_fallthru
        _
      %p2534 = scmp.le.s32.totalorder 2, %s35
      // Predicated region
      $region165: #{selfpatch_head_forward.1} parent=5 // pred_check
        %p2535 = pneg %p2534
      $region166: #{selfpatch_head_forward.1} parent=5 // pred_check_branch
        %2537 = sbr.rel (%p2535) target = $region168
      $region167: #{selfpatch_head_forward.1} parent=5 // pred_region
        %s2538 = ssub.s32 %s35, 2
        // Predicated region
        $region169: #{selfpatch_head_forward.1} parent=167 // pred_check
          %p2539 = pneg %p531
        $region170: #{selfpatch_head_forward.1} parent=167 // pred_check_branch
          %2541 = sbr.rel (%p2539) target = $region172
        $region171: #{selfpatch_head_forward.1} parent=167 // pred_region
          %p2542 = scmp.lt.s32.totalorder %s41, 1
          %s2543 = scalar_select %p2542, %s41, 1
          %s2544 = smul.addr %s2543, 2
          %s2545 = smul.addr %s2544, 8
          %s2546 = scalar_lea.vmem %s22, %s2545
        $region172: #{selfpatch_head_forward.1} parent=167 // pred_fallthru
          _
      $region168: #{selfpatch_head_forward.1} parent=5 // pred_fallthru
        _
    $region6: #{selfpatch_head_forward.1} parent=1 // loop_footer
      %s39 = sadd.s32 1, %s35
    $region7: #{selfpatch_head_forward.1} parent=1 // loop_footer_branch
      %34 = sbr.rel target = $region3
    $region8: #{selfpatch_head_forward.1} parent=1 // loop_exit
      _
    %2547 = vsyncpa [#allocation3], 1
    %s2548 = scalar_lea.sflag [#allocation3], 1
    %2549 = vsyncpa %s2548, 1
    %2550 = vsyncpa [#allocation5], 1
    %2551 = vsyncpa [#allocation8], 1
    %2552 = vsyncpa [#allocation11], 1
    %2553 = vsyncpa [#allocation14], 1
    %2554 = vsyncpa [#allocation17], 1
    %2555 = vsyncpa [#allocation20], 1

</llo_original>
